<compile_context>
chip_gen: v7x
topology: tpu7x:2x2x1
jax: 0.10.0
libtpu: 0.0.40
codegen_flags: <defaults>
</compile_context>

<pallas_src>
import functools

import jax
import jax.numpy as jnp
from jax.experimental import pallas as pl
from jax.experimental.pallas import tpu as pltpu

FEAT = 72          # input_joints * joint_dims = 24 * 3 (fixed by .view(B, -1, 72))
POSE = 72          # SMPL pose params
HP = 128           # lane padding for features / hidden / packed gate block


def _dot16(a, b):
    """bf16 x bf16 MXU matmul with f32 accumulation."""
    return jnp.dot(a.astype(jnp.bfloat16), b.astype(jnp.bfloat16),
                   preferred_element_type=jnp.float32)


# ----------------------------- in-kernel GRU step -----------------------------
def _gru_step(gi, h, w_hh, b_hn, H):
    """Gate-packed GRU step (PyTorch semantics), input projection precomputed.

    Packed lane layout of gi / gh / W_hh columns: [z | r | n | 0], each gate
    H lanes wide.  h is (B, HP) with the hidden state in lanes 0..H-1; lanes
    H..127 carry bounded don't-care values that can never reach a valid
    output because every weight row beyond the valid range is zero.
    """
    gh = _dot16(h, w_hh)                              # (B, HP)
    s = jax.nn.sigmoid(gi + gh)                       # z @ [0:H], r @ [H:2H]
    r_n = pltpu.roll(s, H, axis=1)                    # r moved to [2H:3H]
    n = jnp.tanh(gi + r_n * (gh + b_hn))              # n valid @ [2H:3H]
    n0 = pltpu.roll(n, HP - 2 * H, axis=1)            # n moved to [0:H]
    return (1.0 - s) * n0 + s * h                     # z (= s) already @ [0:H]


# --------------------------------- the kernel ---------------------------------
def motion_kernel(
    x_ref, tgt_ref,
    e_wih0, e_whh0, e_bg0, e_bhn0,
    e_wih1, e_whh1, e_bg1, e_bhn1,
    t_w, t_b,
    d_bg0, d_bhn0, d_bg1, d_bhn1, p_b1, p_b2,
    d_wih0_hbm, d_whh0_hbm, d_wih1_hbm, d_whh1_hbm, p_w1_hbm, p_w2_hbm,
    out_ref,
    d_wih0_v, d_whh0_v, d_wih1_v, d_whh1_v, p_w1_v, p_w2_v, dma_sems,
    *, t_in, t_out, batch, hidden,
):
    B, H = batch, hidden

    # ---- kick off decoder / predictor weight DMAs (overlap encoder compute) --
    copies = [
        pltpu.make_async_copy(d_wih0_hbm, d_wih0_v, dma_sems.at[0]),
        pltpu.make_async_copy(d_whh0_hbm, d_whh0_v, dma_sems.at[1]),
        pltpu.make_async_copy(d_wih1_hbm, d_wih1_v, dma_sems.at[2]),
        pltpu.make_async_copy(d_whh1_hbm, d_whh1_v, dma_sems.at[3]),
        pltpu.make_async_copy(p_w1_hbm, p_w1_v, dma_sems.at[4]),
        pltpu.make_async_copy(p_w2_hbm, p_w2_v, dma_sems.at[5]),
    ]
    for cp in copies:
        cp.start()

    # ---- encoder layer-0 input projections for ALL timesteps: one matmul -----
    # Kept as a register value (8 vregs) and sliced at 8-aligned offsets.
    gi0_all = _dot16(x_ref[...], e_wih0[...]) + e_bg0[...]      # (T_in*B, HP)

    # encoder-phase biases (broadcast once; short live range)
    e_bg1_b = jnp.broadcast_to(e_bg1[...], (B, HP))
    e_bhn0_b = jnp.broadcast_to(e_bhn0[...], (B, HP))
    e_bhn1_b = jnp.broadcast_to(e_bhn1[...], (B, HP))

    # ---- sequence_encoder: 2-layer GRU, fully unrolled recurrence ------------
    h0 = jnp.zeros((B, HP), jnp.float32)
    h1 = jnp.zeros((B, HP), jnp.float32)
    for t in range(t_in):
        gi0_t = gi0_all[t * B:(t + 1) * B, :]                   # aligned slice
        h0 = _gru_step(gi0_t, h0, e_whh0[...], e_bhn0_b, H)
        gi1 = _dot16(h0, e_wih1[...]) + e_bg1_b
        h1 = _gru_step(gi1, h1, e_whh1[...], e_bhn1_b, H)

    # ---- target_encoder: Linear + ReLU (dropout = identity) ------------------
    tgt_enc = jnp.maximum(_dot16(tgt_ref[...], t_w[...]) + t_b[...], 0.0)
    combined = jnp.concatenate([h1, tgt_enc], axis=-1)          # (B, 2*HP)

    # ---- pose_decoder: loop-invariant input projection hoisted ---------------
    copies[0].wait()                                            # d_wih0 ready
    gi0_dec = _dot16(combined, d_wih0_v[...]) + d_bg0[...]      # reused per step

    d_bg1_b = jnp.broadcast_to(d_bg1[...], (B, HP))
    d_bhn0_b = jnp.broadcast_to(d_bhn0[...], (B, HP))
    d_bhn1_b = jnp.broadcast_to(d_bhn1[...], (B, HP))

    copies[1].wait(); copies[2].wait(); copies[3].wait()        # recurrent Ws

    dh0 = jnp.zeros((B, HP), jnp.float32)
    dh1 = jnp.zeros((B, HP), jnp.float32)
    dh1_steps = []
    for _ in range(t_out):                                      # fully unrolled
        dh0 = _gru_step(gi0_dec, dh0, d_whh0_v[...], d_bhn0_b, H)
        gi1 = _dot16(dh0, d_wih1_v[...]) + d_bg1_b
        dh1 = _gru_step(gi1, dh1, d_whh1_v[...], d_bhn1_b, H)
        dh1_steps.append(dh1)

    # ---- pose_predictor on the whole (T_out*B, HP) slab; one dense store -----
    dh1_all = jnp.concatenate(dh1_steps, axis=0)                # (T_out*B, HP)
    copies[4].wait(); copies[5].wait()                          # p_w1 / p_w2
    mid = jnp.maximum(_dot16(dh1_all, p_w1_v[...]) + p_b1[...], 0.0)
    out_ref[...] = _dot16(mid, p_w2_v[...]) + p_b2[...]


# --------------------------- weight padding / packing -------------------------
def pad_params(params, hidden):
    """Pad / re-layout logical (pre-transposed, gate order r,z,n) params.

    * Gate packing: the three H-wide gate blocks go into ONE 128-lane block in
      order [z | r | n | pad]; contraction (row) dims are zero-padded to 128
      (256 for the decoder input, matching the concat of two padded blocks).
    * b_ih + (b_hr, b_hz) are folded into one packed gate bias; b_hn stays
      separate (PyTorch applies it inside the r * (...) term).
    * Weight matrices are returned in bf16 (MXU operands); biases stay f32.
    """
    H = hidden
    assert 3 * H <= HP and FEAT <= HP and POSE <= HP

    (e_wih0, e_whh0, e_bih0, e_bhh0,
     e_wih1, e_whh1, e_bih1, e_bhh1,
     t_w, t_b,
     d_wih0, d_whh0, d_bih0, d_bhh0,
     d_wih1, d_whh1, d_bih1, d_bhh1,
     p_w1, p_b1, p_w2, p_b2) = params

    bf16 = jnp.bfloat16

    def gate_pack(w):                 # (rows, 3H) -> (rows, HP), layout [z|r|n]
        rows = w.shape[0]
        out = jnp.zeros((rows, HP), jnp.float32)
        out = out.at[:, 0:H].set(w[:, H:2 * H])                 # z
        out = out.at[:, H:2 * H].set(w[:, 0:H])                 # r
        out = out.at[:, 2 * H:3 * H].set(w[:, 2 * H:3 * H])     # n
        return out

    def pad2(w, rows, cols):
        out = jnp.zeros((rows, cols), jnp.float32)
        return out.at[:w.shape[0], :w.shape[1]].set(w)

    def row_pad(w, rows):
        return pad2(w, rows, w.shape[1])

    def fold_bias(b_ih, b_hh):
        bg = b_ih + jnp.concatenate(
            [b_hh[:, :H], b_hh[:, H:2 * H], jnp.zeros((1, H), jnp.float32)],
            axis=-1)
        b_hn = jnp.zeros((1, HP), jnp.float32).at[:, 2 * H:3 * H].set(
            b_hh[:, 2 * H:3 * H])
        return gate_pack(bg), b_hn

    pe_wih0 = row_pad(gate_pack(e_wih0), HP).astype(bf16)
    pe_whh0 = row_pad(gate_pack(e_whh0), HP).astype(bf16)
    pe_bg0, pe_bhn0 = fold_bias(e_bih0, e_bhh0)

    pe_wih1 = row_pad(gate_pack(e_wih1), HP).astype(bf16)
    pe_whh1 = row_pad(gate_pack(e_whh1), HP).astype(bf16)
    pe_bg1, pe_bhn1 = fold_bias(e_bih1, e_bhh1)

    pt_w = pad2(t_w, HP, HP).astype(bf16)
    pt_b = pad2(t_b, 1, HP)

    # decoder layer 0: input = concat([seq_enc_pad, tgt_enc_pad]) -> 2*HP rows
    dg = gate_pack(d_wih0)                                       # (2H, HP)
    pd_wih0 = (jnp.zeros((2 * HP, HP), jnp.float32)
               .at[:H, :].set(dg[:H, :])
               .at[HP:HP + H, :].set(dg[H:2 * H, :])).astype(bf16)
    pd_whh0 = row_pad(gate_pack(d_whh0), HP).astype(bf16)
    pd_bg0, pd_bhn0 = fold_bias(d_bih0, d_bhh0)

    pd_wih1 = row_pad(gate_pack(d_wih1), HP).astype(bf16)
    pd_whh1 = row_pad(gate_pack(d_whh1), HP).astype(bf16)
    pd_bg1, pd_bhn1 = fold_bias(d_bih1, d_bhh1)

    pp_w1 = pad2(p_w1, HP, HP).astype(bf16)
    pp_b1 = pad2(p_b1, 1, HP)
    pp_w2 = pad2(p_w2, HP, HP).astype(bf16)
    pp_b2 = pad2(p_b2, 1, HP)

    vmem_params = [pe_wih0, pe_whh0, pe_bg0, pe_bhn0,
                   pe_wih1, pe_whh1, pe_bg1, pe_bhn1,
                   pt_w, pt_b,
                   pd_bg0, pd_bhn0, pd_bg1, pd_bhn1, pp_b1, pp_b2]
    hbm_params = [pd_wih0, pd_whh0, pd_wih1, pd_whh1, pp_w1, pp_w2]
    return vmem_params, hbm_params


# ---------------------------------- wrapper -----------------------------------
def motion_sequence_network(params, input_sequence, target_position,
                            output_sequence_length, *, hidden):
    """Mirrors MotionSequenceNetwork.forward (inference mode)."""
    B = input_sequence.shape[0]
    flat_sequence = input_sequence.reshape(B, -1, FEAT).astype(jnp.float32)
    flat_target = target_position.reshape(B, -1).astype(jnp.float32)
    t_in = flat_sequence.shape[1]
    t_out = output_sequence_length

    bp = ((B + 7) // 8) * 8          # sublane-pad batch so every tile is aligned

    # time-major, flattened to (T_in*BP, 128), bf16 for the MXU
    x_tm = (jnp.zeros((t_in, bp, HP), jnp.float32)
            .at[:, :B, :FEAT].set(jnp.transpose(flat_sequence, (1, 0, 2))))
    x_pad = x_tm.reshape(t_in * bp, HP).astype(jnp.bfloat16)
    tgt_pad = (jnp.zeros((bp, HP), jnp.float32)
               .at[:B, :FEAT].set(flat_target)).astype(jnp.bfloat16)

    vmem_params, hbm_params = pad_params(params, hidden)
    args = [x_pad, tgt_pad] + vmem_params + hbm_params

    in_specs = (
        [pl.BlockSpec(memory_space=pltpu.MemorySpace.VMEM)] * (2 + len(vmem_params))
        + [pl.BlockSpec(memory_space=pl.ANY)] * len(hbm_params))

    out_tm = pl.pallas_call(
        functools.partial(motion_kernel, t_in=t_in, t_out=t_out,
                          batch=bp, hidden=hidden),
        out_shape=jax.ShapeDtypeStruct((t_out * bp, HP), jnp.float32),
        in_specs=in_specs,
        out_specs=pl.BlockSpec(memory_space=pltpu.MemorySpace.VMEM),
        scratch_shapes=[
            pltpu.VMEM((2 * HP, HP), jnp.bfloat16),    # d_wih0
            pltpu.VMEM((HP, HP), jnp.bfloat16),        # d_whh0
            pltpu.VMEM((HP, HP), jnp.bfloat16),        # d_wih1
            pltpu.VMEM((HP, HP), jnp.bfloat16),        # d_whh1
            pltpu.VMEM((HP, HP), jnp.bfloat16),        # p_w1
            pltpu.VMEM((HP, HP), jnp.bfloat16),        # p_w2
            pltpu.SemaphoreType.DMA((6,)),
        ],
    )(*args)

    # (T_out*BP, 128) -> (B, T_out, 72)
    out = out_tm.reshape(t_out, bp, HP)
    return jnp.transpose(out, (1, 0, 2))[:B, :, :POSE]


# ---------------------------- parameter setup ---------------------------------
def init_params(key, hidden, feat=FEAT, pose=POSE):
    """Deterministic logical params, pre-transposed for `x @ W_T` kernels."""
    H = hidden
    scale = 1.0 / (H ** 0.5)
    shapes = [
        # sequence_encoder layer 0
        (feat, 3 * H), (H, 3 * H), (1, 3 * H), (1, 3 * H),
        # sequence_encoder layer 1
        (H, 3 * H), (H, 3 * H), (1, 3 * H), (1, 3 * H),
        # target_encoder Linear
        (feat, H), (1, H),
        # pose_decoder layer 0 (input = 2H)
        (2 * H, 3 * H), (H, 3 * H), (1, 3 * H), (1, 3 * H),
        # pose_decoder layer 1
        (H, 3 * H), (H, 3 * H), (1, 3 * H), (1, 3 * H),
        # pose_predictor: Linear(H, H//2), Linear(H//2, pose)
        (H, H // 2), (1, H // 2), (H // 2, pose), (1, pose),
    ]
    keys = jax.random.split(key, len(shapes))
    return [jax.random.uniform(k, s, jnp.float32, -scale, scale)
            for k, s in zip(keys, shapes)]


# ---------------------------- pure-JAX reference -------------------------------
def reference_forward(params, x_seq, target, t_out, hidden):
    """Reference with the SAME bf16 matmul casts as the kernel (f32 elsewhere)."""
    H = hidden
    (e_wih0, e_whh0, e_bih0, e_bhh0,
     e_wih1, e_whh1, e_bih1, e_bhh1,
     t_w, t_b,
     d_wih0, d_whh0, d_bih0, d_bhh0,
     d_wih1, d_whh1, d_bih1, d_bhh1,
     p_w1, p_b1, p_w2, p_b2) = params
    B, T, _ = x_seq.shape

    def gru_cell(x, h, w_ih, w_hh, b_ih, b_hh):
        gi = _dot16(x, w_ih) + b_ih
        gh = _dot16(h, w_hh) + b_hh
        r = jax.nn.sigmoid(gi[:, :H] + gh[:, :H])
        z = jax.nn.sigmoid(gi[:, H:2 * H] + gh[:, H:2 * H])
        n = jnp.tanh(gi[:, 2 * H:] + r * gh[:, 2 * H:])
        return (1.0 - z) * n + z * h

    h0 = jnp.zeros((B, H), jnp.float32)
    h1 = jnp.zeros((B, H), jnp.float32)
    for t in range(T):
        h0 = gru_cell(x_seq[:, t], h0, e_wih0, e_whh0, e_bih0, e_bhh0)
        h1 = gru_cell(h0, h1, e_wih1, e_whh1, e_bih1, e_bhh1)

    tgt_enc = jnp.maximum(_dot16(target, t_w) + t_b, 0.0)
    comb = jnp.concatenate([h1, tgt_enc], axis=-1)

    dh0 = jnp.zeros((B, H), jnp.float32)
    dh1 = jnp.zeros((B, H), jnp.float32)
    outs = []
    for _ in range(t_out):
        dh0 = gru_cell(comb, dh0, d_wih0, d_whh0, d_bih0, d_bhh0)
        dh1 = gru_cell(dh0, dh1, d_wih1, d_whh1, d_bih1, d_bhh1)
        mid = jnp.maximum(_dot16(dh1, p_w1) + p_b1, 0.0)
        outs.append(_dot16(mid, p_w2) + p_b2)
    return jnp.stack(outs, axis=1)


if __name__ == "__main__":
    B, T_IN, T_OUT, HIDDEN = 2, 8, 6, 32

    key = jax.random.PRNGKey(0)
    k_x, k_t, k_p = jax.random.split(key, 3)

    input_sequence = jax.random.normal(k_x, (B, T_IN, FEAT), jnp.float32)
    target_position = jax.random.normal(k_t, (B, FEAT), jnp.float32)
    params = init_params(k_p, HIDDEN)

    out = motion_sequence_network(params, input_sequence, target_position,
                                  T_OUT, hidden=HIDDEN)
    out = jax.block_until_ready(out)
    assert out.shape == (B, T_OUT, POSE), out.shape

    ref = reference_forward(params, input_sequence, target_position, T_OUT, HIDDEN)
    ref = jax.block_until_ready(ref)
    # Tolerance reflects bf16 MXU operands (kernel and reference use identical
    # bf16 casts; residual drift comes from accumulation order / requantization
    # of the recurrent state across the 8+6 unrolled steps).
    if not jnp.allclose(out, ref, rtol=2e-2, atol=2e-2):
        err = jnp.max(jnp.abs(out - ref))
        raise AssertionError(
            f"Pallas kernel output does not match JAX reference (max abs err {err})")

    print("KERNEL_OK")
</pallas_src>

<mosaic_0001>
module attributes {stable_mosaic.version = 11 : i64} {
  func.func @motion_kernel(%arg0: memref<64x128xbf16, #tpu.memory_space<vmem>>, %arg1: memref<8x128xbf16, #tpu.memory_space<vmem>>, %arg2: memref<128x128xbf16, #tpu.memory_space<vmem>>, %arg3: memref<128x128xbf16, #tpu.memory_space<vmem>>, %arg4: memref<1x128xf32, #tpu.memory_space<vmem>>, %arg5: memref<1x128xf32, #tpu.memory_space<vmem>>, %arg6: memref<128x128xbf16, #tpu.memory_space<vmem>>, %arg7: memref<128x128xbf16, #tpu.memory_space<vmem>>, %arg8: memref<1x128xf32, #tpu.memory_space<vmem>>, %arg9: memref<1x128xf32, #tpu.memory_space<vmem>>, %arg10: memref<128x128xbf16, #tpu.memory_space<vmem>>, %arg11: memref<1x128xf32, #tpu.memory_space<vmem>>, %arg12: memref<1x128xf32, #tpu.memory_space<vmem>>, %arg13: memref<1x128xf32, #tpu.memory_space<vmem>>, %arg14: memref<1x128xf32, #tpu.memory_space<vmem>>, %arg15: memref<1x128xf32, #tpu.memory_space<vmem>>, %arg16: memref<1x128xf32, #tpu.memory_space<vmem>>, %arg17: memref<1x128xf32, #tpu.memory_space<vmem>>, %arg18: memref<256x128xbf16, #tpu.memory_space<any>>, %arg19: memref<128x128xbf16, #tpu.memory_space<any>>, %arg20: memref<128x128xbf16, #tpu.memory_space<any>>, %arg21: memref<128x128xbf16, #tpu.memory_space<any>>, %arg22: memref<128x128xbf16, #tpu.memory_space<any>>, %arg23: memref<128x128xbf16, #tpu.memory_space<any>>, %arg24: memref<48x128xf32, #tpu.memory_space<vmem>>, %arg25: memref<256x128xbf16, #tpu.memory_space<vmem>>, %arg26: memref<128x128xbf16, #tpu.memory_space<vmem>>, %arg27: memref<128x128xbf16, #tpu.memory_space<vmem>>, %arg28: memref<128x128xbf16, #tpu.memory_space<vmem>>, %arg29: memref<128x128xbf16, #tpu.memory_space<vmem>>, %arg30: memref<128x128xbf16, #tpu.memory_space<vmem>>, %arg31: memref<6x!tpu.dma_semaphore, #tpu.memory_space<semaphore_mem>>) attributes {dimension_semantics = [], scalar_prefetch = 0 : i64, scratch_operands = 7 : i64, tpu.core_type = #tpu.core_type<tc>} {
    %c0_i32 = arith.constant 0 : i32
    %0 = tpu.memref_slice %arg31[%c0_i32] : memref<6x!tpu.dma_semaphore, #tpu.memory_space<semaphore_mem>> -> memref<1x!tpu.dma_semaphore, #tpu.memory_space<semaphore_mem>>
    %1 = tpu.memref_squeeze %0 : memref<1x!tpu.dma_semaphore, #tpu.memory_space<semaphore_mem>> -> memref<!tpu.dma_semaphore, #tpu.memory_space<semaphore_mem>>
    tpu.enqueue_dma source(%arg18 : memref<256x128xbf16, #tpu.memory_space<any>>) target(%arg25 : memref<256x128xbf16, #tpu.memory_space<vmem>>) target_semaphore(%1 : memref<!tpu.dma_semaphore, #tpu.memory_space<semaphore_mem>>)
    %c1_i32 = arith.constant 1 : i32
    %2 = tpu.memref_slice %arg31[%c1_i32] : memref<6x!tpu.dma_semaphore, #tpu.memory_space<semaphore_mem>> -> memref<1x!tpu.dma_semaphore, #tpu.memory_space<semaphore_mem>>
    %3 = tpu.memref_squeeze %2 : memref<1x!tpu.dma_semaphore, #tpu.memory_space<semaphore_mem>> -> memref<!tpu.dma_semaphore, #tpu.memory_space<semaphore_mem>>
    tpu.enqueue_dma source(%arg19 : memref<128x128xbf16, #tpu.memory_space<any>>) target(%arg26 : memref<128x128xbf16, #tpu.memory_space<vmem>>) target_semaphore(%3 : memref<!tpu.dma_semaphore, #tpu.memory_space<semaphore_mem>>)
    %c2_i32 = arith.constant 2 : i32
    %4 = tpu.memref_slice %arg31[%c2_i32] : memref<6x!tpu.dma_semaphore, #tpu.memory_space<semaphore_mem>> -> memref<1x!tpu.dma_semaphore, #tpu.memory_space<semaphore_mem>>
    %5 = tpu.memref_squeeze %4 : memref<1x!tpu.dma_semaphore, #tpu.memory_space<semaphore_mem>> -> memref<!tpu.dma_semaphore, #tpu.memory_space<semaphore_mem>>
    tpu.enqueue_dma source(%arg20 : memref<128x128xbf16, #tpu.memory_space<any>>) target(%arg27 : memref<128x128xbf16, #tpu.memory_space<vmem>>) target_semaphore(%5 : memref<!tpu.dma_semaphore, #tpu.memory_space<semaphore_mem>>)
    %c3_i32 = arith.constant 3 : i32
    %6 = tpu.memref_slice %arg31[%c3_i32] : memref<6x!tpu.dma_semaphore, #tpu.memory_space<semaphore_mem>> -> memref<1x!tpu.dma_semaphore, #tpu.memory_space<semaphore_mem>>
    %7 = tpu.memref_squeeze %6 : memref<1x!tpu.dma_semaphore, #tpu.memory_space<semaphore_mem>> -> memref<!tpu.dma_semaphore, #tpu.memory_space<semaphore_mem>>
    tpu.enqueue_dma source(%arg21 : memref<128x128xbf16, #tpu.memory_space<any>>) target(%arg28 : memref<128x128xbf16, #tpu.memory_space<vmem>>) target_semaphore(%7 : memref<!tpu.dma_semaphore, #tpu.memory_space<semaphore_mem>>)
    %c4_i32 = arith.constant 4 : i32
    %8 = tpu.memref_slice %arg31[%c4_i32] : memref<6x!tpu.dma_semaphore, #tpu.memory_space<semaphore_mem>> -> memref<1x!tpu.dma_semaphore, #tpu.memory_space<semaphore_mem>>
    %9 = tpu.memref_squeeze %8 : memref<1x!tpu.dma_semaphore, #tpu.memory_space<semaphore_mem>> -> memref<!tpu.dma_semaphore, #tpu.memory_space<semaphore_mem>>
    tpu.enqueue_dma source(%arg22 : memref<128x128xbf16, #tpu.memory_space<any>>) target(%arg29 : memref<128x128xbf16, #tpu.memory_space<vmem>>) target_semaphore(%9 : memref<!tpu.dma_semaphore, #tpu.memory_space<semaphore_mem>>)
    %c5_i32 = arith.constant 5 : i32
    %10 = tpu.memref_slice %arg31[%c5_i32] : memref<6x!tpu.dma_semaphore, #tpu.memory_space<semaphore_mem>> -> memref<1x!tpu.dma_semaphore, #tpu.memory_space<semaphore_mem>>
    %11 = tpu.memref_squeeze %10 : memref<1x!tpu.dma_semaphore, #tpu.memory_space<semaphore_mem>> -> memref<!tpu.dma_semaphore, #tpu.memory_space<semaphore_mem>>
    tpu.enqueue_dma source(%arg23 : memref<128x128xbf16, #tpu.memory_space<any>>) target(%arg30 : memref<128x128xbf16, #tpu.memory_space<vmem>>) target_semaphore(%11 : memref<!tpu.dma_semaphore, #tpu.memory_space<semaphore_mem>>)
    %c0 = arith.constant 0 : index
    %c0_0 = arith.constant 0 : index
    %12 = vector.load %arg0[%c0, %c0_0] : memref<64x128xbf16, #tpu.memory_space<vmem>>, vector<64x128xbf16>
    %c0_1 = arith.constant 0 : index
    %c0_2 = arith.constant 0 : index
    %13 = vector.load %arg2[%c0_1, %c0_2] : memref<128x128xbf16, #tpu.memory_space<vmem>>, vector<128x128xbf16>
    %cst = arith.constant dense<0.000000e+00> : vector<64x128xf32>
    %14 = tpu.matmul %12, %13, %cst {dimension_numbers = #tpu.dot_dimension_numbers<[1], [0], [0], [1], [0, 0, 1, 1], [], []>} : vector<64x128xbf16>, vector<128x128xbf16>, vector<64x128xf32> -> vector<64x128xf32>
    %c0_3 = arith.constant 0 : index
    %c0_4 = arith.constant 0 : index
    %15 = vector.load %arg4[%c0_3, %c0_4] : memref<1x128xf32, #tpu.memory_space<vmem>>, vector<1x128xf32>
    %16 = vector.broadcast %15 : vector<1x128xf32> to vector<64x128xf32>
    %17 = arith.addf %14, %16 : vector<64x128xf32>
    %c0_5 = arith.constant 0 : index
    %c0_6 = arith.constant 0 : index
    %18 = vector.load %arg8[%c0_5, %c0_6] : memref<1x128xf32, #tpu.memory_space<vmem>>, vector<1x128xf32>
    %19 = vector.shape_cast %18 : vector<1x128xf32> to vector<1x128xf32>
    %20 = vector.broadcast %19 : vector<1x128xf32> to vector<8x128xf32>
    %c0_7 = arith.constant 0 : index
    %c0_8 = arith.constant 0 : index
    %21 = vector.load %arg5[%c0_7, %c0_8] : memref<1x128xf32, #tpu.memory_space<vmem>>, vector<1x128xf32>
    %22 = vector.shape_cast %21 : vector<1x128xf32> to vector<1x128xf32>
    %23 = vector.broadcast %22 : vector<1x128xf32> to vector<8x128xf32>
    %c0_9 = arith.constant 0 : index
    %c0_10 = arith.constant 0 : index
    %24 = vector.load %arg9[%c0_9, %c0_10] : memref<1x128xf32, #tpu.memory_space<vmem>>, vector<1x128xf32>
    %25 = vector.shape_cast %24 : vector<1x128xf32> to vector<1x128xf32>
    %26 = vector.broadcast %25 : vector<1x128xf32> to vector<8x128xf32>
    %cst_11 = arith.constant 0.000000e+00 : f32
    %27 = vector.broadcast %cst_11 : f32 to vector<8x128xf32>
    %cst_12 = arith.constant 0.000000e+00 : f32
    %28 = vector.broadcast %cst_12 : f32 to vector<8x128xf32>
    %29 = vector.extract_strided_slice %17 {offsets = [0, 0], sizes = [8, 128], strides = [1, 1]} : vector<64x128xf32> to vector<8x128xf32>
    %c0_13 = arith.constant 0 : index
    %c0_14 = arith.constant 0 : index
    %30 = vector.load %arg3[%c0_13, %c0_14] : memref<128x128xbf16, #tpu.memory_space<vmem>>, vector<128x128xbf16>
    %31 = arith.truncf %27 : vector<8x128xf32> to vector<8x128xbf16>
    %cst_15 = arith.constant dense<0.000000e+00> : vector<8x128xf32>
    %32 = tpu.matmul %31, %30, %cst_15 {dimension_numbers = #tpu.dot_dimension_numbers<[1], [0], [0], [1], [0, 0, 1, 1], [], []>} : vector<8x128xbf16>, vector<128x128xbf16>, vector<8x128xf32> -> vector<8x128xf32>
    %33 = arith.addf %29, %32 : vector<8x128xf32>
    %34 = arith.negf %33 : vector<8x128xf32>
    %35 = math.exp %34 : vector<8x128xf32>
    %cst_16 = arith.constant 1.000000e+00 : f32
    %36 = vector.broadcast %cst_16 : f32 to vector<8x128xf32>
    %37 = arith.addf %36, %35 : vector<8x128xf32>
    %38 = arith.divf %36, %37 : vector<8x128xf32>
    %c32_i32 = arith.constant 32 : i32
    %39 = tpu.dynamic_rotate %38 by %c32_i32 dim 1 : vector<8x128xf32>, i32 -> vector<8x128xf32>
    %40 = arith.addf %32, %23 : vector<8x128xf32>
    %41 = arith.mulf %39, %40 : vector<8x128xf32>
    %42 = arith.addf %29, %41 : vector<8x128xf32>
    %43 = math.tanh %42 : vector<8x128xf32>
    %c64_i32 = arith.constant 64 : i32
    %44 = tpu.dynamic_rotate %43 by %c64_i32 dim 1 : vector<8x128xf32>, i32 -> vector<8x128xf32>
    %cst_17 = arith.constant 1.000000e+00 : f32
    %45 = vector.broadcast %cst_17 : f32 to vector<8x128xf32>
    %46 = arith.subf %45, %38 : vector<8x128xf32>
    %47 = arith.mulf %46, %44 : vector<8x128xf32>
    %48 = arith.mulf %38, %27 : vector<8x128xf32>
    %49 = arith.addf %47, %48 : vector<8x128xf32>
    %c0_18 = arith.constant 0 : index
    %c0_19 = arith.constant 0 : index
    %50 = vector.load %arg6[%c0_18, %c0_19] : memref<128x128xbf16, #tpu.memory_space<vmem>>, vector<128x128xbf16>
    %51 = arith.truncf %49 : vector<8x128xf32> to vector<8x128xbf16>
    %cst_20 = arith.constant dense<0.000000e+00> : vector<8x128xf32>
    %52 = tpu.matmul %51, %50, %cst_20 {dimension_numbers = #tpu.dot_dimension_numbers<[1], [0], [0], [1], [0, 0, 1, 1], [], []>} : vector<8x128xbf16>, vector<128x128xbf16>, vector<8x128xf32> -> vector<8x128xf32>
    %53 = arith.addf %52, %20 : vector<8x128xf32>
    %c0_21 = arith.constant 0 : index
    %c0_22 = arith.constant 0 : index
    %54 = vector.load %arg7[%c0_21, %c0_22] : memref<128x128xbf16, #tpu.memory_space<vmem>>, vector<128x128xbf16>
    %55 = arith.truncf %28 : vector<8x128xf32> to vector<8x128xbf16>
    %cst_23 = arith.constant dense<0.000000e+00> : vector<8x128xf32>
    %56 = tpu.matmul %55, %54, %cst_23 {dimension_numbers = #tpu.dot_dimension_numbers<[1], [0], [0], [1], [0, 0, 1, 1], [], []>} : vector<8x128xbf16>, vector<128x128xbf16>, vector<8x128xf32> -> vector<8x128xf32>
    %57 = arith.addf %53, %56 : vector<8x128xf32>
    %58 = arith.negf %57 : vector<8x128xf32>
    %59 = math.exp %58 : vector<8x128xf32>
    %cst_24 = arith.constant 1.000000e+00 : f32
    %60 = vector.broadcast %cst_24 : f32 to vector<8x128xf32>
    %61 = arith.addf %60, %59 : vector<8x128xf32>
    %62 = arith.divf %60, %61 : vector<8x128xf32>
    %c32_i32_25 = arith.constant 32 : i32
    %63 = tpu.dynamic_rotate %62 by %c32_i32_25 dim 1 : vector<8x128xf32>, i32 -> vector<8x128xf32>
    %64 = arith.addf %56, %26 : vector<8x128xf32>
    %65 = arith.mulf %63, %64 : vector<8x128xf32>
    %66 = arith.addf %53, %65 : vector<8x128xf32>
    %67 = math.tanh %66 : vector<8x128xf32>
    %c64_i32_26 = arith.constant 64 : i32
    %68 = tpu.dynamic_rotate %67 by %c64_i32_26 dim 1 : vector<8x128xf32>, i32 -> vector<8x128xf32>
    %cst_27 = arith.constant 1.000000e+00 : f32
    %69 = vector.broadcast %cst_27 : f32 to vector<8x128xf32>
    %70 = arith.subf %69, %62 : vector<8x128xf32>
    %71 = arith.mulf %70, %68 : vector<8x128xf32>
    %72 = arith.mulf %62, %28 : vector<8x128xf32>
    %73 = arith.addf %71, %72 : vector<8x128xf32>
    %74 = vector.extract_strided_slice %17 {offsets = [8, 0], sizes = [8, 128], strides = [1, 1]} : vector<64x128xf32> to vector<8x128xf32>
    %c0_28 = arith.constant 0 : index
    %c0_29 = arith.constant 0 : index
    %75 = vector.load %arg3[%c0_28, %c0_29] : memref<128x128xbf16, #tpu.memory_space<vmem>>, vector<128x128xbf16>
    %76 = arith.truncf %49 : vector<8x128xf32> to vector<8x128xbf16>
    %cst_30 = arith.constant dense<0.000000e+00> : vector<8x128xf32>
    %77 = tpu.matmul %76, %75, %cst_30 {dimension_numbers = #tpu.dot_dimension_numbers<[1], [0], [0], [1], [0, 0, 1, 1], [], []>} : vector<8x128xbf16>, vector<128x128xbf16>, vector<8x128xf32> -> vector<8x128xf32>
    %78 = arith.addf %74, %77 : vector<8x128xf32>
    %79 = arith.negf %78 : vector<8x128xf32>
    %80 = math.exp %79 : vector<8x128xf32>
    %cst_31 = arith.constant 1.000000e+00 : f32
    %81 = vector.broadcast %cst_31 : f32 to vector<8x128xf32>
    %82 = arith.addf %81, %80 : vector<8x128xf32>
    %83 = arith.divf %81, %82 : vector<8x128xf32>
    %c32_i32_32 = arith.constant 32 : i32
    %84 = tpu.dynamic_rotate %83 by %c32_i32_32 dim 1 : vector<8x128xf32>, i32 -> vector<8x128xf32>
    %85 = arith.addf %77, %23 : vector<8x128xf32>
    %86 = arith.mulf %84, %85 : vector<8x128xf32>
    %87 = arith.addf %74, %86 : vector<8x128xf32>
    %88 = math.tanh %87 : vector<8x128xf32>
    %c64_i32_33 = arith.constant 64 : i32
    %89 = tpu.dynamic_rotate %88 by %c64_i32_33 dim 1 : vector<8x128xf32>, i32 -> vector<8x128xf32>
    %cst_34 = arith.constant 1.000000e+00 : f32
    %90 = vector.broadcast %cst_34 : f32 to vector<8x128xf32>
    %91 = arith.subf %90, %83 : vector<8x128xf32>
    %92 = arith.mulf %91, %89 : vector<8x128xf32>
    %93 = arith.mulf %83, %49 : vector<8x128xf32>
    %94 = arith.addf %92, %93 : vector<8x128xf32>
    %c0_35 = arith.constant 0 : index
    %c0_36 = arith.constant 0 : index
    %95 = vector.load %arg6[%c0_35, %c0_36] : memref<128x128xbf16, #tpu.memory_space<vmem>>, vector<128x128xbf16>
    %96 = arith.truncf %94 : vector<8x128xf32> to vector<8x128xbf16>
    %cst_37 = arith.constant dense<0.000000e+00> : vector<8x128xf32>
    %97 = tpu.matmul %96, %95, %cst_37 {dimension_numbers = #tpu.dot_dimension_numbers<[1], [0], [0], [1], [0, 0, 1, 1], [], []>} : vector<8x128xbf16>, vector<128x128xbf16>, vector<8x128xf32> -> vector<8x128xf32>
    %98 = arith.addf %97, %20 : vector<8x128xf32>
    %c0_38 = arith.constant 0 : index
    %c0_39 = arith.constant 0 : index
    %99 = vector.load %arg7[%c0_38, %c0_39] : memref<128x128xbf16, #tpu.memory_space<vmem>>, vector<128x128xbf16>
    %100 = arith.truncf %73 : vector<8x128xf32> to vector<8x128xbf16>
    %cst_40 = arith.constant dense<0.000000e+00> : vector<8x128xf32>
    %101 = tpu.matmul %100, %99, %cst_40 {dimension_numbers = #tpu.dot_dimension_numbers<[1], [0], [0], [1], [0, 0, 1, 1], [], []>} : vector<8x128xbf16>, vector<128x128xbf16>, vector<8x128xf32> -> vector<8x128xf32>
    %102 = arith.addf %98, %101 : vector<8x128xf32>
    %103 = arith.negf %102 : vector<8x128xf32>
    %104 = math.exp %103 : vector<8x128xf32>
    %cst_41 = arith.constant 1.000000e+00 : f32
    %105 = vector.broadcast %cst_41 : f32 to vector<8x128xf32>
    %106 = arith.addf %105, %104 : vector<8x128xf32>
    %107 = arith.divf %105, %106 : vector<8x128xf32>
    %c32_i32_42 = arith.constant 32 : i32
    %108 = tpu.dynamic_rotate %107 by %c32_i32_42 dim 1 : vector<8x128xf32>, i32 -> vector<8x128xf32>
    %109 = arith.addf %101, %26 : vector<8x128xf32>
    %110 = arith.mulf %108, %109 : vector<8x128xf32>
    %111 = arith.addf %98, %110 : vector<8x128xf32>
    %112 = math.tanh %111 : vector<8x128xf32>
    %c64_i32_43 = arith.constant 64 : i32
    %113 = tpu.dynamic_rotate %112 by %c64_i32_43 dim 1 : vector<8x128xf32>, i32 -> vector<8x128xf32>
    %cst_44 = arith.constant 1.000000e+00 : f32
    %114 = vector.broadcast %cst_44 : f32 to vector<8x128xf32>
    %115 = arith.subf %114, %107 : vector<8x128xf32>
    %116 = arith.mulf %115, %113 : vector<8x128xf32>
    %117 = arith.mulf %107, %73 : vector<8x128xf32>
    %118 = arith.addf %116, %117 : vector<8x128xf32>
    %119 = vector.extract_strided_slice %17 {offsets = [16, 0], sizes = [8, 128], strides = [1, 1]} : vector<64x128xf32> to vector<8x128xf32>
    %c0_45 = arith.constant 0 : index
    %c0_46 = arith.constant 0 : index
    %120 = vector.load %arg3[%c0_45, %c0_46] : memref<128x128xbf16, #tpu.memory_space<vmem>>, vector<128x128xbf16>
    %121 = arith.truncf %94 : vector<8x128xf32> to vector<8x128xbf16>
    %cst_47 = arith.constant dense<0.000000e+00> : vector<8x128xf32>
    %122 = tpu.matmul %121, %120, %cst_47 {dimension_numbers = #tpu.dot_dimension_numbers<[1], [0], [0], [1], [0, 0, 1, 1], [], []>} : vector<8x128xbf16>, vector<128x128xbf16>, vector<8x128xf32> -> vector<8x128xf32>
    %123 = arith.addf %119, %122 : vector<8x128xf32>
    %124 = arith.negf %123 : vector<8x128xf32>
    %125 = math.exp %124 : vector<8x128xf32>
    %cst_48 = arith.constant 1.000000e+00 : f32
    %126 = vector.broadcast %cst_48 : f32 to vector<8x128xf32>
    %127 = arith.addf %126, %125 : vector<8x128xf32>
    %128 = arith.divf %126, %127 : vector<8x128xf32>
    %c32_i32_49 = arith.constant 32 : i32
    %129 = tpu.dynamic_rotate %128 by %c32_i32_49 dim 1 : vector<8x128xf32>, i32 -> vector<8x128xf32>
    %130 = arith.addf %122, %23 : vector<8x128xf32>
    %131 = arith.mulf %129, %130 : vector<8x128xf32>
    %132 = arith.addf %119, %131 : vector<8x128xf32>
    %133 = math.tanh %132 : vector<8x128xf32>
    %c64_i32_50 = arith.constant 64 : i32
    %134 = tpu.dynamic_rotate %133 by %c64_i32_50 dim 1 : vector<8x128xf32>, i32 -> vector<8x128xf32>
    %cst_51 = arith.constant 1.000000e+00 : f32
    %135 = vector.broadcast %cst_51 : f32 to vector<8x128xf32>
    %136 = arith.subf %135, %128 : vector<8x128xf32>
    %137 = arith.mulf %136, %134 : vector<8x128xf32>
    %138 = arith.mulf %128, %94 : vector<8x128xf32>
    %139 = arith.addf %137, %138 : vector<8x128xf32>
    %c0_52 = arith.constant 0 : index
    %c0_53 = arith.constant 0 : index
    %140 = vector.load %arg6[%c0_52, %c0_53] : memref<128x128xbf16, #tpu.memory_space<vmem>>, vector<128x128xbf16>
    %141 = arith.truncf %139 : vector<8x128xf32> to vector<8x128xbf16>
    %cst_54 = arith.constant dense<0.000000e+00> : vector<8x128xf32>
    %142 = tpu.matmul %141, %140, %cst_54 {dimension_numbers = #tpu.dot_dimension_numbers<[1], [0], [0], [1], [0, 0, 1, 1], [], []>} : vector<8x128xbf16>, vector<128x128xbf16>, vector<8x128xf32> -> vector<8x128xf32>
    %143 = arith.addf %142, %20 : vector<8x128xf32>
    %c0_55 = arith.constant 0 : index
    %c0_56 = arith.constant 0 : index
    %144 = vector.load %arg7[%c0_55, %c0_56] : memref<128x128xbf16, #tpu.memory_space<vmem>>, vector<128x128xbf16>
    %145 = arith.truncf %118 : vector<8x128xf32> to vector<8x128xbf16>
    %cst_57 = arith.constant dense<0.000000e+00> : vector<8x128xf32>
    %146 = tpu.matmul %145, %144, %cst_57 {dimension_numbers = #tpu.dot_dimension_numbers<[1], [0], [0], [1], [0, 0, 1, 1], [], []>} : vector<8x128xbf16>, vector<128x128xbf16>, vector<8x128xf32> -> vector<8x128xf32>
    %147 = arith.addf %143, %146 : vector<8x128xf32>
    %148 = arith.negf %147 : vector<8x128xf32>
    %149 = math.exp %148 : vector<8x128xf32>
    %cst_58 = arith.constant 1.000000e+00 : f32
    %150 = vector.broadcast %cst_58 : f32 to vector<8x128xf32>
    %151 = arith.addf %150, %149 : vector<8x128xf32>
    %152 = arith.divf %150, %151 : vector<8x128xf32>
    %c32_i32_59 = arith.constant 32 : i32
    %153 = tpu.dynamic_rotate %152 by %c32_i32_59 dim 1 : vector<8x128xf32>, i32 -> vector<8x128xf32>
    %154 = arith.addf %146, %26 : vector<8x128xf32>
    %155 = arith.mulf %153, %154 : vector<8x128xf32>
    %156 = arith.addf %143, %155 : vector<8x128xf32>
    %157 = math.tanh %156 : vector<8x128xf32>
    %c64_i32_60 = arith.constant 64 : i32
    %158 = tpu.dynamic_rotate %157 by %c64_i32_60 dim 1 : vector<8x128xf32>, i32 -> vector<8x128xf32>
    %cst_61 = arith.constant 1.000000e+00 : f32
    %159 = vector.broadcast %cst_61 : f32 to vector<8x128xf32>
    %160 = arith.subf %159, %152 : vector<8x128xf32>
    %161 = arith.mulf %160, %158 : vector<8x128xf32>
    %162 = arith.mulf %152, %118 : vector<8x128xf32>
    %163 = arith.addf %161, %162 : vector<8x128xf32>
    %164 = vector.extract_strided_slice %17 {offsets = [24, 0], sizes = [8, 128], strides = [1, 1]} : vector<64x128xf32> to vector<8x128xf32>
    %c0_62 = arith.constant 0 : index
    %c0_63 = arith.constant 0 : index
    %165 = vector.load %arg3[%c0_62, %c0_63] : memref<128x128xbf16, #tpu.memory_space<vmem>>, vector<128x128xbf16>
    %166 = arith.truncf %139 : vector<8x128xf32> to vector<8x128xbf16>
    %cst_64 = arith.constant dense<0.000000e+00> : vector<8x128xf32>
    %167 = tpu.matmul %166, %165, %cst_64 {dimension_numbers = #tpu.dot_dimension_numbers<[1], [0], [0], [1], [0, 0, 1, 1], [], []>} : vector<8x128xbf16>, vector<128x128xbf16>, vector<8x128xf32> -> vector<8x128xf32>
    %168 = arith.addf %164, %167 : vector<8x128xf32>
    %169 = arith.negf %168 : vector<8x128xf32>
    %170 = math.exp %169 : vector<8x128xf32>
    %cst_65 = arith.constant 1.000000e+00 : f32
    %171 = vector.broadcast %cst_65 : f32 to vector<8x128xf32>
    %172 = arith.addf %171, %170 : vector<8x128xf32>
    %173 = arith.divf %171, %172 : vector<8x128xf32>
    %c32_i32_66 = arith.constant 32 : i32
    %174 = tpu.dynamic_rotate %173 by %c32_i32_66 dim 1 : vector<8x128xf32>, i32 -> vector<8x128xf32>
    %175 = arith.addf %167, %23 : vector<8x128xf32>
    %176 = arith.mulf %174, %175 : vector<8x128xf32>
    %177 = arith.addf %164, %176 : vector<8x128xf32>
    %178 = math.tanh %177 : vector<8x128xf32>
    %c64_i32_67 = arith.constant 64 : i32
    %179 = tpu.dynamic_rotate %178 by %c64_i32_67 dim 1 : vector<8x128xf32>, i32 -> vector<8x128xf32>
    %cst_68 = arith.constant 1.000000e+00 : f32
    %180 = vector.broadcast %cst_68 : f32 to vector<8x128xf32>
    %181 = arith.subf %180, %173 : vector<8x128xf32>
    %182 = arith.mulf %181, %179 : vector<8x128xf32>
    %183 = arith.mulf %173, %139 : vector<8x128xf32>
    %184 = arith.addf %182, %183 : vector<8x128xf32>
    %c0_69 = arith.constant 0 : index
    %c0_70 = arith.constant 0 : index
    %185 = vector.load %arg6[%c0_69, %c0_70] : memref<128x128xbf16, #tpu.memory_space<vmem>>, vector<128x128xbf16>
    %186 = arith.truncf %184 : vector<8x128xf32> to vector<8x128xbf16>
    %cst_71 = arith.constant dense<0.000000e+00> : vector<8x128xf32>
    %187 = tpu.matmul %186, %185, %cst_71 {dimension_numbers = #tpu.dot_dimension_numbers<[1], [0], [0], [1], [0, 0, 1, 1], [], []>} : vector<8x128xbf16>, vector<128x128xbf16>, vector<8x128xf32> -> vector<8x128xf32>
    %188 = arith.addf %187, %20 : vector<8x128xf32>
    %c0_72 = arith.constant 0 : index
    %c0_73 = arith.constant 0 : index
    %189 = vector.load %arg7[%c0_72, %c0_73] : memref<128x128xbf16, #tpu.memory_space<vmem>>, vector<128x128xbf16>
    %190 = arith.truncf %163 : vector<8x128xf32> to vector<8x128xbf16>
    %cst_74 = arith.constant dense<0.000000e+00> : vector<8x128xf32>
    %191 = tpu.matmul %190, %189, %cst_74 {dimension_numbers = #tpu.dot_dimension_numbers<[1], [0], [0], [1], [0, 0, 1, 1], [], []>} : vector<8x128xbf16>, vector<128x128xbf16>, vector<8x128xf32> -> vector<8x128xf32>
    %192 = arith.addf %188, %191 : vector<8x128xf32>
    %193 = arith.negf %192 : vector<8x128xf32>
    %194 = math.exp %193 : vector<8x128xf32>
    %cst_75 = arith.constant 1.000000e+00 : f32
    %195 = vector.broadcast %cst_75 : f32 to vector<8x128xf32>
    %196 = arith.addf %195, %194 : vector<8x128xf32>
    %197 = arith.divf %195, %196 : vector<8x128xf32>
    %c32_i32_76 = arith.constant 32 : i32
    %198 = tpu.dynamic_rotate %197 by %c32_i32_76 dim 1 : vector<8x128xf32>, i32 -> vector<8x128xf32>
    %199 = arith.addf %191, %26 : vector<8x128xf32>
    %200 = arith.mulf %198, %199 : vector<8x128xf32>
    %201 = arith.addf %188, %200 : vector<8x128xf32>
    %202 = math.tanh %201 : vector<8x128xf32>
    %c64_i32_77 = arith.constant 64 : i32
    %203 = tpu.dynamic_rotate %202 by %c64_i32_77 dim 1 : vector<8x128xf32>, i32 -> vector<8x128xf32>
    %cst_78 = arith.constant 1.000000e+00 : f32
    %204 = vector.broadcast %cst_78 : f32 to vector<8x128xf32>
    %205 = arith.subf %204, %197 : vector<8x128xf32>
    %206 = arith.mulf %205, %203 : vector<8x128xf32>
    %207 = arith.mulf %197, %163 : vector<8x128xf32>
    %208 = arith.addf %206, %207 : vector<8x128xf32>
    %209 = vector.extract_strided_slice %17 {offsets = [32, 0], sizes = [8, 128], strides = [1, 1]} : vector<64x128xf32> to vector<8x128xf32>
    %c0_79 = arith.constant 0 : index
    %c0_80 = arith.constant 0 : index
    %210 = vector.load %arg3[%c0_79, %c0_80] : memref<128x128xbf16, #tpu.memory_space<vmem>>, vector<128x128xbf16>
    %211 = arith.truncf %184 : vector<8x128xf32> to vector<8x128xbf16>
    %cst_81 = arith.constant dense<0.000000e+00> : vector<8x128xf32>
    %212 = tpu.matmul %211, %210, %cst_81 {dimension_numbers = #tpu.dot_dimension_numbers<[1], [0], [0], [1], [0, 0, 1, 1], [], []>} : vector<8x128xbf16>, vector<128x128xbf16>, vector<8x128xf32> -> vector<8x128xf32>
    %213 = arith.addf %209, %212 : vector<8x128xf32>
    %214 = arith.negf %213 : vector<8x128xf32>
    %215 = math.exp %214 : vector<8x128xf32>
    %cst_82 = arith.constant 1.000000e+00 : f32
    %216 = vector.broadcast %cst_82 : f32 to vector<8x128xf32>
    %217 = arith.addf %216, %215 : vector<8x128xf32>
    %218 = arith.divf %216, %217 : vector<8x128xf32>
    %c32_i32_83 = arith.constant 32 : i32
    %219 = tpu.dynamic_rotate %218 by %c32_i32_83 dim 1 : vector<8x128xf32>, i32 -> vector<8x128xf32>
    %220 = arith.addf %212, %23 : vector<8x128xf32>
    %221 = arith.mulf %219, %220 : vector<8x128xf32>
    %222 = arith.addf %209, %221 : vector<8x128xf32>
    %223 = math.tanh %222 : vector<8x128xf32>
    %c64_i32_84 = arith.constant 64 : i32
    %224 = tpu.dynamic_rotate %223 by %c64_i32_84 dim 1 : vector<8x128xf32>, i32 -> vector<8x128xf32>
    %cst_85 = arith.constant 1.000000e+00 : f32
    %225 = vector.broadcast %cst_85 : f32 to vector<8x128xf32>
    %226 = arith.subf %225, %218 : vector<8x128xf32>
    %227 = arith.mulf %226, %224 : vector<8x128xf32>
    %228 = arith.mulf %218, %184 : vector<8x128xf32>
    %229 = arith.addf %227, %228 : vector<8x128xf32>
    %c0_86 = arith.constant 0 : index
    %c0_87 = arith.constant 0 : index
    %230 = vector.load %arg6[%c0_86, %c0_87] : memref<128x128xbf16, #tpu.memory_space<vmem>>, vector<128x128xbf16>
    %231 = arith.truncf %229 : vector<8x128xf32> to vector<8x128xbf16>
    %cst_88 = arith.constant dense<0.000000e+00> : vector<8x128xf32>
    %232 = tpu.matmul %231, %230, %cst_88 {dimension_numbers = #tpu.dot_dimension_numbers<[1], [0], [0], [1], [0, 0, 1, 1], [], []>} : vector<8x128xbf16>, vector<128x128xbf16>, vector<8x128xf32> -> vector<8x128xf32>
    %233 = arith.addf %232, %20 : vector<8x128xf32>
    %c0_89 = arith.constant 0 : index
    %c0_90 = arith.constant 0 : index
    %234 = vector.load %arg7[%c0_89, %c0_90] : memref<128x128xbf16, #tpu.memory_space<vmem>>, vector<128x128xbf16>
    %235 = arith.truncf %208 : vector<8x128xf32> to vector<8x128xbf16>
    %cst_91 = arith.constant dense<0.000000e+00> : vector<8x128xf32>
    %236 = tpu.matmul %235, %234, %cst_91 {dimension_numbers = #tpu.dot_dimension_numbers<[1], [0], [0], [1], [0, 0, 1, 1], [], []>} : vector<8x128xbf16>, vector<128x128xbf16>, vector<8x128xf32> -> vector<8x128xf32>
    %237 = arith.addf %233, %236 : vector<8x128xf32>
    %238 = arith.negf %237 : vector<8x128xf32>
    %239 = math.exp %238 : vector<8x128xf32>
    %cst_92 = arith.constant 1.000000e+00 : f32
    %240 = vector.broadcast %cst_92 : f32 to vector<8x128xf32>
    %241 = arith.addf %240, %239 : vector<8x128xf32>
    %242 = arith.divf %240, %241 : vector<8x128xf32>
    %c32_i32_93 = arith.constant 32 : i32
    %243 = tpu.dynamic_rotate %242 by %c32_i32_93 dim 1 : vector<8x128xf32>, i32 -> vector<8x128xf32>
    %244 = arith.addf %236, %26 : vector<8x128xf32>
    %245 = arith.mulf %243, %244 : vector<8x128xf32>
    %246 = arith.addf %233, %245 : vector<8x128xf32>
    %247 = math.tanh %246 : vector<8x128xf32>
    %c64_i32_94 = arith.constant 64 : i32
    %248 = tpu.dynamic_rotate %247 by %c64_i32_94 dim 1 : vector<8x128xf32>, i32 -> vector<8x128xf32>
    %cst_95 = arith.constant 1.000000e+00 : f32
    %249 = vector.broadcast %cst_95 : f32 to vector<8x128xf32>
    %250 = arith.subf %249, %242 : vector<8x128xf32>
    %251 = arith.mulf %250, %248 : vector<8x128xf32>
    %252 = arith.mulf %242, %208 : vector<8x128xf32>
    %253 = arith.addf %251, %252 : vector<8x128xf32>
    %254 = vector.extract_strided_slice %17 {offsets = [40, 0], sizes = [8, 128], strides = [1, 1]} : vector<64x128xf32> to vector<8x128xf32>
    %c0_96 = arith.constant 0 : index
    %c0_97 = arith.constant 0 : index
    %255 = vector.load %arg3[%c0_96, %c0_97] : memref<128x128xbf16, #tpu.memory_space<vmem>>, vector<128x128xbf16>
    %256 = arith.truncf %229 : vector<8x128xf32> to vector<8x128xbf16>
    %cst_98 = arith.constant dense<0.000000e+00> : vector<8x128xf32>
    %257 = tpu.matmul %256, %255, %cst_98 {dimension_numbers = #tpu.dot_dimension_numbers<[1], [0], [0], [1], [0, 0, 1, 1], [], []>} : vector<8x128xbf16>, vector<128x128xbf16>, vector<8x128xf32> -> vector<8x128xf32>
    %258 = arith.addf %254, %257 : vector<8x128xf32>
    %259 = arith.negf %258 : vector<8x128xf32>
    %260 = math.exp %259 : vector<8x128xf32>
    %cst_99 = arith.constant 1.000000e+00 : f32
    %261 = vector.broadcast %cst_99 : f32 to vector<8x128xf32>
    %262 = arith.addf %261, %260 : vector<8x128xf32>
    %263 = arith.divf %261, %262 : vector<8x128xf32>
    %c32_i32_100 = arith.constant 32 : i32
    %264 = tpu.dynamic_rotate %263 by %c32_i32_100 dim 1 : vector<8x128xf32>, i32 -> vector<8x128xf32>
    %265 = arith.addf %257, %23 : vector<8x128xf32>
    %266 = arith.mulf %264, %265 : vector<8x128xf32>
    %267 = arith.addf %254, %266 : vector<8x128xf32>
    %268 = math.tanh %267 : vector<8x128xf32>
    %c64_i32_101 = arith.constant 64 : i32
    %269 = tpu.dynamic_rotate %268 by %c64_i32_101 dim 1 : vector<8x128xf32>, i32 -> vector<8x128xf32>
    %cst_102 = arith.constant 1.000000e+00 : f32
    %270 = vector.broadcast %cst_102 : f32 to vector<8x128xf32>
    %271 = arith.subf %270, %263 : vector<8x128xf32>
    %272 = arith.mulf %271, %269 : vector<8x128xf32>
    %273 = arith.mulf %263, %229 : vector<8x128xf32>
    %274 = arith.addf %272, %273 : vector<8x128xf32>
    %c0_103 = arith.constant 0 : index
    %c0_104 = arith.constant 0 : index
    %275 = vector.load %arg6[%c0_103, %c0_104] : memref<128x128xbf16, #tpu.memory_space<vmem>>, vector<128x128xbf16>
    %276 = arith.truncf %274 : vector<8x128xf32> to vector<8x128xbf16>
    %cst_105 = arith.constant dense<0.000000e+00> : vector<8x128xf32>
    %277 = tpu.matmul %276, %275, %cst_105 {dimension_numbers = #tpu.dot_dimension_numbers<[1], [0], [0], [1], [0, 0, 1, 1], [], []>} : vector<8x128xbf16>, vector<128x128xbf16>, vector<8x128xf32> -> vector<8x128xf32>
    %278 = arith.addf %277, %20 : vector<8x128xf32>
    %c0_106 = arith.constant 0 : index
    %c0_107 = arith.constant 0 : index
    %279 = vector.load %arg7[%c0_106, %c0_107] : memref<128x128xbf16, #tpu.memory_space<vmem>>, vector<128x128xbf16>
    %280 = arith.truncf %253 : vector<8x128xf32> to vector<8x128xbf16>
    %cst_108 = arith.constant dense<0.000000e+00> : vector<8x128xf32>
    %281 = tpu.matmul %280, %279, %cst_108 {dimension_numbers = #tpu.dot_dimension_numbers<[1], [0], [0], [1], [0, 0, 1, 1], [], []>} : vector<8x128xbf16>, vector<128x128xbf16>, vector<8x128xf32> -> vector<8x128xf32>
    %282 = arith.addf %278, %281 : vector<8x128xf32>
    %283 = arith.negf %282 : vector<8x128xf32>
    %284 = math.exp %283 : vector<8x128xf32>
    %cst_109 = arith.constant 1.000000e+00 : f32
    %285 = vector.broadcast %cst_109 : f32 to vector<8x128xf32>
    %286 = arith.addf %285, %284 : vector<8x128xf32>
    %287 = arith.divf %285, %286 : vector<8x128xf32>
    %c32_i32_110 = arith.constant 32 : i32
    %288 = tpu.dynamic_rotate %287 by %c32_i32_110 dim 1 : vector<8x128xf32>, i32 -> vector<8x128xf32>
    %289 = arith.addf %281, %26 : vector<8x128xf32>
    %290 = arith.mulf %288, %289 : vector<8x128xf32>
    %291 = arith.addf %278, %290 : vector<8x128xf32>
    %292 = math.tanh %291 : vector<8x128xf32>
    %c64_i32_111 = arith.constant 64 : i32
    %293 = tpu.dynamic_rotate %292 by %c64_i32_111 dim 1 : vector<8x128xf32>, i32 -> vector<8x128xf32>
    %cst_112 = arith.constant 1.000000e+00 : f32
    %294 = vector.broadcast %cst_112 : f32 to vector<8x128xf32>
    %295 = arith.subf %294, %287 : vector<8x128xf32>
    %296 = arith.mulf %295, %293 : vector<8x128xf32>
    %297 = arith.mulf %287, %253 : vector<8x128xf32>
    %298 = arith.addf %296, %297 : vector<8x128xf32>
    %299 = vector.extract_strided_slice %17 {offsets = [48, 0], sizes = [8, 128], strides = [1, 1]} : vector<64x128xf32> to vector<8x128xf32>
    %c0_113 = arith.constant 0 : index
    %c0_114 = arith.constant 0 : index
    %300 = vector.load %arg3[%c0_113, %c0_114] : memref<128x128xbf16, #tpu.memory_space<vmem>>, vector<128x128xbf16>
    %301 = arith.truncf %274 : vector<8x128xf32> to vector<8x128xbf16>
    %cst_115 = arith.constant dense<0.000000e+00> : vector<8x128xf32>
    %302 = tpu.matmul %301, %300, %cst_115 {dimension_numbers = #tpu.dot_dimension_numbers<[1], [0], [0], [1], [0, 0, 1, 1], [], []>} : vector<8x128xbf16>, vector<128x128xbf16>, vector<8x128xf32> -> vector<8x128xf32>
    %303 = arith.addf %299, %302 : vector<8x128xf32>
    %304 = arith.negf %303 : vector<8x128xf32>
    %305 = math.exp %304 : vector<8x128xf32>
    %cst_116 = arith.constant 1.000000e+00 : f32
    %306 = vector.broadcast %cst_116 : f32 to vector<8x128xf32>
    %307 = arith.addf %306, %305 : vector<8x128xf32>
    %308 = arith.divf %306, %307 : vector<8x128xf32>
    %c32_i32_117 = arith.constant 32 : i32
    %309 = tpu.dynamic_rotate %308 by %c32_i32_117 dim 1 : vector<8x128xf32>, i32 -> vector<8x128xf32>
    %310 = arith.addf %302, %23 : vector<8x128xf32>
    %311 = arith.mulf %309, %310 : vector<8x128xf32>
    %312 = arith.addf %299, %311 : vector<8x128xf32>
    %313 = math.tanh %312 : vector<8x128xf32>
    %c64_i32_118 = arith.constant 64 : i32
    %314 = tpu.dynamic_rotate %313 by %c64_i32_118 dim 1 : vector<8x128xf32>, i32 -> vector<8x128xf32>
    %cst_119 = arith.constant 1.000000e+00 : f32
    %315 = vector.broadcast %cst_119 : f32 to vector<8x128xf32>
    %316 = arith.subf %315, %308 : vector<8x128xf32>
    %317 = arith.mulf %316, %314 : vector<8x128xf32>
    %318 = arith.mulf %308, %274 : vector<8x128xf32>
    %319 = arith.addf %317, %318 : vector<8x128xf32>
    %c0_120 = arith.constant 0 : index
    %c0_121 = arith.constant 0 : index
    %320 = vector.load %arg6[%c0_120, %c0_121] : memref<128x128xbf16, #tpu.memory_space<vmem>>, vector<128x128xbf16>
    %321 = arith.truncf %319 : vector<8x128xf32> to vector<8x128xbf16>
    %cst_122 = arith.constant dense<0.000000e+00> : vector<8x128xf32>
    %322 = tpu.matmul %321, %320, %cst_122 {dimension_numbers = #tpu.dot_dimension_numbers<[1], [0], [0], [1], [0, 0, 1, 1], [], []>} : vector<8x128xbf16>, vector<128x128xbf16>, vector<8x128xf32> -> vector<8x128xf32>
    %323 = arith.addf %322, %20 : vector<8x128xf32>
    %c0_123 = arith.constant 0 : index
    %c0_124 = arith.constant 0 : index
    %324 = vector.load %arg7[%c0_123, %c0_124] : memref<128x128xbf16, #tpu.memory_space<vmem>>, vector<128x128xbf16>
    %325 = arith.truncf %298 : vector<8x128xf32> to vector<8x128xbf16>
    %cst_125 = arith.constant dense<0.000000e+00> : vector<8x128xf32>
    %326 = tpu.matmul %325, %324, %cst_125 {dimension_numbers = #tpu.dot_dimension_numbers<[1], [0], [0], [1], [0, 0, 1, 1], [], []>} : vector<8x128xbf16>, vector<128x128xbf16>, vector<8x128xf32> -> vector<8x128xf32>
    %327 = arith.addf %323, %326 : vector<8x128xf32>
    %328 = arith.negf %327 : vector<8x128xf32>
    %329 = math.exp %328 : vector<8x128xf32>
    %cst_126 = arith.constant 1.000000e+00 : f32
    %330 = vector.broadcast %cst_126 : f32 to vector<8x128xf32>
    %331 = arith.addf %330, %329 : vector<8x128xf32>
    %332 = arith.divf %330, %331 : vector<8x128xf32>
    %c32_i32_127 = arith.constant 32 : i32
    %333 = tpu.dynamic_rotate %332 by %c32_i32_127 dim 1 : vector<8x128xf32>, i32 -> vector<8x128xf32>
    %334 = arith.addf %326, %26 : vector<8x128xf32>
    %335 = arith.mulf %333, %334 : vector<8x128xf32>
    %336 = arith.addf %323, %335 : vector<8x128xf32>
    %337 = math.tanh %336 : vector<8x128xf32>
    %c64_i32_128 = arith.constant 64 : i32
    %338 = tpu.dynamic_rotate %337 by %c64_i32_128 dim 1 : vector<8x128xf32>, i32 -> vector<8x128xf32>
    %cst_129 = arith.constant 1.000000e+00 : f32
    %339 = vector.broadcast %cst_129 : f32 to vector<8x128xf32>
    %340 = arith.subf %339, %332 : vector<8x128xf32>
    %341 = arith.mulf %340, %338 : vector<8x128xf32>
    %342 = arith.mulf %332, %298 : vector<8x128xf32>
    %343 = arith.addf %341, %342 : vector<8x128xf32>
    %344 = vector.extract_strided_slice %17 {offsets = [56, 0], sizes = [8, 128], strides = [1, 1]} : vector<64x128xf32> to vector<8x128xf32>
    %c0_130 = arith.constant 0 : index
    %c0_131 = arith.constant 0 : index
    %345 = vector.load %arg3[%c0_130, %c0_131] : memref<128x128xbf16, #tpu.memory_space<vmem>>, vector<128x128xbf16>
    %346 = arith.truncf %319 : vector<8x128xf32> to vector<8x128xbf16>
    %cst_132 = arith.constant dense<0.000000e+00> : vector<8x128xf32>
    %347 = tpu.matmul %346, %345, %cst_132 {dimension_numbers = #tpu.dot_dimension_numbers<[1], [0], [0], [1], [0, 0, 1, 1], [], []>} : vector<8x128xbf16>, vector<128x128xbf16>, vector<8x128xf32> -> vector<8x128xf32>
    %348 = arith.addf %344, %347 : vector<8x128xf32>
    %349 = arith.negf %348 : vector<8x128xf32>
    %350 = math.exp %349 : vector<8x128xf32>
    %cst_133 = arith.constant 1.000000e+00 : f32
    %351 = vector.broadcast %cst_133 : f32 to vector<8x128xf32>
    %352 = arith.addf %351, %350 : vector<8x128xf32>
    %353 = arith.divf %351, %352 : vector<8x128xf32>
    %c32_i32_134 = arith.constant 32 : i32
    %354 = tpu.dynamic_rotate %353 by %c32_i32_134 dim 1 : vector<8x128xf32>, i32 -> vector<8x128xf32>
    %355 = arith.addf %347, %23 : vector<8x128xf32>
    %356 = arith.mulf %354, %355 : vector<8x128xf32>
    %357 = arith.addf %344, %356 : vector<8x128xf32>
    %358 = math.tanh %357 : vector<8x128xf32>
    %c64_i32_135 = arith.constant 64 : i32
    %359 = tpu.dynamic_rotate %358 by %c64_i32_135 dim 1 : vector<8x128xf32>, i32 -> vector<8x128xf32>
    %cst_136 = arith.constant 1.000000e+00 : f32
    %360 = vector.broadcast %cst_136 : f32 to vector<8x128xf32>
    %361 = arith.subf %360, %353 : vector<8x128xf32>
    %362 = arith.mulf %361, %359 : vector<8x128xf32>
    %363 = arith.mulf %353, %319 : vector<8x128xf32>
    %364 = arith.addf %362, %363 : vector<8x128xf32>
    %c0_137 = arith.constant 0 : index
    %c0_138 = arith.constant 0 : index
    %365 = vector.load %arg6[%c0_137, %c0_138] : memref<128x128xbf16, #tpu.memory_space<vmem>>, vector<128x128xbf16>
    %366 = arith.truncf %364 : vector<8x128xf32> to vector<8x128xbf16>
    %cst_139 = arith.constant dense<0.000000e+00> : vector<8x128xf32>
    %367 = tpu.matmul %366, %365, %cst_139 {dimension_numbers = #tpu.dot_dimension_numbers<[1], [0], [0], [1], [0, 0, 1, 1], [], []>} : vector<8x128xbf16>, vector<128x128xbf16>, vector<8x128xf32> -> vector<8x128xf32>
    %368 = arith.addf %367, %20 : vector<8x128xf32>
    %c0_140 = arith.constant 0 : index
    %c0_141 = arith.constant 0 : index
    %369 = vector.load %arg7[%c0_140, %c0_141] : memref<128x128xbf16, #tpu.memory_space<vmem>>, vector<128x128xbf16>
    %370 = arith.truncf %343 : vector<8x128xf32> to vector<8x128xbf16>
    %cst_142 = arith.constant dense<0.000000e+00> : vector<8x128xf32>
    %371 = tpu.matmul %370, %369, %cst_142 {dimension_numbers = #tpu.dot_dimension_numbers<[1], [0], [0], [1], [0, 0, 1, 1], [], []>} : vector<8x128xbf16>, vector<128x128xbf16>, vector<8x128xf32> -> vector<8x128xf32>
    %372 = arith.addf %368, %371 : vector<8x128xf32>
    %373 = arith.negf %372 : vector<8x128xf32>
    %374 = math.exp %373 : vector<8x128xf32>
    %cst_143 = arith.constant 1.000000e+00 : f32
    %375 = vector.broadcast %cst_143 : f32 to vector<8x128xf32>
    %376 = arith.addf %375, %374 : vector<8x128xf32>
    %377 = arith.divf %375, %376 : vector<8x128xf32>
    %c32_i32_144 = arith.constant 32 : i32
    %378 = tpu.dynamic_rotate %377 by %c32_i32_144 dim 1 : vector<8x128xf32>, i32 -> vector<8x128xf32>
    %379 = arith.addf %371, %26 : vector<8x128xf32>
    %380 = arith.mulf %378, %379 : vector<8x128xf32>
    %381 = arith.addf %368, %380 : vector<8x128xf32>
    %382 = math.tanh %381 : vector<8x128xf32>
    %c64_i32_145 = arith.constant 64 : i32
    %383 = tpu.dynamic_rotate %382 by %c64_i32_145 dim 1 : vector<8x128xf32>, i32 -> vector<8x128xf32>
    %cst_146 = arith.constant 1.000000e+00 : f32
    %384 = vector.broadcast %cst_146 : f32 to vector<8x128xf32>
    %385 = arith.subf %384, %377 : vector<8x128xf32>
    %386 = arith.mulf %385, %383 : vector<8x128xf32>
    %387 = arith.mulf %377, %343 : vector<8x128xf32>
    %388 = arith.addf %386, %387 : vector<8x128xf32>
    %c0_147 = arith.constant 0 : index
    %c0_148 = arith.constant 0 : index
    %389 = vector.load %arg1[%c0_147, %c0_148] : memref<8x128xbf16, #tpu.memory_space<vmem>>, vector<8x128xbf16>
    %c0_149 = arith.constant 0 : index
    %c0_150 = arith.constant 0 : index
    %390 = vector.load %arg10[%c0_149, %c0_150] : memref<128x128xbf16, #tpu.memory_space<vmem>>, vector<128x128xbf16>
    %cst_151 = arith.constant dense<0.000000e+00> : vector<8x128xf32>
    %391 = tpu.matmul %389, %390, %cst_151 {dimension_numbers = #tpu.dot_dimension_numbers<[1], [0], [0], [1], [0, 0, 1, 1], [], []>} : vector<8x128xbf16>, vector<128x128xbf16>, vector<8x128xf32> -> vector<8x128xf32>
    %c0_152 = arith.constant 0 : index
    %c0_153 = arith.constant 0 : index
    %392 = vector.load %arg11[%c0_152, %c0_153] : memref<1x128xf32, #tpu.memory_space<vmem>>, vector<1x128xf32>
    %393 = vector.broadcast %392 : vector<1x128xf32> to vector<8x128xf32>
    %394 = arith.addf %391, %393 : vector<8x128xf32>
    %cst_154 = arith.constant 0.000000e+00 : f32
    %395 = vector.broadcast %cst_154 : f32 to vector<8x128xf32>
    %396 = arith.maximumf %394, %395 : vector<8x128xf32>
    %397 = tpu.concatenate %388, %396 in 1 : vector<8x128xf32>, vector<8x128xf32> -> vector<8x256xf32>
    %c0_i32_155 = arith.constant 0 : i32
    %398 = tpu.memref_slice %arg31[%c0_i32_155] : memref<6x!tpu.dma_semaphore, #tpu.memory_space<semaphore_mem>> -> memref<1x!tpu.dma_semaphore, #tpu.memory_space<semaphore_mem>>
    %399 = tpu.memref_squeeze %398 : memref<1x!tpu.dma_semaphore, #tpu.memory_space<semaphore_mem>> -> memref<!tpu.dma_semaphore, #tpu.memory_space<semaphore_mem>>
    tpu.wait_dma2 semaphore(%399 : memref<!tpu.dma_semaphore, #tpu.memory_space<semaphore_mem>>) src(%arg18 : memref<256x128xbf16, #tpu.memory_space<any>>) dst(%arg25 : memref<256x128xbf16, #tpu.memory_space<vmem>>)
    %c0_156 = arith.constant 0 : index
    %c0_157 = arith.constant 0 : index
    %400 = vector.load %arg25[%c0_156, %c0_157] : memref<256x128xbf16, #tpu.memory_space<vmem>>, vector<256x128xbf16>
    %401 = arith.truncf %397 : vector<8x256xf32> to vector<8x256xbf16>
    %cst_158 = arith.constant dense<0.000000e+00> : vector<8x128xf32>
    %402 = tpu.matmul %401, %400, %cst_158 {dimension_numbers = #tpu.dot_dimension_numbers<[1], [0], [0], [1], [0, 0, 1, 1], [], []>} : vector<8x256xbf16>, vector<256x128xbf16>, vector<8x128xf32> -> vector<8x128xf32>
    %c0_159 = arith.constant 0 : index
    %c0_160 = arith.constant 0 : index
    %403 = vector.load %arg12[%c0_159, %c0_160] : memref<1x128xf32, #tpu.memory_space<vmem>>, vector<1x128xf32>
    %404 = vector.broadcast %403 : vector<1x128xf32> to vector<8x128xf32>
    %405 = arith.addf %402, %404 : vector<8x128xf32>
    %c0_161 = arith.constant 0 : index
    %c0_162 = arith.constant 0 : index
    %406 = vector.load %arg14[%c0_161, %c0_162] : memref<1x128xf32, #tpu.memory_space<vmem>>, vector<1x128xf32>
    %407 = vector.shape_cast %406 : vector<1x128xf32> to vector<1x128xf32>
    %408 = vector.broadcast %407 : vector<1x128xf32> to vector<8x128xf32>
    %c0_163 = arith.constant 0 : index
    %c0_164 = arith.constant 0 : index
    %409 = vector.load %arg13[%c0_163, %c0_164] : memref<1x128xf32, #tpu.memory_space<vmem>>, vector<1x128xf32>
    %410 = vector.shape_cast %409 : vector<1x128xf32> to vector<1x128xf32>
    %411 = vector.broadcast %410 : vector<1x128xf32> to vector<8x128xf32>
    %c0_165 = arith.constant 0 : index
    %c0_166 = arith.constant 0 : index
    %412 = vector.load %arg15[%c0_165, %c0_166] : memref<1x128xf32, #tpu.memory_space<vmem>>, vector<1x128xf32>
    %413 = vector.shape_cast %412 : vector<1x128xf32> to vector<1x128xf32>
    %414 = vector.broadcast %413 : vector<1x128xf32> to vector<8x128xf32>
    %c1_i32_167 = arith.constant 1 : i32
    %415 = tpu.memref_slice %arg31[%c1_i32_167] : memref<6x!tpu.dma_semaphore, #tpu.memory_space<semaphore_mem>> -> memref<1x!tpu.dma_semaphore, #tpu.memory_space<semaphore_mem>>
    %416 = tpu.memref_squeeze %415 : memref<1x!tpu.dma_semaphore, #tpu.memory_space<semaphore_mem>> -> memref<!tpu.dma_semaphore, #tpu.memory_space<semaphore_mem>>
    tpu.wait_dma2 semaphore(%416 : memref<!tpu.dma_semaphore, #tpu.memory_space<semaphore_mem>>) src(%arg19 : memref<128x128xbf16, #tpu.memory_space<any>>) dst(%arg26 : memref<128x128xbf16, #tpu.memory_space<vmem>>)
    %c2_i32_168 = arith.constant 2 : i32
    %417 = tpu.memref_slice %arg31[%c2_i32_168] : memref<6x!tpu.dma_semaphore, #tpu.memory_space<semaphore_mem>> -> memref<1x!tpu.dma_semaphore, #tpu.memory_space<semaphore_mem>>
    %418 = tpu.memref_squeeze %417 : memref<1x!tpu.dma_semaphore, #tpu.memory_space<semaphore_mem>> -> memref<!tpu.dma_semaphore, #tpu.memory_space<semaphore_mem>>
    tpu.wait_dma2 semaphore(%418 : memref<!tpu.dma_semaphore, #tpu.memory_space<semaphore_mem>>) src(%arg20 : memref<128x128xbf16, #tpu.memory_space<any>>) dst(%arg27 : memref<128x128xbf16, #tpu.memory_space<vmem>>)
    %c3_i32_169 = arith.constant 3 : i32
    %419 = tpu.memref_slice %arg31[%c3_i32_169] : memref<6x!tpu.dma_semaphore, #tpu.memory_space<semaphore_mem>> -> memref<1x!tpu.dma_semaphore, #tpu.memory_space<semaphore_mem>>
    %420 = tpu.memref_squeeze %419 : memref<1x!tpu.dma_semaphore, #tpu.memory_space<semaphore_mem>> -> memref<!tpu.dma_semaphore, #tpu.memory_space<semaphore_mem>>
    tpu.wait_dma2 semaphore(%420 : memref<!tpu.dma_semaphore, #tpu.memory_space<semaphore_mem>>) src(%arg21 : memref<128x128xbf16, #tpu.memory_space<any>>) dst(%arg28 : memref<128x128xbf16, #tpu.memory_space<vmem>>)
    %cst_170 = arith.constant 0.000000e+00 : f32
    %421 = vector.broadcast %cst_170 : f32 to vector<8x128xf32>
    %cst_171 = arith.constant 0.000000e+00 : f32
    %422 = vector.broadcast %cst_171 : f32 to vector<8x128xf32>
    %c0_172 = arith.constant 0 : index
    %c0_173 = arith.constant 0 : index
    %423 = vector.load %arg26[%c0_172, %c0_173] : memref<128x128xbf16, #tpu.memory_space<vmem>>, vector<128x128xbf16>
    %424 = arith.truncf %421 : vector<8x128xf32> to vector<8x128xbf16>
    %cst_174 = arith.constant dense<0.000000e+00> : vector<8x128xf32>
    %425 = tpu.matmul %424, %423, %cst_174 {dimension_numbers = #tpu.dot_dimension_numbers<[1], [0], [0], [1], [0, 0, 1, 1], [], []>} : vector<8x128xbf16>, vector<128x128xbf16>, vector<8x128xf32> -> vector<8x128xf32>
    %426 = arith.addf %405, %425 : vector<8x128xf32>
    %427 = arith.negf %426 : vector<8x128xf32>
    %428 = math.exp %427 : vector<8x128xf32>
    %cst_175 = arith.constant 1.000000e+00 : f32
    %429 = vector.broadcast %cst_175 : f32 to vector<8x128xf32>
    %430 = arith.addf %429, %428 : vector<8x128xf32>
    %431 = arith.divf %429, %430 : vector<8x128xf32>
    %c32_i32_176 = arith.constant 32 : i32
    %432 = tpu.dynamic_rotate %431 by %c32_i32_176 dim 1 : vector<8x128xf32>, i32 -> vector<8x128xf32>
    %433 = arith.addf %425, %411 : vector<8x128xf32>
    %434 = arith.mulf %432, %433 : vector<8x128xf32>
    %435 = arith.addf %405, %434 : vector<8x128xf32>
    %436 = math.tanh %435 : vector<8x128xf32>
    %c64_i32_177 = arith.constant 64 : i32
    %437 = tpu.dynamic_rotate %436 by %c64_i32_177 dim 1 : vector<8x128xf32>, i32 -> vector<8x128xf32>
    %cst_178 = arith.constant 1.000000e+00 : f32
    %438 = vector.broadcast %cst_178 : f32 to vector<8x128xf32>
    %439 = arith.subf %438, %431 : vector<8x128xf32>
    %440 = arith.mulf %439, %437 : vector<8x128xf32>
    %441 = arith.mulf %431, %421 : vector<8x128xf32>
    %442 = arith.addf %440, %441 : vector<8x128xf32>
    %c0_179 = arith.constant 0 : index
    %c0_180 = arith.constant 0 : index
    %443 = vector.load %arg27[%c0_179, %c0_180] : memref<128x128xbf16, #tpu.memory_space<vmem>>, vector<128x128xbf16>
    %444 = arith.truncf %442 : vector<8x128xf32> to vector<8x128xbf16>
    %cst_181 = arith.constant dense<0.000000e+00> : vector<8x128xf32>
    %445 = tpu.matmul %444, %443, %cst_181 {dimension_numbers = #tpu.dot_dimension_numbers<[1], [0], [0], [1], [0, 0, 1, 1], [], []>} : vector<8x128xbf16>, vector<128x128xbf16>, vector<8x128xf32> -> vector<8x128xf32>
    %446 = arith.addf %445, %408 : vector<8x128xf32>
    %c0_182 = arith.constant 0 : index
    %c0_183 = arith.constant 0 : index
    %447 = vector.load %arg28[%c0_182, %c0_183] : memref<128x128xbf16, #tpu.memory_space<vmem>>, vector<128x128xbf16>
    %448 = arith.truncf %422 : vector<8x128xf32> to vector<8x128xbf16>
    %cst_184 = arith.constant dense<0.000000e+00> : vector<8x128xf32>
    %449 = tpu.matmul %448, %447, %cst_184 {dimension_numbers = #tpu.dot_dimension_numbers<[1], [0], [0], [1], [0, 0, 1, 1], [], []>} : vector<8x128xbf16>, vector<128x128xbf16>, vector<8x128xf32> -> vector<8x128xf32>
    %450 = arith.addf %446, %449 : vector<8x128xf32>
    %451 = arith.negf %450 : vector<8x128xf32>
    %452 = math.exp %451 : vector<8x128xf32>
    %cst_185 = arith.constant 1.000000e+00 : f32
    %453 = vector.broadcast %cst_185 : f32 to vector<8x128xf32>
    %454 = arith.addf %453, %452 : vector<8x128xf32>
    %455 = arith.divf %453, %454 : vector<8x128xf32>
    %c32_i32_186 = arith.constant 32 : i32
    %456 = tpu.dynamic_rotate %455 by %c32_i32_186 dim 1 : vector<8x128xf32>, i32 -> vector<8x128xf32>
    %457 = arith.addf %449, %414 : vector<8x128xf32>
    %458 = arith.mulf %456, %457 : vector<8x128xf32>
    %459 = arith.addf %446, %458 : vector<8x128xf32>
    %460 = math.tanh %459 : vector<8x128xf32>
    %c64_i32_187 = arith.constant 64 : i32
    %461 = tpu.dynamic_rotate %460 by %c64_i32_187 dim 1 : vector<8x128xf32>, i32 -> vector<8x128xf32>
    %cst_188 = arith.constant 1.000000e+00 : f32
    %462 = vector.broadcast %cst_188 : f32 to vector<8x128xf32>
    %463 = arith.subf %462, %455 : vector<8x128xf32>
    %464 = arith.mulf %463, %461 : vector<8x128xf32>
    %465 = arith.mulf %455, %422 : vector<8x128xf32>
    %466 = arith.addf %464, %465 : vector<8x128xf32>
    %c0_189 = arith.constant 0 : index
    %c0_190 = arith.constant 0 : index
    %467 = vector.load %arg26[%c0_189, %c0_190] : memref<128x128xbf16, #tpu.memory_space<vmem>>, vector<128x128xbf16>
    %468 = arith.truncf %442 : vector<8x128xf32> to vector<8x128xbf16>
    %cst_191 = arith.constant dense<0.000000e+00> : vector<8x128xf32>
    %469 = tpu.matmul %468, %467, %cst_191 {dimension_numbers = #tpu.dot_dimension_numbers<[1], [0], [0], [1], [0, 0, 1, 1], [], []>} : vector<8x128xbf16>, vector<128x128xbf16>, vector<8x128xf32> -> vector<8x128xf32>
    %470 = arith.addf %405, %469 : vector<8x128xf32>
    %471 = arith.negf %470 : vector<8x128xf32>
    %472 = math.exp %471 : vector<8x128xf32>
    %cst_192 = arith.constant 1.000000e+00 : f32
    %473 = vector.broadcast %cst_192 : f32 to vector<8x128xf32>
    %474 = arith.addf %473, %472 : vector<8x128xf32>
    %475 = arith.divf %473, %474 : vector<8x128xf32>
    %c32_i32_193 = arith.constant 32 : i32
    %476 = tpu.dynamic_rotate %475 by %c32_i32_193 dim 1 : vector<8x128xf32>, i32 -> vector<8x128xf32>
    %477 = arith.addf %469, %411 : vector<8x128xf32>
    %478 = arith.mulf %476, %477 : vector<8x128xf32>
    %479 = arith.addf %405, %478 : vector<8x128xf32>
    %480 = math.tanh %479 : vector<8x128xf32>
    %c64_i32_194 = arith.constant 64 : i32
    %481 = tpu.dynamic_rotate %480 by %c64_i32_194 dim 1 : vector<8x128xf32>, i32 -> vector<8x128xf32>
    %cst_195 = arith.constant 1.000000e+00 : f32
    %482 = vector.broadcast %cst_195 : f32 to vector<8x128xf32>
    %483 = arith.subf %482, %475 : vector<8x128xf32>
    %484 = arith.mulf %483, %481 : vector<8x128xf32>
    %485 = arith.mulf %475, %442 : vector<8x128xf32>
    %486 = arith.addf %484, %485 : vector<8x128xf32>
    %c0_196 = arith.constant 0 : index
    %c0_197 = arith.constant 0 : index
    %487 = vector.load %arg27[%c0_196, %c0_197] : memref<128x128xbf16, #tpu.memory_space<vmem>>, vector<128x128xbf16>
    %488 = arith.truncf %486 : vector<8x128xf32> to vector<8x128xbf16>
    %cst_198 = arith.constant dense<0.000000e+00> : vector<8x128xf32>
    %489 = tpu.matmul %488, %487, %cst_198 {dimension_numbers = #tpu.dot_dimension_numbers<[1], [0], [0], [1], [0, 0, 1, 1], [], []>} : vector<8x128xbf16>, vector<128x128xbf16>, vector<8x128xf32> -> vector<8x128xf32>
    %490 = arith.addf %489, %408 : vector<8x128xf32>
    %c0_199 = arith.constant 0 : index
    %c0_200 = arith.constant 0 : index
    %491 = vector.load %arg28[%c0_199, %c0_200] : memref<128x128xbf16, #tpu.memory_space<vmem>>, vector<128x128xbf16>
    %492 = arith.truncf %466 : vector<8x128xf32> to vector<8x128xbf16>
    %cst_201 = arith.constant dense<0.000000e+00> : vector<8x128xf32>
    %493 = tpu.matmul %492, %491, %cst_201 {dimension_numbers = #tpu.dot_dimension_numbers<[1], [0], [0], [1], [0, 0, 1, 1], [], []>} : vector<8x128xbf16>, vector<128x128xbf16>, vector<8x128xf32> -> vector<8x128xf32>
    %494 = arith.addf %490, %493 : vector<8x128xf32>
    %495 = arith.negf %494 : vector<8x128xf32>
    %496 = math.exp %495 : vector<8x128xf32>
    %cst_202 = arith.constant 1.000000e+00 : f32
    %497 = vector.broadcast %cst_202 : f32 to vector<8x128xf32>
    %498 = arith.addf %497, %496 : vector<8x128xf32>
    %499 = arith.divf %497, %498 : vector<8x128xf32>
    %c32_i32_203 = arith.constant 32 : i32
    %500 = tpu.dynamic_rotate %499 by %c32_i32_203 dim 1 : vector<8x128xf32>, i32 -> vector<8x128xf32>
    %501 = arith.addf %493, %414 : vector<8x128xf32>
    %502 = arith.mulf %500, %501 : vector<8x128xf32>
    %503 = arith.addf %490, %502 : vector<8x128xf32>
    %504 = math.tanh %503 : vector<8x128xf32>
    %c64_i32_204 = arith.constant 64 : i32
    %505 = tpu.dynamic_rotate %504 by %c64_i32_204 dim 1 : vector<8x128xf32>, i32 -> vector<8x128xf32>
    %cst_205 = arith.constant 1.000000e+00 : f32
    %506 = vector.broadcast %cst_205 : f32 to vector<8x128xf32>
    %507 = arith.subf %506, %499 : vector<8x128xf32>
    %508 = arith.mulf %507, %505 : vector<8x128xf32>
    %509 = arith.mulf %499, %466 : vector<8x128xf32>
    %510 = arith.addf %508, %509 : vector<8x128xf32>
    %c0_206 = arith.constant 0 : index
    %c0_207 = arith.constant 0 : index
    %511 = vector.load %arg26[%c0_206, %c0_207] : memref<128x128xbf16, #tpu.memory_space<vmem>>, vector<128x128xbf16>
    %512 = arith.truncf %486 : vector<8x128xf32> to vector<8x128xbf16>
    %cst_208 = arith.constant dense<0.000000e+00> : vector<8x128xf32>
    %513 = tpu.matmul %512, %511, %cst_208 {dimension_numbers = #tpu.dot_dimension_numbers<[1], [0], [0], [1], [0, 0, 1, 1], [], []>} : vector<8x128xbf16>, vector<128x128xbf16>, vector<8x128xf32> -> vector<8x128xf32>
    %514 = arith.addf %405, %513 : vector<8x128xf32>
    %515 = arith.negf %514 : vector<8x128xf32>
    %516 = math.exp %515 : vector<8x128xf32>
    %cst_209 = arith.constant 1.000000e+00 : f32
    %517 = vector.broadcast %cst_209 : f32 to vector<8x128xf32>
    %518 = arith.addf %517, %516 : vector<8x128xf32>
    %519 = arith.divf %517, %518 : vector<8x128xf32>
    %c32_i32_210 = arith.constant 32 : i32
    %520 = tpu.dynamic_rotate %519 by %c32_i32_210 dim 1 : vector<8x128xf32>, i32 -> vector<8x128xf32>
    %521 = arith.addf %513, %411 : vector<8x128xf32>
    %522 = arith.mulf %520, %521 : vector<8x128xf32>
    %523 = arith.addf %405, %522 : vector<8x128xf32>
    %524 = math.tanh %523 : vector<8x128xf32>
    %c64_i32_211 = arith.constant 64 : i32
    %525 = tpu.dynamic_rotate %524 by %c64_i32_211 dim 1 : vector<8x128xf32>, i32 -> vector<8x128xf32>
    %cst_212 = arith.constant 1.000000e+00 : f32
    %526 = vector.broadcast %cst_212 : f32 to vector<8x128xf32>
    %527 = arith.subf %526, %519 : vector<8x128xf32>
    %528 = arith.mulf %527, %525 : vector<8x128xf32>
    %529 = arith.mulf %519, %486 : vector<8x128xf32>
    %530 = arith.addf %528, %529 : vector<8x128xf32>
    %c0_213 = arith.constant 0 : index
    %c0_214 = arith.constant 0 : index
    %531 = vector.load %arg27[%c0_213, %c0_214] : memref<128x128xbf16, #tpu.memory_space<vmem>>, vector<128x128xbf16>
    %532 = arith.truncf %530 : vector<8x128xf32> to vector<8x128xbf16>
    %cst_215 = arith.constant dense<0.000000e+00> : vector<8x128xf32>
    %533 = tpu.matmul %532, %531, %cst_215 {dimension_numbers = #tpu.dot_dimension_numbers<[1], [0], [0], [1], [0, 0, 1, 1], [], []>} : vector<8x128xbf16>, vector<128x128xbf16>, vector<8x128xf32> -> vector<8x128xf32>
    %534 = arith.addf %533, %408 : vector<8x128xf32>
    %c0_216 = arith.constant 0 : index
    %c0_217 = arith.constant 0 : index
    %535 = vector.load %arg28[%c0_216, %c0_217] : memref<128x128xbf16, #tpu.memory_space<vmem>>, vector<128x128xbf16>
    %536 = arith.truncf %510 : vector<8x128xf32> to vector<8x128xbf16>
    %cst_218 = arith.constant dense<0.000000e+00> : vector<8x128xf32>
    %537 = tpu.matmul %536, %535, %cst_218 {dimension_numbers = #tpu.dot_dimension_numbers<[1], [0], [0], [1], [0, 0, 1, 1], [], []>} : vector<8x128xbf16>, vector<128x128xbf16>, vector<8x128xf32> -> vector<8x128xf32>
    %538 = arith.addf %534, %537 : vector<8x128xf32>
    %539 = arith.negf %538 : vector<8x128xf32>
    %540 = math.exp %539 : vector<8x128xf32>
    %cst_219 = arith.constant 1.000000e+00 : f32
    %541 = vector.broadcast %cst_219 : f32 to vector<8x128xf32>
    %542 = arith.addf %541, %540 : vector<8x128xf32>
    %543 = arith.divf %541, %542 : vector<8x128xf32>
    %c32_i32_220 = arith.constant 32 : i32
    %544 = tpu.dynamic_rotate %543 by %c32_i32_220 dim 1 : vector<8x128xf32>, i32 -> vector<8x128xf32>
    %545 = arith.addf %537, %414 : vector<8x128xf32>
    %546 = arith.mulf %544, %545 : vector<8x128xf32>
    %547 = arith.addf %534, %546 : vector<8x128xf32>
    %548 = math.tanh %547 : vector<8x128xf32>
    %c64_i32_221 = arith.constant 64 : i32
    %549 = tpu.dynamic_rotate %548 by %c64_i32_221 dim 1 : vector<8x128xf32>, i32 -> vector<8x128xf32>
    %cst_222 = arith.constant 1.000000e+00 : f32
    %550 = vector.broadcast %cst_222 : f32 to vector<8x128xf32>
    %551 = arith.subf %550, %543 : vector<8x128xf32>
    %552 = arith.mulf %551, %549 : vector<8x128xf32>
    %553 = arith.mulf %543, %510 : vector<8x128xf32>
    %554 = arith.addf %552, %553 : vector<8x128xf32>
    %c0_223 = arith.constant 0 : index
    %c0_224 = arith.constant 0 : index
    %555 = vector.load %arg26[%c0_223, %c0_224] : memref<128x128xbf16, #tpu.memory_space<vmem>>, vector<128x128xbf16>
    %556 = arith.truncf %530 : vector<8x128xf32> to vector<8x128xbf16>
    %cst_225 = arith.constant dense<0.000000e+00> : vector<8x128xf32>
    %557 = tpu.matmul %556, %555, %cst_225 {dimension_numbers = #tpu.dot_dimension_numbers<[1], [0], [0], [1], [0, 0, 1, 1], [], []>} : vector<8x128xbf16>, vector<128x128xbf16>, vector<8x128xf32> -> vector<8x128xf32>
    %558 = arith.addf %405, %557 : vector<8x128xf32>
    %559 = arith.negf %558 : vector<8x128xf32>
    %560 = math.exp %559 : vector<8x128xf32>
    %cst_226 = arith.constant 1.000000e+00 : f32
    %561 = vector.broadcast %cst_226 : f32 to vector<8x128xf32>
    %562 = arith.addf %561, %560 : vector<8x128xf32>
    %563 = arith.divf %561, %562 : vector<8x128xf32>
    %c32_i32_227 = arith.constant 32 : i32
    %564 = tpu.dynamic_rotate %563 by %c32_i32_227 dim 1 : vector<8x128xf32>, i32 -> vector<8x128xf32>
    %565 = arith.addf %557, %411 : vector<8x128xf32>
    %566 = arith.mulf %564, %565 : vector<8x128xf32>
    %567 = arith.addf %405, %566 : vector<8x128xf32>
    %568 = math.tanh %567 : vector<8x128xf32>
    %c64_i32_228 = arith.constant 64 : i32
    %569 = tpu.dynamic_rotate %568 by %c64_i32_228 dim 1 : vector<8x128xf32>, i32 -> vector<8x128xf32>
    %cst_229 = arith.constant 1.000000e+00 : f32
    %570 = vector.broadcast %cst_229 : f32 to vector<8x128xf32>
    %571 = arith.subf %570, %563 : vector<8x128xf32>
    %572 = arith.mulf %571, %569 : vector<8x128xf32>
    %573 = arith.mulf %563, %530 : vector<8x128xf32>
    %574 = arith.addf %572, %573 : vector<8x128xf32>
    %c0_230 = arith.constant 0 : index
    %c0_231 = arith.constant 0 : index
    %575 = vector.load %arg27[%c0_230, %c0_231] : memref<128x128xbf16, #tpu.memory_space<vmem>>, vector<128x128xbf16>
    %576 = arith.truncf %574 : vector<8x128xf32> to vector<8x128xbf16>
    %cst_232 = arith.constant dense<0.000000e+00> : vector<8x128xf32>
    %577 = tpu.matmul %576, %575, %cst_232 {dimension_numbers = #tpu.dot_dimension_numbers<[1], [0], [0], [1], [0, 0, 1, 1], [], []>} : vector<8x128xbf16>, vector<128x128xbf16>, vector<8x128xf32> -> vector<8x128xf32>
    %578 = arith.addf %577, %408 : vector<8x128xf32>
    %c0_233 = arith.constant 0 : index
    %c0_234 = arith.constant 0 : index
    %579 = vector.load %arg28[%c0_233, %c0_234] : memref<128x128xbf16, #tpu.memory_space<vmem>>, vector<128x128xbf16>
    %580 = arith.truncf %554 : vector<8x128xf32> to vector<8x128xbf16>
    %cst_235 = arith.constant dense<0.000000e+00> : vector<8x128xf32>
    %581 = tpu.matmul %580, %579, %cst_235 {dimension_numbers = #tpu.dot_dimension_numbers<[1], [0], [0], [1], [0, 0, 1, 1], [], []>} : vector<8x128xbf16>, vector<128x128xbf16>, vector<8x128xf32> -> vector<8x128xf32>
    %582 = arith.addf %578, %581 : vector<8x128xf32>
    %583 = arith.negf %582 : vector<8x128xf32>
    %584 = math.exp %583 : vector<8x128xf32>
    %cst_236 = arith.constant 1.000000e+00 : f32
    %585 = vector.broadcast %cst_236 : f32 to vector<8x128xf32>
    %586 = arith.addf %585, %584 : vector<8x128xf32>
    %587 = arith.divf %585, %586 : vector<8x128xf32>
    %c32_i32_237 = arith.constant 32 : i32
    %588 = tpu.dynamic_rotate %587 by %c32_i32_237 dim 1 : vector<8x128xf32>, i32 -> vector<8x128xf32>
    %589 = arith.addf %581, %414 : vector<8x128xf32>
    %590 = arith.mulf %588, %589 : vector<8x128xf32>
    %591 = arith.addf %578, %590 : vector<8x128xf32>
    %592 = math.tanh %591 : vector<8x128xf32>
    %c64_i32_238 = arith.constant 64 : i32
    %593 = tpu.dynamic_rotate %592 by %c64_i32_238 dim 1 : vector<8x128xf32>, i32 -> vector<8x128xf32>
    %cst_239 = arith.constant 1.000000e+00 : f32
    %594 = vector.broadcast %cst_239 : f32 to vector<8x128xf32>
    %595 = arith.subf %594, %587 : vector<8x128xf32>
    %596 = arith.mulf %595, %593 : vector<8x128xf32>
    %597 = arith.mulf %587, %554 : vector<8x128xf32>
    %598 = arith.addf %596, %597 : vector<8x128xf32>
    %c0_240 = arith.constant 0 : index
    %c0_241 = arith.constant 0 : index
    %599 = vector.load %arg26[%c0_240, %c0_241] : memref<128x128xbf16, #tpu.memory_space<vmem>>, vector<128x128xbf16>
    %600 = arith.truncf %574 : vector<8x128xf32> to vector<8x128xbf16>
    %cst_242 = arith.constant dense<0.000000e+00> : vector<8x128xf32>
    %601 = tpu.matmul %600, %599, %cst_242 {dimension_numbers = #tpu.dot_dimension_numbers<[1], [0], [0], [1], [0, 0, 1, 1], [], []>} : vector<8x128xbf16>, vector<128x128xbf16>, vector<8x128xf32> -> vector<8x128xf32>
    %602 = arith.addf %405, %601 : vector<8x128xf32>
    %603 = arith.negf %602 : vector<8x128xf32>
    %604 = math.exp %603 : vector<8x128xf32>
    %cst_243 = arith.constant 1.000000e+00 : f32
    %605 = vector.broadcast %cst_243 : f32 to vector<8x128xf32>
    %606 = arith.addf %605, %604 : vector<8x128xf32>
    %607 = arith.divf %605, %606 : vector<8x128xf32>
    %c32_i32_244 = arith.constant 32 : i32
    %608 = tpu.dynamic_rotate %607 by %c32_i32_244 dim 1 : vector<8x128xf32>, i32 -> vector<8x128xf32>
    %609 = arith.addf %601, %411 : vector<8x128xf32>
    %610 = arith.mulf %608, %609 : vector<8x128xf32>
    %611 = arith.addf %405, %610 : vector<8x128xf32>
    %612 = math.tanh %611 : vector<8x128xf32>
    %c64_i32_245 = arith.constant 64 : i32
    %613 = tpu.dynamic_rotate %612 by %c64_i32_245 dim 1 : vector<8x128xf32>, i32 -> vector<8x128xf32>
    %cst_246 = arith.constant 1.000000e+00 : f32
    %614 = vector.broadcast %cst_246 : f32 to vector<8x128xf32>
    %615 = arith.subf %614, %607 : vector<8x128xf32>
    %616 = arith.mulf %615, %613 : vector<8x128xf32>
    %617 = arith.mulf %607, %574 : vector<8x128xf32>
    %618 = arith.addf %616, %617 : vector<8x128xf32>
    %c0_247 = arith.constant 0 : index
    %c0_248 = arith.constant 0 : index
    %619 = vector.load %arg27[%c0_247, %c0_248] : memref<128x128xbf16, #tpu.memory_space<vmem>>, vector<128x128xbf16>
    %620 = arith.truncf %618 : vector<8x128xf32> to vector<8x128xbf16>
    %cst_249 = arith.constant dense<0.000000e+00> : vector<8x128xf32>
    %621 = tpu.matmul %620, %619, %cst_249 {dimension_numbers = #tpu.dot_dimension_numbers<[1], [0], [0], [1], [0, 0, 1, 1], [], []>} : vector<8x128xbf16>, vector<128x128xbf16>, vector<8x128xf32> -> vector<8x128xf32>
    %622 = arith.addf %621, %408 : vector<8x128xf32>
    %c0_250 = arith.constant 0 : index
    %c0_251 = arith.constant 0 : index
    %623 = vector.load %arg28[%c0_250, %c0_251] : memref<128x128xbf16, #tpu.memory_space<vmem>>, vector<128x128xbf16>
    %624 = arith.truncf %598 : vector<8x128xf32> to vector<8x128xbf16>
    %cst_252 = arith.constant dense<0.000000e+00> : vector<8x128xf32>
    %625 = tpu.matmul %624, %623, %cst_252 {dimension_numbers = #tpu.dot_dimension_numbers<[1], [0], [0], [1], [0, 0, 1, 1], [], []>} : vector<8x128xbf16>, vector<128x128xbf16>, vector<8x128xf32> -> vector<8x128xf32>
    %626 = arith.addf %622, %625 : vector<8x128xf32>
    %627 = arith.negf %626 : vector<8x128xf32>
    %628 = math.exp %627 : vector<8x128xf32>
    %cst_253 = arith.constant 1.000000e+00 : f32
    %629 = vector.broadcast %cst_253 : f32 to vector<8x128xf32>
    %630 = arith.addf %629, %628 : vector<8x128xf32>
    %631 = arith.divf %629, %630 : vector<8x128xf32>
    %c32_i32_254 = arith.constant 32 : i32
    %632 = tpu.dynamic_rotate %631 by %c32_i32_254 dim 1 : vector<8x128xf32>, i32 -> vector<8x128xf32>
    %633 = arith.addf %625, %414 : vector<8x128xf32>
    %634 = arith.mulf %632, %633 : vector<8x128xf32>
    %635 = arith.addf %622, %634 : vector<8x128xf32>
    %636 = math.tanh %635 : vector<8x128xf32>
    %c64_i32_255 = arith.constant 64 : i32
    %637 = tpu.dynamic_rotate %636 by %c64_i32_255 dim 1 : vector<8x128xf32>, i32 -> vector<8x128xf32>
    %cst_256 = arith.constant 1.000000e+00 : f32
    %638 = vector.broadcast %cst_256 : f32 to vector<8x128xf32>
    %639 = arith.subf %638, %631 : vector<8x128xf32>
    %640 = arith.mulf %639, %637 : vector<8x128xf32>
    %641 = arith.mulf %631, %598 : vector<8x128xf32>
    %642 = arith.addf %640, %641 : vector<8x128xf32>
    %c0_257 = arith.constant 0 : index
    %c0_258 = arith.constant 0 : index
    %643 = vector.load %arg26[%c0_257, %c0_258] : memref<128x128xbf16, #tpu.memory_space<vmem>>, vector<128x128xbf16>
    %644 = arith.truncf %618 : vector<8x128xf32> to vector<8x128xbf16>
    %cst_259 = arith.constant dense<0.000000e+00> : vector<8x128xf32>
    %645 = tpu.matmul %644, %643, %cst_259 {dimension_numbers = #tpu.dot_dimension_numbers<[1], [0], [0], [1], [0, 0, 1, 1], [], []>} : vector<8x128xbf16>, vector<128x128xbf16>, vector<8x128xf32> -> vector<8x128xf32>
    %646 = arith.addf %405, %645 : vector<8x128xf32>
    %647 = arith.negf %646 : vector<8x128xf32>
    %648 = math.exp %647 : vector<8x128xf32>
    %cst_260 = arith.constant 1.000000e+00 : f32
    %649 = vector.broadcast %cst_260 : f32 to vector<8x128xf32>
    %650 = arith.addf %649, %648 : vector<8x128xf32>
    %651 = arith.divf %649, %650 : vector<8x128xf32>
    %c32_i32_261 = arith.constant 32 : i32
    %652 = tpu.dynamic_rotate %651 by %c32_i32_261 dim 1 : vector<8x128xf32>, i32 -> vector<8x128xf32>
    %653 = arith.addf %645, %411 : vector<8x128xf32>
    %654 = arith.mulf %652, %653 : vector<8x128xf32>
    %655 = arith.addf %405, %654 : vector<8x128xf32>
    %656 = math.tanh %655 : vector<8x128xf32>
    %c64_i32_262 = arith.constant 64 : i32
    %657 = tpu.dynamic_rotate %656 by %c64_i32_262 dim 1 : vector<8x128xf32>, i32 -> vector<8x128xf32>
    %cst_263 = arith.constant 1.000000e+00 : f32
    %658 = vector.broadcast %cst_263 : f32 to vector<8x128xf32>
    %659 = arith.subf %658, %651 : vector<8x128xf32>
    %660 = arith.mulf %659, %657 : vector<8x128xf32>
    %661 = arith.mulf %651, %618 : vector<8x128xf32>
    %662 = arith.addf %660, %661 : vector<8x128xf32>
    %c0_264 = arith.constant 0 : index
    %c0_265 = arith.constant 0 : index
    %663 = vector.load %arg27[%c0_264, %c0_265] : memref<128x128xbf16, #tpu.memory_space<vmem>>, vector<128x128xbf16>
    %664 = arith.truncf %662 : vector<8x128xf32> to vector<8x128xbf16>
    %cst_266 = arith.constant dense<0.000000e+00> : vector<8x128xf32>
    %665 = tpu.matmul %664, %663, %cst_266 {dimension_numbers = #tpu.dot_dimension_numbers<[1], [0], [0], [1], [0, 0, 1, 1], [], []>} : vector<8x128xbf16>, vector<128x128xbf16>, vector<8x128xf32> -> vector<8x128xf32>
    %666 = arith.addf %665, %408 : vector<8x128xf32>
    %c0_267 = arith.constant 0 : index
    %c0_268 = arith.constant 0 : index
    %667 = vector.load %arg28[%c0_267, %c0_268] : memref<128x128xbf16, #tpu.memory_space<vmem>>, vector<128x128xbf16>
    %668 = arith.truncf %642 : vector<8x128xf32> to vector<8x128xbf16>
    %cst_269 = arith.constant dense<0.000000e+00> : vector<8x128xf32>
    %669 = tpu.matmul %668, %667, %cst_269 {dimension_numbers = #tpu.dot_dimension_numbers<[1], [0], [0], [1], [0, 0, 1, 1], [], []>} : vector<8x128xbf16>, vector<128x128xbf16>, vector<8x128xf32> -> vector<8x128xf32>
    %670 = arith.addf %666, %669 : vector<8x128xf32>
    %671 = arith.negf %670 : vector<8x128xf32>
    %672 = math.exp %671 : vector<8x128xf32>
    %cst_270 = arith.constant 1.000000e+00 : f32
    %673 = vector.broadcast %cst_270 : f32 to vector<8x128xf32>
    %674 = arith.addf %673, %672 : vector<8x128xf32>
    %675 = arith.divf %673, %674 : vector<8x128xf32>
    %c32_i32_271 = arith.constant 32 : i32
    %676 = tpu.dynamic_rotate %675 by %c32_i32_271 dim 1 : vector<8x128xf32>, i32 -> vector<8x128xf32>
    %677 = arith.addf %669, %414 : vector<8x128xf32>
    %678 = arith.mulf %676, %677 : vector<8x128xf32>
    %679 = arith.addf %666, %678 : vector<8x128xf32>
    %680 = math.tanh %679 : vector<8x128xf32>
    %c64_i32_272 = arith.constant 64 : i32
    %681 = tpu.dynamic_rotate %680 by %c64_i32_272 dim 1 : vector<8x128xf32>, i32 -> vector<8x128xf32>
    %cst_273 = arith.constant 1.000000e+00 : f32
    %682 = vector.broadcast %cst_273 : f32 to vector<8x128xf32>
    %683 = arith.subf %682, %675 : vector<8x128xf32>
    %684 = arith.mulf %683, %681 : vector<8x128xf32>
    %685 = arith.mulf %675, %642 : vector<8x128xf32>
    %686 = arith.addf %684, %685 : vector<8x128xf32>
    %687 = tpu.concatenate %466, %510, %554, %598, %642, %686 in 0 : vector<8x128xf32>, vector<8x128xf32>, vector<8x128xf32>, vector<8x128xf32>, vector<8x128xf32>, vector<8x128xf32> -> vector<48x128xf32>
    %c4_i32_274 = arith.constant 4 : i32
    %688 = tpu.memref_slice %arg31[%c4_i32_274] : memref<6x!tpu.dma_semaphore, #tpu.memory_space<semaphore_mem>> -> memref<1x!tpu.dma_semaphore, #tpu.memory_space<semaphore_mem>>
    %689 = tpu.memref_squeeze %688 : memref<1x!tpu.dma_semaphore, #tpu.memory_space<semaphore_mem>> -> memref<!tpu.dma_semaphore, #tpu.memory_space<semaphore_mem>>
    tpu.wait_dma2 semaphore(%689 : memref<!tpu.dma_semaphore, #tpu.memory_space<semaphore_mem>>) src(%arg22 : memref<128x128xbf16, #tpu.memory_space<any>>) dst(%arg29 : memref<128x128xbf16, #tpu.memory_space<vmem>>)
    %c5_i32_275 = arith.constant 5 : i32
    %690 = tpu.memref_slice %arg31[%c5_i32_275] : memref<6x!tpu.dma_semaphore, #tpu.memory_space<semaphore_mem>> -> memref<1x!tpu.dma_semaphore, #tpu.memory_space<semaphore_mem>>
    %691 = tpu.memref_squeeze %690 : memref<1x!tpu.dma_semaphore, #tpu.memory_space<semaphore_mem>> -> memref<!tpu.dma_semaphore, #tpu.memory_space<semaphore_mem>>
    tpu.wait_dma2 semaphore(%691 : memref<!tpu.dma_semaphore, #tpu.memory_space<semaphore_mem>>) src(%arg23 : memref<128x128xbf16, #tpu.memory_space<any>>) dst(%arg30 : memref<128x128xbf16, #tpu.memory_space<vmem>>)
    %c0_276 = arith.constant 0 : index
    %c0_277 = arith.constant 0 : index
    %692 = vector.load %arg29[%c0_276, %c0_277] : memref<128x128xbf16, #tpu.memory_space<vmem>>, vector<128x128xbf16>
    %693 = arith.truncf %687 : vector<48x128xf32> to vector<48x128xbf16>
    %cst_278 = arith.constant dense<0.000000e+00> : vector<48x128xf32>
    %694 = tpu.matmul %693, %692, %cst_278 {dimension_numbers = #tpu.dot_dimension_numbers<[1], [0], [0], [1], [0, 0, 1, 1], [], []>} : vector<48x128xbf16>, vector<128x128xbf16>, vector<48x128xf32> -> vector<48x128xf32>
    %c0_279 = arith.constant 0 : index
    %c0_280 = arith.constant 0 : index
    %695 = vector.load %arg16[%c0_279, %c0_280] : memref<1x128xf32, #tpu.memory_space<vmem>>, vector<1x128xf32>
    %696 = vector.broadcast %695 : vector<1x128xf32> to vector<48x128xf32>
    %697 = arith.addf %694, %696 : vector<48x128xf32>
    %cst_281 = arith.constant 0.000000e+00 : f32
    %698 = vector.broadcast %cst_281 : f32 to vector<48x128xf32>
    %699 = arith.maximumf %697, %698 : vector<48x128xf32>
    %c0_282 = arith.constant 0 : index
    %c0_283 = arith.constant 0 : index
    %700 = vector.load %arg30[%c0_282, %c0_283] : memref<128x128xbf16, #tpu.memory_space<vmem>>, vector<128x128xbf16>
    %701 = arith.truncf %699 : vector<48x128xf32> to vector<48x128xbf16>
    %cst_284 = arith.constant dense<0.000000e+00> : vector<48x128xf32>
    %702 = tpu.matmul %701, %700, %cst_284 {dimension_numbers = #tpu.dot_dimension_numbers<[1], [0], [0], [1], [0, 0, 1, 1], [], []>} : vector<48x128xbf16>, vector<128x128xbf16>, vector<48x128xf32> -> vector<48x128xf32>
    %c0_285 = arith.constant 0 : index
    %c0_286 = arith.constant 0 : index
    %703 = vector.load %arg17[%c0_285, %c0_286] : memref<1x128xf32, #tpu.memory_space<vmem>>, vector<1x128xf32>
    %704 = vector.broadcast %703 : vector<1x128xf32> to vector<48x128xf32>
    %705 = arith.addf %702, %704 : vector<48x128xf32>
    %c0_287 = arith.constant 0 : index
    %c0_288 = arith.constant 0 : index
    %706 = vector.load %arg24[%c0_287, %c0_288] : memref<48x128xf32, #tpu.memory_space<vmem>>, vector<48x128xf32>
    tpu.vector_store %arg24[%c0_287, %c0_288], %705 {strides = array<i32>} : memref<48x128xf32, #tpu.memory_space<vmem>>, vector<48x128xf32>,
    return
  }
}

</mosaic_0001>

<llo_original>
// kernel: tpu_custom_call.1
$region0: #{tpu_custom_call.1}
  #allocation0 [shape = 'u32[]', space=smem, size = 0x4, offset = 0x4, fixed_abs, tag = 'smem constant byte address 0x4 - core index']
  #allocation1 [shape = 'u32[144,128]{1,0:T(1,128)}', space=vmem, size = 0x12000, scoped, tag = 'internal scratch']
  #allocation2 [shape = 'bf16[256,128]{1,0:T(16,128)(2,1)}', space=vmem, size = 0x10000, scoped, tag = 'scratch operand']
  #allocation3 [shape = 'bf16[128,128]{1,0:T(16,128)(2,1)}', space=vmem, size = 0x8000, scoped, tag = 'scratch operand']
  #allocation4 [shape = 'bf16[128,128]{1,0:T(16,128)(2,1)}', space=vmem, size = 0x8000, scoped, tag = 'scratch operand']
  #allocation5 [shape = 'bf16[128,128]{1,0:T(16,128)(2,1)}', space=vmem, size = 0x8000, scoped, tag = 'scratch operand']
  #allocation6 [shape = 'bf16[128,128]{1,0:T(16,128)(2,1)}', space=vmem, size = 0x8000, scoped, tag = 'scratch operand']
  #allocation7 [shape = 'bf16[128,128]{1,0:T(16,128)(2,1)}', space=vmem, size = 0x8000, scoped, tag = 'scratch operand']
  #allocation8 [shape = 's32[6]{0}', space=sflag, size = 0x18, scoped, tag = 'scratch operand']
  #allocation28 [shape = 's32[]', space=sflag, size = 0x4, offset = 0, fixed_abs, tag = 'sflag constant byte address 0x0 - dummy sync flag']
  #allocation29 [shape = 's32[]', space=sflag, size = 0x4, offset = 0, fixed_abs, tag = 'sflag constant byte address 0x0 - dummy sync flag']
  #allocation30 [shape = 'u32[]', space=smem, size = 0x4, offset = 0x44, fixed_abs, tag = 'smem constant byte address 0x44 - assertion arg 0']
  #allocation31 [shape = 'u32[]', space=smem, size = 0x4, offset = 0x48, fixed_abs, tag = 'smem constant byte address 0x48 - assertion arg 1']
  #allocation32 [shape = 's32[]', space=sflag, size = 0x4, offset = 0, fixed_abs, tag = 'sflag constant byte address 0x0 - dummy sync flag']
  #allocation33 [shape = 's32[]', space=sflag, size = 0x4, offset = 0, fixed_abs, tag = 'sflag constant byte address 0x0 - dummy sync flag']
  #allocation34 [shape = 's32[]', space=sflag, size = 0x4, offset = 0, fixed_abs, tag = 'sflag constant byte address 0x0 - dummy sync flag']
  #allocation35 [shape = 's32[]', space=sflag, size = 0x4, offset = 0, fixed_abs, tag = 'sflag constant byte address 0x0 - dummy sync flag']
  #allocation36 [shape = 's32[]', space=sflag, size = 0x4, offset = 0, fixed_abs, tag = 'sflag constant byte address 0x0 - dummy sync flag']
  #allocation37 [shape = 's32[]', space=sflag, size = 0x4, offset = 0, fixed_abs, tag = 'sflag constant byte address 0x0 - dummy sync flag']
  #allocation38 [shape = 's32[]', space=sflag, size = 0x4, offset = 0, fixed_abs, tag = 'sflag constant byte address 0x0 - dummy sync flag']
  #allocation39 [shape = 's32[]', space=sflag, size = 0x4, offset = 0, fixed_abs, tag = 'sflag constant byte address 0x0 - dummy sync flag']
  #allocation40 [shape = 's32[]', space=sflag, size = 0x4, offset = 0, fixed_abs, tag = 'sflag constant byte address 0x0 - dummy sync flag']
  %s0 = inlined_call_operand.hbm [shape: bf16[64,128], index: 0, kind: input, shape index: {}]
  %s1 = inlined_call_operand.hbm [shape: bf16[8,128], index: 1, kind: input, shape index: {}]
  %s2 = inlined_call_operand.hbm [shape: bf16[128,128], index: 2, kind: input, shape index: {}]
  %s3 = inlined_call_operand.hbm [shape: bf16[128,128], index: 3, kind: input, shape index: {}]
  %s4 = inlined_call_operand.vmem [shape: f32[1,128], index: 4, kind: input, shape index: {}]
  %s5 = inlined_call_operand.vmem [shape: f32[1,128], index: 5, kind: input, shape index: {}]
  %s6 = inlined_call_operand.hbm [shape: bf16[128,128], index: 6, kind: input, shape index: {}]
  %s7 = inlined_call_operand.hbm [shape: bf16[128,128], index: 7, kind: input, shape index: {}]
  %s8 = inlined_call_operand.vmem [shape: f32[1,128], index: 8, kind: input, shape index: {}]
  %s9 = inlined_call_operand.vmem [shape: f32[1,128], index: 9, kind: input, shape index: {}]
  %s10 = inlined_call_operand.hbm [shape: bf16[128,128], index: 10, kind: input, shape index: {}]
  %s11 = inlined_call_operand.vmem [shape: f32[1,128], index: 11, kind: input, shape index: {}]
  %s12 = inlined_call_operand.vmem [shape: f32[1,128], index: 12, kind: input, shape index: {}]
  %s13 = inlined_call_operand.vmem [shape: f32[1,128], index: 13, kind: input, shape index: {}]
  %s14 = inlined_call_operand.hbm [shape: f32[1,128], index: 14, kind: input, shape index: {}]
  %s15 = inlined_call_operand.hbm [shape: f32[1,128], index: 15, kind: input, shape index: {}]
  %s16 = inlined_call_operand.hbm [shape: f32[1,128], index: 16, kind: input, shape index: {}]
  %s17 = inlined_call_operand.hbm [shape: f32[1,128], index: 17, kind: input, shape index: {}]
  %s18 = inlined_call_operand.hbm [shape: bf16[256,128], index: 18, kind: input, shape index: {}]
  %s19 = inlined_call_operand.vmem [shape: bf16[128,128], index: 19, kind: input, shape index: {}]
  %s20 = inlined_call_operand.hbm [shape: bf16[128,128], index: 20, kind: input, shape index: {}]
  %s21 = inlined_call_operand.hbm [shape: bf16[128,128], index: 21, kind: input, shape index: {}]
  %s22 = inlined_call_operand.hbm [shape: bf16[128,128], index: 22, kind: input, shape index: {}]
  %s23 = inlined_call_operand.hbm [shape: bf16[128,128], index: 23, kind: input, shape index: {}]
  %s24 = inlined_call_operand.hbm [shape: f32[48,128], index: 24, kind: output, shape index: {}]
  %s25 = sld [smem:[#allocation0]]
  $region180: #{tpu_custom_call.1} parent=0
    _
  %s27 = ssub.s32 1, %s25
  %s28 = scalar_select 0, %s27, %s25
  $region1: #{tpu_custom_call.1} parent=0
    #allocation9 [shape = 'u8[16384]{0}', space=vmem, size = 0x4000, scoped, tag = 'input window, operand 0, single buffered']
    #allocation10 [shape = 's32[1]{0}', space=sflag, size = 0x4, scoped, tag = 'scoped memory for tpu_custom_call.1']
    #allocation11 [shape = 's32[1]{0}', space=sflag, size = 0x4, scoped, tag = 'scoped memory for tpu_custom_call.1']
    #allocation12 [shape = 'u8[2048]{0}', space=vmem, size = 0x800, scoped, tag = 'input window, operand 1, single buffered']
    #allocation13 [shape = 's32[1]{0}', space=sflag, size = 0x4, scoped, tag = 'scoped memory for tpu_custom_call.1']
    #allocation14 [shape = 'u8[32768]{0}', space=vmem, size = 0x8000, scoped, tag = 'input window, operand 2, single buffered']
    #allocation15 [shape = 'u8[32768]{0}', space=vmem, size = 0x8000, scoped, tag = 'input window, operand 3, single buffered']
    #allocation16 [shape = 's32[1]{0}', space=sflag, size = 0x4, scoped, tag = 'scoped memory for tpu_custom_call.1']
    #allocation17 [shape = 'u8[32768]{0}', space=vmem, size = 0x8000, scoped, tag = 'input window, operand 6, single buffered']
    #allocation18 [shape = 'u8[32768]{0}', space=vmem, size = 0x8000, scoped, tag = 'input window, operand 7, single buffered']
    #allocation19 [shape = 's32[1]{0}', space=sflag, size = 0x4, scoped, tag = 'scoped memory for tpu_custom_call.1']
    #allocation20 [shape = 'u8[32768]{0}', space=vmem, size = 0x8000, scoped, tag = 'input window, operand 10, single buffered']
    #allocation21 [shape = 'u8[512]{0}', space=vmem, size = 0x400, scoped, tag = 'input window, operand 14, single buffered']
    #allocation22 [shape = 's32[1]{0}', space=sflag, size = 0x4, scoped, tag = 'scoped memory for tpu_custom_call.1']
    #allocation23 [shape = 'u8[512]{0}', space=vmem, size = 0x400, scoped, tag = 'input window, operand 15, single buffered']
    #allocation24 [shape = 'u8[512]{0}', space=vmem, size = 0x400, scoped, tag = 'input window, operand 16, single buffered']
    #allocation25 [shape = 's32[1]{0}', space=sflag, size = 0x4, scoped, tag = 'scoped memory for tpu_custom_call.1']
    #allocation26 [shape = 'u8[512]{0}', space=vmem, size = 0x400, scoped, tag = 'input window, operand 17, single buffered']
    #allocation27 [shape = 'u8[24576]{0}', space=vmem, size = 0x6000, scoped, tag = 'output window, operand 0, single buffered']
    %29 = vsyncpa [#allocation10], 0
    %30 = vsyncpa [#allocation13], 0
    %31 = vsyncpa [#allocation16], 0
    %32 = vsyncpa [#allocation19], 0
    %33 = vsyncpa [#allocation22], 0
    %34 = vsyncpa [#allocation25], 0
    %35 = vsyncpa [#allocation11], 0
    // Predicated region
    $region2: #{tpu_custom_call.1} parent=1 // pred_check
      _
    $region3: #{tpu_custom_call.1} parent=1 // pred_check_branch
      %37 = sbr.rel (0) target = $region5
    $region4: #{tpu_custom_call.1} parent=1 // pred_region
      %s39 = ssub.s32 512, 512
      %40 = vsyncadd [#allocation10], %s39
      %s41 = sshll.u32 [#allocation9], 4
      %s42 = int_to_ptr.vmem [resolvable:$true] %s41
      %47 = dma.hbm_to_vmem [thread:$0]  %s0, 512, %s42, [#allocation10], 64, 64, 4
    $region5: #{tpu_custom_call.1} parent=1 // pred_fallthru
      _
    // Predicated region
    $region6: #{tpu_custom_call.1} parent=1 // pred_check
      _
    $region7: #{tpu_custom_call.1} parent=1 // pred_check_branch
      %49 = sbr.rel (0) target = $region9
    $region8: #{tpu_custom_call.1} parent=1 // pred_region
      %s51 = ssub.s32 64, 64
      %52 = vsyncadd [#allocation13], %s51
      %s54 = sshll.u32 [#allocation12], 4
      %s55 = int_to_ptr.vmem [resolvable:$true] %s54
      %57 = dma.hbm_to_vmem [thread:$0]  %s1, 64, %s55, [#allocation13]
    $region9: #{tpu_custom_call.1} parent=1 // pred_fallthru
      _
    // Predicated region
    $region10: #{tpu_custom_call.1} parent=1 // pred_check
      _
    $region11: #{tpu_custom_call.1} parent=1 // pred_check_branch
      %59 = sbr.rel (0) target = $region13
    $region12: #{tpu_custom_call.1} parent=1 // pred_region
      %s61 = ssub.s32 1024, 1024
      %62 = vsyncadd [#allocation13], %s61
      %s63 = sshll.u32 [#allocation14], 4
      %s64 = int_to_ptr.vmem [resolvable:$true] %s63
      %69 = dma.hbm_to_vmem [thread:$0]  %s2, 1024, %s64, [#allocation13], 64, 64, 4
    $region13: #{tpu_custom_call.1} parent=1 // pred_fallthru
      _
    // Predicated region
    $region14: #{tpu_custom_call.1} parent=1 // pred_check
      _
    $region15: #{tpu_custom_call.1} parent=1 // pred_check_branch
      %71 = sbr.rel (0) target = $region17
    $region16: #{tpu_custom_call.1} parent=1 // pred_region
      %s73 = ssub.s32 1024, 1024
      %74 = vsyncadd [#allocation16], %s73
      %s75 = sshll.u32 [#allocation15], 4
      %s76 = int_to_ptr.vmem [resolvable:$true] %s75
      %81 = dma.hbm_to_vmem [thread:$0]  %s3, 1024, %s76, [#allocation16], 64, 64, 4
    $region17: #{tpu_custom_call.1} parent=1 // pred_fallthru
      _
    // Predicated region
    $region18: #{tpu_custom_call.1} parent=1 // pred_check
      _
    $region19: #{tpu_custom_call.1} parent=1 // pred_check_branch
      %83 = sbr.rel (0) target = $region21
    $region20: #{tpu_custom_call.1} parent=1 // pred_region
      _
    $region21: #{tpu_custom_call.1} parent=1 // pred_fallthru
      _
    // Predicated region
    $region22: #{tpu_custom_call.1} parent=1 // pred_check
      _
    $region23: #{tpu_custom_call.1} parent=1 // pred_check_branch
      %85 = sbr.rel (0) target = $region25
    $region24: #{tpu_custom_call.1} parent=1 // pred_region
      _
    $region25: #{tpu_custom_call.1} parent=1 // pred_fallthru
      _
    // Predicated region
    $region26: #{tpu_custom_call.1} parent=1 // pred_check
      _
    $region27: #{tpu_custom_call.1} parent=1 // pred_check_branch
      %87 = sbr.rel (0) target = $region29
    $region28: #{tpu_custom_call.1} parent=1 // pred_region
      %s89 = ssub.s32 1024, 1024
      %90 = vsyncadd [#allocation16], %s89
      %s91 = sshll.u32 [#allocation17], 4
      %s92 = int_to_ptr.vmem [resolvable:$true] %s91
      %97 = dma.hbm_to_vmem [thread:$0]  %s6, 1024, %s92, [#allocation16], 64, 64, 4
    $region29: #{tpu_custom_call.1} parent=1 // pred_fallthru
      _
    // Predicated region
    $region30: #{tpu_custom_call.1} parent=1 // pred_check
      _
    $region31: #{tpu_custom_call.1} parent=1 // pred_check_branch
      %99 = sbr.rel (0) target = $region33
    $region32: #{tpu_custom_call.1} parent=1 // pred_region
      %s101 = ssub.s32 1024, 1024
      %102 = vsyncadd [#allocation19], %s101
      %s103 = sshll.u32 [#allocation18], 4
      %s104 = int_to_ptr.vmem [resolvable:$true] %s103
      %109 = dma.hbm_to_vmem [thread:$0]  %s7, 1024, %s104, [#allocation19], 64, 64, 4
    $region33: #{tpu_custom_call.1} parent=1 // pred_fallthru
      _
    // Predicated region
    $region34: #{tpu_custom_call.1} parent=1 // pred_check
      _
    $region35: #{tpu_custom_call.1} parent=1 // pred_check_branch
      %111 = sbr.rel (0) target = $region37
    $region36: #{tpu_custom_call.1} parent=1 // pred_region
      _
    $region37: #{tpu_custom_call.1} parent=1 // pred_fallthru
      _
    // Predicated region
    $region38: #{tpu_custom_call.1} parent=1 // pred_check
      _
    $region39: #{tpu_custom_call.1} parent=1 // pred_check_branch
      %113 = sbr.rel (0) target = $region41
    $region40: #{tpu_custom_call.1} parent=1 // pred_region
      _
    $region41: #{tpu_custom_call.1} parent=1 // pred_fallthru
      _
    // Predicated region
    $region42: #{tpu_custom_call.1} parent=1 // pred_check
      _
    $region43: #{tpu_custom_call.1} parent=1 // pred_check_branch
      %115 = sbr.rel (0) target = $region45
    $region44: #{tpu_custom_call.1} parent=1 // pred_region
      %s117 = ssub.s32 1024, 1024
      %118 = vsyncadd [#allocation19], %s117
      %s119 = sshll.u32 [#allocation20], 4
      %s120 = int_to_ptr.vmem [resolvable:$true] %s119
      %125 = dma.hbm_to_vmem [thread:$0]  %s10, 1024, %s120, [#allocation19], 64, 64, 4
    $region45: #{tpu_custom_call.1} parent=1 // pred_fallthru
      _
    // Predicated region
    $region46: #{tpu_custom_call.1} parent=1 // pred_check
      _
    $region47: #{tpu_custom_call.1} parent=1 // pred_check_branch
      %127 = sbr.rel (0) target = $region49
    $region48: #{tpu_custom_call.1} parent=1 // pred_region
      _
    $region49: #{tpu_custom_call.1} parent=1 // pred_fallthru
      _
    // Predicated region
    $region50: #{tpu_custom_call.1} parent=1 // pred_check
      _
    $region51: #{tpu_custom_call.1} parent=1 // pred_check_branch
      %129 = sbr.rel (0) target = $region53
    $region52: #{tpu_custom_call.1} parent=1 // pred_region
      _
    $region53: #{tpu_custom_call.1} parent=1 // pred_fallthru
      _
    // Predicated region
    $region54: #{tpu_custom_call.1} parent=1 // pred_check
      _
    $region55: #{tpu_custom_call.1} parent=1 // pred_check_branch
      %131 = sbr.rel (0) target = $region57
    $region56: #{tpu_custom_call.1} parent=1 // pred_region
      _
    $region57: #{tpu_custom_call.1} parent=1 // pred_fallthru
      _
    // Predicated region
    $region58: #{tpu_custom_call.1} parent=1 // pred_check
      _
    $region59: #{tpu_custom_call.1} parent=1 // pred_check_branch
      %133 = sbr.rel (0) target = $region61
    $region60: #{tpu_custom_call.1} parent=1 // pred_region
      %s135 = ssub.s32 16, 16
      %136 = vsyncadd [#allocation22], %s135
      %s138 = sshll.u32 [#allocation21], 4
      %s139 = int_to_ptr.vmem [resolvable:$true] %s138
      %141 = dma.hbm_to_vmem [thread:$0]  %s14, 16, %s139, [#allocation22]
    $region61: #{tpu_custom_call.1} parent=1 // pred_fallthru
      _
    // Predicated region
    $region62: #{tpu_custom_call.1} parent=1 // pred_check
      _
    $region63: #{tpu_custom_call.1} parent=1 // pred_check_branch
      %143 = sbr.rel (0) target = $region65
    $region64: #{tpu_custom_call.1} parent=1 // pred_region
      %s145 = ssub.s32 16, 16
      %146 = vsyncadd [#allocation22], %s145
      %s148 = sshll.u32 [#allocation23], 4
      %s149 = int_to_ptr.vmem [resolvable:$true] %s148
      %151 = dma.hbm_to_vmem [thread:$0]  %s15, 16, %s149, [#allocation22]
    $region65: #{tpu_custom_call.1} parent=1 // pred_fallthru
      _
    // Predicated region
    $region66: #{tpu_custom_call.1} parent=1 // pred_check
      _
    $region67: #{tpu_custom_call.1} parent=1 // pred_check_branch
      %153 = sbr.rel (0) target = $region69
    $region68: #{tpu_custom_call.1} parent=1 // pred_region
      %s155 = ssub.s32 16, 16
      %156 = vsyncadd [#allocation25], %s155
      %s158 = sshll.u32 [#allocation24], 4
      %s159 = int_to_ptr.vmem [resolvable:$true] %s158
      %161 = dma.hbm_to_vmem [thread:$0]  %s16, 16, %s159, [#allocation25]
    $region69: #{tpu_custom_call.1} parent=1 // pred_fallthru
      _
    // Predicated region
    $region70: #{tpu_custom_call.1} parent=1 // pred_check
      _
    $region71: #{tpu_custom_call.1} parent=1 // pred_check_branch
      %163 = sbr.rel (0) target = $region73
    $region72: #{tpu_custom_call.1} parent=1 // pred_region
      %s165 = ssub.s32 16, 16
      %166 = vsyncadd [#allocation25], %s165
      %s168 = sshll.u32 [#allocation26], 4
      %s169 = int_to_ptr.vmem [resolvable:$true] %s168
      %171 = dma.hbm_to_vmem [thread:$0]  %s17, 16, %s169, [#allocation25]
    $region73: #{tpu_custom_call.1} parent=1 // pred_fallthru
      _
    // Predicated region
    $region74: #{tpu_custom_call.1} parent=1 // pred_check
      _
    $region75: #{tpu_custom_call.1} parent=1 // pred_check_branch
      %173 = sbr.rel (0) target = $region77
    $region76: #{tpu_custom_call.1} parent=1 // pred_region
      %174 = dma.done [#allocation10], 512
    $region77: #{tpu_custom_call.1} parent=1 // pred_fallthru
      _
    // Predicated region
    $region78: #{tpu_custom_call.1} parent=1 // pred_check
      _
    $region79: #{tpu_custom_call.1} parent=1 // pred_check_branch
      %176 = sbr.rel (0) target = $region81
    $region80: #{tpu_custom_call.1} parent=1 // pred_region
      %177 = dma.done [#allocation13], 64
    $region81: #{tpu_custom_call.1} parent=1 // pred_fallthru
      _
    // Predicated region
    $region82: #{tpu_custom_call.1} parent=1 // pred_check
      _
    $region83: #{tpu_custom_call.1} parent=1 // pred_check_branch
      %179 = sbr.rel (0) target = $region85
    $region84: #{tpu_custom_call.1} parent=1 // pred_region
      %180 = dma.done [#allocation13], 1024
    $region85: #{tpu_custom_call.1} parent=1 // pred_fallthru
      _
    // Predicated region
    $region86: #{tpu_custom_call.1} parent=1 // pred_check
      _
    $region87: #{tpu_custom_call.1} parent=1 // pred_check_branch
      %182 = sbr.rel (0) target = $region89
    $region88: #{tpu_custom_call.1} parent=1 // pred_region
      %183 = dma.done [#allocation16], 1024
    $region89: #{tpu_custom_call.1} parent=1 // pred_fallthru
      _
    // Predicated region
    $region90: #{tpu_custom_call.1} parent=1 // pred_check
      _
    $region91: #{tpu_custom_call.1} parent=1 // pred_check_branch
      %185 = sbr.rel (0) target = $region93
    $region92: #{tpu_custom_call.1} parent=1 // pred_region
      %186 = dma.done [#allocation16], 1024
    $region93: #{tpu_custom_call.1} parent=1 // pred_fallthru
      _
    // Predicated region
    $region94: #{tpu_custom_call.1} parent=1 // pred_check
      _
    $region95: #{tpu_custom_call.1} parent=1 // pred_check_branch
      %188 = sbr.rel (0) target = $region97
    $region96: #{tpu_custom_call.1} parent=1 // pred_region
      %189 = dma.done [#allocation19], 1024
    $region97: #{tpu_custom_call.1} parent=1 // pred_fallthru
      _
    // Predicated region
    $region98: #{tpu_custom_call.1} parent=1 // pred_check
      _
    $region99: #{tpu_custom_call.1} parent=1 // pred_check_branch
      %191 = sbr.rel (0) target = $region101
    $region100: #{tpu_custom_call.1} parent=1 // pred_region
      %192 = dma.done [#allocation19], 1024
    $region101: #{tpu_custom_call.1} parent=1 // pred_fallthru
      _
    // Predicated region
    $region102: #{tpu_custom_call.1} parent=1 // pred_check
      _
    $region103: #{tpu_custom_call.1} parent=1 // pred_check_branch
      %194 = sbr.rel (0) target = $region105
    $region104: #{tpu_custom_call.1} parent=1 // pred_region
      %195 = dma.done [#allocation22], 16
    $region105: #{tpu_custom_call.1} parent=1 // pred_fallthru
      _
    // Predicated region
    $region106: #{tpu_custom_call.1} parent=1 // pred_check
      _
    $region107: #{tpu_custom_call.1} parent=1 // pred_check_branch
      %197 = sbr.rel (0) target = $region109
    $region108: #{tpu_custom_call.1} parent=1 // pred_region
      %198 = dma.done [#allocation22], 16
    $region109: #{tpu_custom_call.1} parent=1 // pred_fallthru
      _
    // Predicated region
    $region110: #{tpu_custom_call.1} parent=1 // pred_check
      _
    $region111: #{tpu_custom_call.1} parent=1 // pred_check_branch
      %200 = sbr.rel (0) target = $region113
    $region112: #{tpu_custom_call.1} parent=1 // pred_region
      %201 = dma.done [#allocation25], 16
    $region113: #{tpu_custom_call.1} parent=1 // pred_fallthru
      _
    // Predicated region
    $region114: #{tpu_custom_call.1} parent=1 // pred_check
      _
    $region115: #{tpu_custom_call.1} parent=1 // pred_check_branch
      %203 = sbr.rel (0) target = $region117
    $region116: #{tpu_custom_call.1} parent=1 // pred_region
      %204 = dma.done [#allocation25], 16
    $region117: #{tpu_custom_call.1} parent=1 // pred_fallthru
      _
    // Predicated region
    $region118: #{tpu_custom_call.1} parent=1 // pred_check
      _
    $region119: #{tpu_custom_call.1} parent=1 // pred_check_branch
      %207 = sbr.rel target = $region121
    $region120: #{tpu_custom_call.1} parent=1 // pred_region
      %208 = sst [smem:[#allocation30]] [#allocation29]
      %209 = sst [smem:[#allocation31]] [#allocation28]
    $region121: #{tpu_custom_call.1} parent=1 // pred_fallthru
      _
    %211 = shalt.err (0)
    %s213 = sshll.u32 [#allocation2], 4
    %s214 = int_to_ptr.vmem [resolvable:$true] %s213
    %216 = dma.hbm_to_vmem [thread:$0]  %s18, 2048, %s214, [#allocation8]
    %s217 = scalar_lea.sflag [#allocation8], 1
    %p219 = scmp.lt.u32.totalorder 64, 8
    %p220 = pneg %p219
    // Predicated region
    $region122: #{tpu_custom_call.1} parent=1 // pred_check
      _
    $region123: #{tpu_custom_call.1} parent=1 // pred_check_branch
      %222 = sbr.rel (%p219) target = $region125
    $region124: #{tpu_custom_call.1} parent=1 // pred_region
      %s237 = sand.u32 64, 7
      %p238 = scmp.eq.s32.totalorder %s237, 0
      // Predicated region
      $region137: #{tpu_custom_call.1} parent=124 // pred_check
        %p239 = pneg %p238
      $region138: #{tpu_custom_call.1} parent=124 // pred_check_branch
        %241 = sbr.rel (%p239) target = $region140
      $region139: #{tpu_custom_call.1} parent=124 // pred_region
        loop: start=0, step=1, limit=1
        $region141: #{tpu_custom_call.1} parent=139 // loop_pre_header
          _
        $region142: #{tpu_custom_call.1} parent=139 // loop_header
          %s243 = sphi 0, %s247
          %p244 = scmp.ge.s32.totalorder %s243, 1
          %s248 = sphi %s19, %s19
          %s249 = sphi [#allocation3], [#allocation3]
        $region143: #{tpu_custom_call.1} parent=139 // loop_header_branch
          %246 = sbr.rel (%p244) target = $region147
        $region144: #{tpu_custom_call.1} parent=139 // loop_body
          %v250 = vld [vmem:[%s248] sm:$0xff]
          %251 = vst [vmem:[%s249] sm:$0xff] %v250
          %v252 = vld [vmem:[%s248 + $0x8] sm:$0xff]
          %253 = vst [vmem:[%s249 + $0x8] sm:$0xff] %v252
          %v254 = vld [vmem:[%s248 + $0x10] sm:$0xff]
          %255 = vst [vmem:[%s249 + $0x10] sm:$0xff] %v254
          %v256 = vld [vmem:[%s248 + $0x18] sm:$0xff]
          %257 = vst [vmem:[%s249 + $0x18] sm:$0xff] %v256
          %v258 = vld [vmem:[%s248 + $0x20] sm:$0xff]
          %259 = vst [vmem:[%s249 + $0x20] sm:$0xff] %v258
          %v260 = vld [vmem:[%s248 + $0x28] sm:$0xff]
          %261 = vst [vmem:[%s249 + $0x28] sm:$0xff] %v260
          %v262 = vld [vmem:[%s248 + $0x30] sm:$0xff]
          %263 = vst [vmem:[%s249 + $0x30] sm:$0xff] %v262
          %v264 = vld [vmem:[%s248 + $0x38] sm:$0xff]
          %265 = vst [vmem:[%s249 + $0x38] sm:$0xff] %v264
        $region145: #{tpu_custom_call.1} parent=139 // loop_footer
          %s247 = sadd.s32 1, %s243
        $region146: #{tpu_custom_call.1} parent=139 // loop_footer_branch
          %242 = sbr.rel target = $region142
        $region147: #{tpu_custom_call.1} parent=139 // loop_exit
          _
      $region140: #{tpu_custom_call.1} parent=124 // pred_fallthru
        _
      %p266 = pneg %p238
      // Predicated region
      $region148: #{tpu_custom_call.1} parent=124 // pred_check
        _
      $region149: #{tpu_custom_call.1} parent=124 // pred_check_branch
        %268 = sbr.rel (%p238) target = $region151
      $region150: #{tpu_custom_call.1} parent=124 // pred_region
        %s269 = sand.u32 64, 7
      $region151: #{tpu_custom_call.1} parent=124 // pred_fallthru
        _
    $region125: #{tpu_custom_call.1} parent=1 // pred_fallthru
      _
    // Predicated region
    $region126: #{tpu_custom_call.1} parent=1 // pred_check
      %p223 = pneg %p219
    $region127: #{tpu_custom_call.1} parent=1 // pred_check_branch
      %225 = sbr.rel (%p223) target = $region129
    $region128: #{tpu_custom_call.1} parent=1 // pred_region
      %s226 = sshllo.u32 0, 64
      loop: start=0, step=1, limit=1
      $region130: #{tpu_custom_call.1} parent=128 // loop_pre_header
        _
      $region131: #{tpu_custom_call.1} parent=128 // loop_header
        %s228 = sphi 0, %s232
        %p229 = scmp.ge.s32.totalorder %s228, 1
        %s233 = sphi %s19, %s19
        %s234 = sphi [#allocation3], [#allocation3]
      $region132: #{tpu_custom_call.1} parent=128 // loop_header_branch
        %231 = sbr.rel (%p229) target = $region136
      $region133: #{tpu_custom_call.1} parent=128 // loop_body
        %v235 = vld [vmem:[%s233] sm:%s226]
        %236 = vst [vmem:[%s234] sm:%s226] %v235
      $region134: #{tpu_custom_call.1} parent=128 // loop_footer
        %s232 = sadd.s32 1, %s228
      $region135: #{tpu_custom_call.1} parent=128 // loop_footer_branch
        %227 = sbr.rel target = $region131
      $region136: #{tpu_custom_call.1} parent=128 // loop_exit
        _
    $region129: #{tpu_custom_call.1} parent=1 // pred_fallthru
      _
    // Predicated region
    $region152: #{tpu_custom_call.1} parent=1 // pred_check
      _
    $region153: #{tpu_custom_call.1} parent=1 // pred_check_branch
      %272 = sbr.rel (0) target = $region155
    $region154: #{tpu_custom_call.1} parent=1 // pred_region
      %273 = vsyncadd %s217, 1024
    $region155: #{tpu_custom_call.1} parent=1 // pred_fallthru
      _
    %s274 = scalar_lea.sflag [#allocation8], 2
    // Predicated region
    $region156: #{tpu_custom_call.1} parent=1 // pred_check
      _
    $region157: #{tpu_custom_call.1} parent=1 // pred_check_branch
      %276 = sbr.rel target = $region159
    $region158: #{tpu_custom_call.1} parent=1 // pred_region
      %277 = sst [smem:[#allocation30]] [#allocation34]
      %278 = sst [smem:[#allocation31]] [#allocation33]
    $region159: #{tpu_custom_call.1} parent=1 // pred_fallthru
      _
    %280 = shalt.err (0)
    %s282 = sshll.u32 [#allocation4], 4
    %s283 = int_to_ptr.vmem [resolvable:$true] %s282
    %285 = dma.hbm_to_vmem [thread:$0]  %s20, 1024, %s283, %s274
    %s286 = scalar_lea.sflag [#allocation8], 3
    // Predicated region
    $region160: #{tpu_custom_call.1} parent=1 // pred_check
      _
    $region161: #{tpu_custom_call.1} parent=1 // pred_check_branch
      %288 = sbr.rel target = $region163
    $region162: #{tpu_custom_call.1} parent=1 // pred_region
      %289 = sst [smem:[#allocation30]] [#allocation36]
      %290 = sst [smem:[#allocation31]] [#allocation35]
    $region163: #{tpu_custom_call.1} parent=1 // pred_fallthru
      _
    %292 = shalt.err (0)
    %s294 = sshll.u32 [#allocation5], 4
    %s295 = int_to_ptr.vmem [resolvable:$true] %s294
    %297 = dma.hbm_to_vmem [thread:$0]  %s21, 1024, %s295, %s286
    %s298 = scalar_lea.sflag [#allocation8], 4
    // Predicated region
    $region164: #{tpu_custom_call.1} parent=1 // pred_check
      _
    $region165: #{tpu_custom_call.1} parent=1 // pred_check_branch
      %300 = sbr.rel target = $region167
    $region166: #{tpu_custom_call.1} parent=1 // pred_region
      %301 = sst [smem:[#allocation30]] [#allocation38]
      %302 = sst [smem:[#allocation31]] [#allocation37]
    $region167: #{tpu_custom_call.1} parent=1 // pred_fallthru
      _
    %304 = shalt.err (0)
    %s306 = sshll.u32 [#allocation6], 4
    %s307 = int_to_ptr.vmem [resolvable:$true] %s306
    %309 = dma.hbm_to_vmem [thread:$0]  %s22, 1024, %s307, %s298
    %s310 = scalar_lea.sflag [#allocation8], 5
    // Predicated region
    $region168: #{tpu_custom_call.1} parent=1 // pred_check
      _
    $region169: #{tpu_custom_call.1} parent=1 // pred_check_branch
      %312 = sbr.rel target = $region171
    $region170: #{tpu_custom_call.1} parent=1 // pred_region
      %313 = sst [smem:[#allocation30]] [#allocation40]
      %314 = sst [smem:[#allocation31]] [#allocation39]
    $region171: #{tpu_custom_call.1} parent=1 // pred_fallthru
      _
    %316 = shalt.err (0)
    %s318 = sshll.u32 [#allocation7], 4
    %s319 = int_to_ptr.vmem [resolvable:$true] %s318
    %321 = dma.hbm_to_vmem [thread:$0]  %s23, 1024, %s319, %s310
    %v322 = vld [vmem:[#allocation9] sm:$0xf]
    %v323 = vld [vmem:[#allocation9 + $0x4] sm:$0xf]
    %v324 = vld [vmem:[#allocation9 + $0x8] sm:$0xf]
    %v325 = vld [vmem:[#allocation9 + $0xc] sm:$0xf]
    %v326 = vld [vmem:[#allocation9 + $0x10] sm:$0xf]
    %v327 = vld [vmem:[#allocation9 + $0x14] sm:$0xf]
    %v328 = vld [vmem:[#allocation9 + $0x18] sm:$0xf]
    %v329 = vld [vmem:[#allocation9 + $0x1c] sm:$0xf]
    %v330 = vld [vmem:[#allocation14] sm:$0xf]
    %v331 = vld [vmem:[#allocation14 + $0x4] sm:$0xf]
    %v332 = vld [vmem:[#allocation14 + $0x8] sm:$0xf]
    %v333 = vld [vmem:[#allocation14 + $0xc] sm:$0xf]
    %v334 = vld [vmem:[#allocation14 + $0x10] sm:$0xf]
    %v335 = vld [vmem:[#allocation14 + $0x14] sm:$0xf]
    %v336 = vld [vmem:[#allocation14 + $0x18] sm:$0xf]
    %v337 = vld [vmem:[#allocation14 + $0x1c] sm:$0xf]
    %v338 = vld [vmem:[#allocation14 + $0x20] sm:$0xf]
    %v339 = vld [vmem:[#allocation14 + $0x24] sm:$0xf]
    %v340 = vld [vmem:[#allocation14 + $0x28] sm:$0xf]
    %v341 = vld [vmem:[#allocation14 + $0x2c] sm:$0xf]
    %v342 = vld [vmem:[#allocation14 + $0x30] sm:$0xf]
    %v343 = vld [vmem:[#allocation14 + $0x34] sm:$0xf]
    %v344 = vld [vmem:[#allocation14 + $0x38] sm:$0xf]
    %v345 = vld [vmem:[#allocation14 + $0x3c] sm:$0xf]
    %v346 = vld [vmem:[%s4] sm:$0x1]
    %v348 = vlaneseq
    %v349 = vshrl.u32 %v348, 7
    %v350 = vsub.s32 0, %v349
    %v351 = vrot.slane %v346, %v350
    %v361 = vunpack.c.l.b16 %v322
    %v362 = vunpack.c.l.b16 %v323
    %v363 = vunpack.c.l.b16 %v324
    %v364 = vunpack.c.l.b16 %v325
    %v365 = vunpack.c.l.b16 %v326
    %v366 = vunpack.c.l.b16 %v327
    %v367 = vunpack.c.l.b16 %v328
    %v368 = vunpack.c.l.b16 %v329
    %v369 = vpack.c.b16 %v362, %v361
    %v370 = vpack.c.b16 %v364, %v363
    %v371 = vpack.c.b16 %v366, %v365
    %v372 = vpack.c.b16 %v368, %v367
    %v393 = vunpack.c.l.b16 %v330
    %v394 = vunpack.c.l.b16 %v331
    %v395 = vunpack.c.l.b16 %v332
    %v396 = vunpack.c.l.b16 %v333
    %v397 = vunpack.c.l.b16 %v334
    %v398 = vunpack.c.l.b16 %v335
    %v399 = vunpack.c.l.b16 %v336
    %v400 = vunpack.c.l.b16 %v337
    %v401 = vunpack.c.l.b16 %v338
    %v402 = vunpack.c.l.b16 %v339
    %v403 = vunpack.c.l.b16 %v340
    %v404 = vunpack.c.l.b16 %v341
    %v405 = vunpack.c.l.b16 %v342
    %v406 = vunpack.c.l.b16 %v343
    %v407 = vunpack.c.l.b16 %v344
    %v408 = vunpack.c.l.b16 %v345
    %v409 = vpack.c.b16 %v394, %v393
    %v410 = vpack.c.b16 %v396, %v395
    %v411 = vpack.c.b16 %v398, %v397
    %v412 = vpack.c.b16 %v400, %v399
    %v413 = vpack.c.b16 %v402, %v401
    %v414 = vpack.c.b16 %v404, %v403
    %v415 = vpack.c.b16 %v406, %v405
    %v416 = vpack.c.b16 %v408, %v407
    %425 = vmatprep.subr.bf16.mxu0 0
    %426 = vmatpush1.bf16.msra.mxu0 %v409
    %427 = vmatprep.subr.bf16.mxu0 0
    %428 = vmatpush1.bf16.msra.mxu0 %v410
    %429 = vmatprep.subr.bf16.mxu0 0
    %430 = vmatpush1.bf16.msra.mxu0 %v411
    %431 = vmatprep.subr.bf16.mxu0 0
    %432 = vmatpush1.bf16.msra.mxu0 %v412
    %433 = vmatprep.subr.bf16.mxu0 0
    %434 = vmatpush1.bf16.msra.mxu0 %v413
    %435 = vmatprep.subr.bf16.mxu0 0
    %436 = vmatpush1.bf16.msra.mxu0 %v414
    %437 = vmatprep.subr.bf16.mxu0 0
    %438 = vmatpush1.bf16.msra.mxu0 %v415
    %439 = vmatprep.subr.bf16.mxu0 0
    %440 = vmatpush1.bf16.msra.mxu0 %v416
    %441 = vmatprep.subr.bf16.mxu0 0
    %442 = vmatpush1.bf16.msra.mxu0 0
    %443 = vmatprep.subr.bf16.mxu0 0
    %444 = vmatpush1.bf16.msra.mxu0 0
    %445 = vmatprep.subr.bf16.mxu0 0
    %446 = vmatpush1.bf16.msra.mxu0 0
    %447 = vmatprep.subr.bf16.mxu0 0
    %448 = vmatpush1.bf16.msra.mxu0 0
    %449 = vmatprep.subr.bf16.mxu0 0
    %450 = vmatpush1.bf16.msra.mxu0 0
    %451 = vmatprep.subr.bf16.mxu0 0
    %452 = vmatpush1.bf16.msra.mxu0 0
    %453 = vmatprep.subr.bf16.mxu0 0
    %454 = vmatpush1.bf16.msra.mxu0 0
    %455 = vmatprep.subr.bf16.mxu0 0
    %456 = vmatpush1.bf16.msra.mxu0 0
    %457 = vmatprep.mubr.bf16.mxu0 0
    %458 = vmatmul.mubr.bf16.gmra.mrb[0].mxu0 %v369
    %v459 = vpop.f32.mrb[0].mxu0
    %v460 = vadd.f32 %v351, %v459
    %v461 = vpop.f32.mrb[0].mxu0
    %v462 = vpop.f32.mrb[0].mxu0
    %v463 = vadd.f32 %v351, %v462
    %v464 = vpop.f32.mrb[0].mxu0
    %465 = vmatprep.mubr.bf16.mxu0 0
    %466 = vmatmul.mubr.bf16.gmra.mrb[0].mxu0 %v370
    %v467 = vpop.f32.mrb[0].mxu0
    %v468 = vadd.f32 %v351, %v467
    %v469 = vpop.f32.mrb[0].mxu0
    %v470 = vpop.f32.mrb[0].mxu0
    %v471 = vadd.f32 %v351, %v470
    %v472 = vpop.f32.mrb[0].mxu0
    %473 = vmatprep.mubr.bf16.mxu0 0
    %474 = vmatmul.mubr.bf16.gmra.mrb[0].mxu0 %v371
    %v475 = vpop.f32.mrb[0].mxu0
    %v476 = vadd.f32 %v351, %v475
    %v477 = vpop.f32.mrb[0].mxu0
    %v478 = vpop.f32.mrb[0].mxu0
    %v479 = vadd.f32 %v351, %v478
    %v480 = vpop.f32.mrb[0].mxu0
    %481 = vmatprep.mubr.bf16.mxu0 0
    %482 = vmatmul.mubr.bf16.gmra.mrb[0].mxu0 %v372
    %v483 = vpop.f32.mrb[0].mxu0
    %v484 = vadd.f32 %v351, %v483
    %v485 = vpop.f32.mrb[0].mxu0
    %v486 = vpop.f32.mrb[0].mxu0
    %v487 = vadd.f32 %v351, %v486
    %v488 = vpop.f32.mrb[0].mxu0
    %489 = vdwg.mxu0
    %v490 = vld [vmem:[%s8] sm:$0x1]
    %v492 = vlaneseq
    %v493 = vshrl.u32 %v492, 7
    %v494 = vsub.s32 0, %v493
    %v495 = vrot.slane %v490, %v494
    %v497 = vld [vmem:[%s5] sm:$0x1]
    %v499 = vlaneseq
    %v500 = vshrl.u32 %v499, 7
    %v501 = vsub.s32 0, %v500
    %v502 = vrot.slane %v497, %v501
    %v504 = vld [vmem:[%s9] sm:$0x1]
    %v506 = vlaneseq
    %v507 = vshrl.u32 %v506, 7
    %v508 = vsub.s32 0, %v507
    %v509 = vrot.slane %v504, %v508
    %v511 = vld [vmem:[#allocation15] sm:$0xf]
    %v512 = vld [vmem:[#allocation15 + $0x4] sm:$0xf]
    %v513 = vld [vmem:[#allocation15 + $0x8] sm:$0xf]
    %v514 = vld [vmem:[#allocation15 + $0xc] sm:$0xf]
    %v515 = vld [vmem:[#allocation15 + $0x10] sm:$0xf]
    %v516 = vld [vmem:[#allocation15 + $0x14] sm:$0xf]
    %v517 = vld [vmem:[#allocation15 + $0x18] sm:$0xf]
    %v518 = vld [vmem:[#allocation15 + $0x1c] sm:$0xf]
    %v519 = vld [vmem:[#allocation15 + $0x20] sm:$0xf]
    %v520 = vld [vmem:[#allocation15 + $0x24] sm:$0xf]
    %v521 = vld [vmem:[#allocation15 + $0x28] sm:$0xf]
    %v522 = vld [vmem:[#allocation15 + $0x2c] sm:$0xf]
    %v523 = vld [vmem:[#allocation15 + $0x30] sm:$0xf]
    %v524 = vld [vmem:[#allocation15 + $0x34] sm:$0xf]
    %v525 = vld [vmem:[#allocation15 + $0x38] sm:$0xf]
    %v526 = vld [vmem:[#allocation15 + $0x3c] sm:$0xf]
    %v543 = vunpack.c.l.b16 %v511
    %v544 = vunpack.c.l.b16 %v512
    %v545 = vunpack.c.l.b16 %v513
    %v546 = vunpack.c.l.b16 %v514
    %v547 = vunpack.c.l.b16 %v515
    %v548 = vunpack.c.l.b16 %v516
    %v549 = vunpack.c.l.b16 %v517
    %v550 = vunpack.c.l.b16 %v518
    %v551 = vunpack.c.l.b16 %v519
    %v552 = vunpack.c.l.b16 %v520
    %v553 = vunpack.c.l.b16 %v521
    %v554 = vunpack.c.l.b16 %v522
    %v555 = vunpack.c.l.b16 %v523
    %v556 = vunpack.c.l.b16 %v524
    %v557 = vunpack.c.l.b16 %v525
    %v558 = vunpack.c.l.b16 %v526
    %v559 = vpack.c.b16 %v544, %v543
    %v560 = vpack.c.b16 %v546, %v545
    %v561 = vpack.c.b16 %v548, %v547
    %v562 = vpack.c.b16 %v550, %v549
    %v563 = vpack.c.b16 %v552, %v551
    %v564 = vpack.c.b16 %v554, %v553
    %v565 = vpack.c.b16 %v556, %v555
    %v566 = vpack.c.b16 %v558, %v557
    %575 = vmatprep.subr.bf16.mxu0 0
    %576 = vmatpush1.bf16.msra.mxu0 %v559
    %577 = vmatprep.subr.bf16.mxu0 0
    %578 = vmatpush1.bf16.msra.mxu0 %v560
    %579 = vmatprep.subr.bf16.mxu0 0
    %580 = vmatpush1.bf16.msra.mxu0 %v561
    %581 = vmatprep.subr.bf16.mxu0 0
    %582 = vmatpush1.bf16.msra.mxu0 %v562
    %583 = vmatprep.subr.bf16.mxu0 0
    %584 = vmatpush1.bf16.msra.mxu0 %v563
    %585 = vmatprep.subr.bf16.mxu0 0
    %586 = vmatpush1.bf16.msra.mxu0 %v564
    %587 = vmatprep.subr.bf16.mxu0 0
    %588 = vmatpush1.bf16.msra.mxu0 %v565
    %589 = vmatprep.subr.bf16.mxu0 0
    %590 = vmatpush1.bf16.msra.mxu0 %v566
    %591 = vmatprep.subr.bf16.mxu0 0
    %592 = vmatpush1.bf16.msra.mxu0 0
    %593 = vmatprep.subr.bf16.mxu0 0
    %594 = vmatpush1.bf16.msra.mxu0 0
    %595 = vmatprep.subr.bf16.mxu0 0
    %596 = vmatpush1.bf16.msra.mxu0 0
    %597 = vmatprep.subr.bf16.mxu0 0
    %598 = vmatpush1.bf16.msra.mxu0 0
    %599 = vmatprep.subr.bf16.mxu0 0
    %600 = vmatpush1.bf16.msra.mxu0 0
    %601 = vmatprep.subr.bf16.mxu0 0
    %602 = vmatpush1.bf16.msra.mxu0 0
    %603 = vmatprep.subr.bf16.mxu0 0
    %604 = vmatpush1.bf16.msra.mxu0 0
    %605 = vmatprep.subr.bf16.mxu0 0
    %606 = vmatpush1.bf16.msra.mxu0 0
    %607 = vmatprep.mubr.bf16.mxu0 0
    %608 = vmatmul.mubr.bf16.gmra.mrb[0].mxu0 0
    %v609 = vpop.f32.mrb[0].mxu0
    %v610 = vadd.f32 0.0, %v609
    %v611 = vpop.f32.mrb[0].mxu0
    %v612 = vpop.f32.mrb[0].mxu0
    %v613 = vpop.f32.mrb[0].mxu0
    %614 = vdwg.mxu0
    %v615 = vadd.f32 %v460, %v610
    %v616 = vxor.u32 %v615, 2147483648
    %v617 = vmul.f32 %v616, 1.442695
    %v618 = vpow.pop %v617
    %v619 = vadd.f32 %v618, 1.0
    %v620 = vrcp.pop %v619
    %v621 = vmul.f32 1.0, %v620
    %622 = vrot.lane.b32.xlu0 %v621, 32
    %v623 = vpop.permute.xlu0 %622
    %v624 = vadd.f32 %v610, %v502
    %v625 = vmul.f32 %v623, %v624
    %v626 = vadd.f32 %v460, %v625
    %v627 = vtanh.pop %v626
    %628 = vrot.lane.b32.xlu0 %v627, 64
    %v629 = vpop.permute.xlu0 %628
    %v630 = vsub.f32 1.0, %v621
    %v631 = vmul.f32 %v630, %v629
    %v632 = vmul.f32 %v621, 0.0
    %v633 = vadd.f32 %v631, %v632
    %v634 = vld [vmem:[#allocation17] sm:$0xf]
    %v635 = vld [vmem:[#allocation17 + $0x4] sm:$0xf]
    %v636 = vld [vmem:[#allocation17 + $0x8] sm:$0xf]
    %v637 = vld [vmem:[#allocation17 + $0xc] sm:$0xf]
    %v638 = vld [vmem:[#allocation17 + $0x10] sm:$0xf]
    %v639 = vld [vmem:[#allocation17 + $0x14] sm:$0xf]
    %v640 = vld [vmem:[#allocation17 + $0x18] sm:$0xf]
    %v641 = vld [vmem:[#allocation17 + $0x1c] sm:$0xf]
    %v642 = vld [vmem:[#allocation17 + $0x20] sm:$0xf]
    %v643 = vld [vmem:[#allocation17 + $0x24] sm:$0xf]
    %v644 = vld [vmem:[#allocation17 + $0x28] sm:$0xf]
    %v645 = vld [vmem:[#allocation17 + $0x2c] sm:$0xf]
    %v646 = vld [vmem:[#allocation17 + $0x30] sm:$0xf]
    %v647 = vld [vmem:[#allocation17 + $0x34] sm:$0xf]
    %v648 = vld [vmem:[#allocation17 + $0x38] sm:$0xf]
    %v649 = vld [vmem:[#allocation17 + $0x3c] sm:$0xf]
    %v650 = vpack.c.bf16 %v633, %v633
    %v667 = vunpack.c.l.b16 %v634
    %v668 = vunpack.c.l.b16 %v635
    %v669 = vunpack.c.l.b16 %v636
    %v670 = vunpack.c.l.b16 %v637
    %v671 = vunpack.c.l.b16 %v638
    %v672 = vunpack.c.l.b16 %v639
    %v673 = vunpack.c.l.b16 %v640
    %v674 = vunpack.c.l.b16 %v641
    %v675 = vunpack.c.l.b16 %v642
    %v676 = vunpack.c.l.b16 %v643
    %v677 = vunpack.c.l.b16 %v644
    %v678 = vunpack.c.l.b16 %v645
    %v679 = vunpack.c.l.b16 %v646
    %v680 = vunpack.c.l.b16 %v647
    %v681 = vunpack.c.l.b16 %v648
    %v682 = vunpack.c.l.b16 %v649
    %v683 = vpack.c.b16 %v668, %v667
    %v684 = vpack.c.b16 %v670, %v669
    %v685 = vpack.c.b16 %v672, %v671
    %v686 = vpack.c.b16 %v674, %v673
    %v687 = vpack.c.b16 %v676, %v675
    %v688 = vpack.c.b16 %v678, %v677
    %v689 = vpack.c.b16 %v680, %v679
    %v690 = vpack.c.b16 %v682, %v681
    %699 = vmatprep.subr.bf16.mxu0 0
    %700 = vmatpush1.bf16.msra.mxu0 %v683
    %701 = vmatprep.subr.bf16.mxu0 0
    %702 = vmatpush1.bf16.msra.mxu0 %v684
    %703 = vmatprep.subr.bf16.mxu0 0
    %704 = vmatpush1.bf16.msra.mxu0 %v685
    %705 = vmatprep.subr.bf16.mxu0 0
    %706 = vmatpush1.bf16.msra.mxu0 %v686
    %707 = vmatprep.subr.bf16.mxu0 0
    %708 = vmatpush1.bf16.msra.mxu0 %v687
    %709 = vmatprep.subr.bf16.mxu0 0
    %710 = vmatpush1.bf16.msra.mxu0 %v688
    %711 = vmatprep.subr.bf16.mxu0 0
    %712 = vmatpush1.bf16.msra.mxu0 %v689
    %713 = vmatprep.subr.bf16.mxu0 0
    %714 = vmatpush1.bf16.msra.mxu0 %v690
    %715 = vmatprep.subr.bf16.mxu0 0
    %716 = vmatpush1.bf16.msra.mxu0 0
    %717 = vmatprep.subr.bf16.mxu0 0
    %718 = vmatpush1.bf16.msra.mxu0 0
    %719 = vmatprep.subr.bf16.mxu0 0
    %720 = vmatpush1.bf16.msra.mxu0 0
    %721 = vmatprep.subr.bf16.mxu0 0
    %722 = vmatpush1.bf16.msra.mxu0 0
    %723 = vmatprep.subr.bf16.mxu0 0
    %724 = vmatpush1.bf16.msra.mxu0 0
    %725 = vmatprep.subr.bf16.mxu0 0
    %726 = vmatpush1.bf16.msra.mxu0 0
    %727 = vmatprep.subr.bf16.mxu0 0
    %728 = vmatpush1.bf16.msra.mxu0 0
    %729 = vmatprep.subr.bf16.mxu0 0
    %730 = vmatpush1.bf16.msra.mxu0 0
    %731 = vmatprep.mubr.bf16.mxu0 0
    %732 = vmatmul.mubr.bf16.gmra.mrb[0].mxu0 %v650
    %v733 = vpop.f32.mrb[0].mxu0
    %v734 = vadd.f32 %v495, %v733
    %v735 = vpop.f32.mrb[0].mxu0
    %v736 = vpop.f32.mrb[0].mxu0
    %v737 = vpop.f32.mrb[0].mxu0
    %738 = vdwg.mxu0
    %v739 = vld [vmem:[#allocation18] sm:$0xf]
    %v740 = vld [vmem:[#allocation18 + $0x4] sm:$0xf]
    %v741 = vld [vmem:[#allocation18 + $0x8] sm:$0xf]
    %v742 = vld [vmem:[#allocation18 + $0xc] sm:$0xf]
    %v743 = vld [vmem:[#allocation18 + $0x10] sm:$0xf]
    %v744 = vld [vmem:[#allocation18 + $0x14] sm:$0xf]
    %v745 = vld [vmem:[#allocation18 + $0x18] sm:$0xf]
    %v746 = vld [vmem:[#allocation18 + $0x1c] sm:$0xf]
    %v747 = vld [vmem:[#allocation18 + $0x20] sm:$0xf]
    %v748 = vld [vmem:[#allocation18 + $0x24] sm:$0xf]
    %v749 = vld [vmem:[#allocation18 + $0x28] sm:$0xf]
    %v750 = vld [vmem:[#allocation18 + $0x2c] sm:$0xf]
    %v751 = vld [vmem:[#allocation18 + $0x30] sm:$0xf]
    %v752 = vld [vmem:[#allocation18 + $0x34] sm:$0xf]
    %v753 = vld [vmem:[#allocation18 + $0x38] sm:$0xf]
    %v754 = vld [vmem:[#allocation18 + $0x3c] sm:$0xf]
    %v771 = vunpack.c.l.b16 %v739
    %v772 = vunpack.c.l.b16 %v740
    %v773 = vunpack.c.l.b16 %v741
    %v774 = vunpack.c.l.b16 %v742
    %v775 = vunpack.c.l.b16 %v743
    %v776 = vunpack.c.l.b16 %v744
    %v777 = vunpack.c.l.b16 %v745
    %v778 = vunpack.c.l.b16 %v746
    %v779 = vunpack.c.l.b16 %v747
    %v780 = vunpack.c.l.b16 %v748
    %v781 = vunpack.c.l.b16 %v749
    %v782 = vunpack.c.l.b16 %v750
    %v783 = vunpack.c.l.b16 %v751
    %v784 = vunpack.c.l.b16 %v752
    %v785 = vunpack.c.l.b16 %v753
    %v786 = vunpack.c.l.b16 %v754
    %v787 = vpack.c.b16 %v772, %v771
    %v788 = vpack.c.b16 %v774, %v773
    %v789 = vpack.c.b16 %v776, %v775
    %v790 = vpack.c.b16 %v778, %v777
    %v791 = vpack.c.b16 %v780, %v779
    %v792 = vpack.c.b16 %v782, %v781
    %v793 = vpack.c.b16 %v784, %v783
    %v794 = vpack.c.b16 %v786, %v785
    %803 = vmatprep.subr.bf16.mxu0 0
    %804 = vmatpush1.bf16.msra.mxu0 %v787
    %805 = vmatprep.subr.bf16.mxu0 0
    %806 = vmatpush1.bf16.msra.mxu0 %v788
    %807 = vmatprep.subr.bf16.mxu0 0
    %808 = vmatpush1.bf16.msra.mxu0 %v789
    %809 = vmatprep.subr.bf16.mxu0 0
    %810 = vmatpush1.bf16.msra.mxu0 %v790
    %811 = vmatprep.subr.bf16.mxu0 0
    %812 = vmatpush1.bf16.msra.mxu0 %v791
    %813 = vmatprep.subr.bf16.mxu0 0
    %814 = vmatpush1.bf16.msra.mxu0 %v792
    %815 = vmatprep.subr.bf16.mxu0 0
    %816 = vmatpush1.bf16.msra.mxu0 %v793
    %817 = vmatprep.subr.bf16.mxu0 0
    %818 = vmatpush1.bf16.msra.mxu0 %v794
    %819 = vmatprep.subr.bf16.mxu0 0
    %820 = vmatpush1.bf16.msra.mxu0 0
    %821 = vmatprep.subr.bf16.mxu0 0
    %822 = vmatpush1.bf16.msra.mxu0 0
    %823 = vmatprep.subr.bf16.mxu0 0
    %824 = vmatpush1.bf16.msra.mxu0 0
    %825 = vmatprep.subr.bf16.mxu0 0
    %826 = vmatpush1.bf16.msra.mxu0 0
    %827 = vmatprep.subr.bf16.mxu0 0
    %828 = vmatpush1.bf16.msra.mxu0 0
    %829 = vmatprep.subr.bf16.mxu0 0
    %830 = vmatpush1.bf16.msra.mxu0 0
    %831 = vmatprep.subr.bf16.mxu0 0
    %832 = vmatpush1.bf16.msra.mxu0 0
    %833 = vmatprep.subr.bf16.mxu0 0
    %834 = vmatpush1.bf16.msra.mxu0 0
    %835 = vmatprep.mubr.bf16.mxu0 0
    %836 = vmatmul.mubr.bf16.gmra.mrb[0].mxu0 0
    %v837 = vpop.f32.mrb[0].mxu0
    %v838 = vadd.f32 0.0, %v837
    %v839 = vpop.f32.mrb[0].mxu0
    %v840 = vpop.f32.mrb[0].mxu0
    %v841 = vpop.f32.mrb[0].mxu0
    %842 = vdwg.mxu0
    %v843 = vadd.f32 %v734, %v838
    %v844 = vxor.u32 %v843, 2147483648
    %v845 = vmul.f32 %v844, 1.442695
    %v846 = vpow.pop %v845
    %v847 = vadd.f32 %v846, 1.0
    %v848 = vrcp.pop %v847
    %v849 = vmul.f32 1.0, %v848
    %850 = vrot.lane.b32.xlu0 %v849, 32
    %v851 = vpop.permute.xlu0 %850
    %v852 = vadd.f32 %v838, %v509
    %v853 = vmul.f32 %v851, %v852
    %v854 = vadd.f32 %v734, %v853
    %v855 = vtanh.pop %v854
    %856 = vrot.lane.b32.xlu0 %v855, 64
    %v857 = vpop.permute.xlu0 %856
    %v858 = vsub.f32 1.0, %v849
    %v859 = vmul.f32 %v858, %v857
    %v860 = vmul.f32 %v849, 0.0
    %v861 = vadd.f32 %v859, %v860
    %862 = vmatprep.subr.bf16.mxu0 0
    %863 = vmatpush1.bf16.msra.mxu0 %v559
    %864 = vmatprep.subr.bf16.mxu0 0
    %865 = vmatpush1.bf16.msra.mxu0 %v560
    %866 = vmatprep.subr.bf16.mxu0 0
    %867 = vmatpush1.bf16.msra.mxu0 %v561
    %868 = vmatprep.subr.bf16.mxu0 0
    %869 = vmatpush1.bf16.msra.mxu0 %v562
    %870 = vmatprep.subr.bf16.mxu0 0
    %871 = vmatpush1.bf16.msra.mxu0 %v563
    %872 = vmatprep.subr.bf16.mxu0 0
    %873 = vmatpush1.bf16.msra.mxu0 %v564
    %874 = vmatprep.subr.bf16.mxu0 0
    %875 = vmatpush1.bf16.msra.mxu0 %v565
    %876 = vmatprep.subr.bf16.mxu0 0
    %877 = vmatpush1.bf16.msra.mxu0 %v566
    %878 = vmatprep.subr.bf16.mxu0 0
    %879 = vmatpush1.bf16.msra.mxu0 0
    %880 = vmatprep.subr.bf16.mxu0 0
    %881 = vmatpush1.bf16.msra.mxu0 0
    %882 = vmatprep.subr.bf16.mxu0 0
    %883 = vmatpush1.bf16.msra.mxu0 0
    %884 = vmatprep.subr.bf16.mxu0 0
    %885 = vmatpush1.bf16.msra.mxu0 0
    %886 = vmatprep.subr.bf16.mxu0 0
    %887 = vmatpush1.bf16.msra.mxu0 0
    %888 = vmatprep.subr.bf16.mxu0 0
    %889 = vmatpush1.bf16.msra.mxu0 0
    %890 = vmatprep.subr.bf16.mxu0 0
    %891 = vmatpush1.bf16.msra.mxu0 0
    %892 = vmatprep.subr.bf16.mxu0 0
    %893 = vmatpush1.bf16.msra.mxu0 0
    %894 = vmatprep.mubr.bf16.mxu0 0
    %895 = vmatmul.mubr.bf16.gmra.mrb[0].mxu0 %v650
    %v896 = vpop.f32.mrb[0].mxu0
    %v897 = vadd.f32 0.0, %v896
    %v898 = vpop.f32.mrb[0].mxu0
    %v899 = vpop.f32.mrb[0].mxu0
    %v900 = vpop.f32.mrb[0].mxu0
    %901 = vdwg.mxu0
    %v902 = vadd.f32 %v463, %v897
    %v903 = vxor.u32 %v902, 2147483648
    %v904 = vmul.f32 %v903, 1.442695
    %v905 = vpow.pop %v904
    %v906 = vadd.f32 %v905, 1.0
    %v907 = vrcp.pop %v906
    %v908 = vmul.f32 1.0, %v907
    %909 = vrot.lane.b32.xlu0 %v908, 32
    %v910 = vpop.permute.xlu0 %909
    %v911 = vadd.f32 %v897, %v502
    %v912 = vmul.f32 %v910, %v911
    %v913 = vadd.f32 %v463, %v912
    %v914 = vtanh.pop %v913
    %915 = vrot.lane.b32.xlu0 %v914, 64
    %v916 = vpop.permute.xlu0 %915
    %v917 = vsub.f32 1.0, %v908
    %v918 = vmul.f32 %v917, %v916
    %v919 = vmul.f32 %v908, %v633
    %v920 = vadd.f32 %v918, %v919
    %v921 = vpack.c.bf16 %v920, %v920
    %922 = vmatprep.subr.bf16.mxu0 0
    %923 = vmatpush1.bf16.msra.mxu0 %v683
    %924 = vmatprep.subr.bf16.mxu0 0
    %925 = vmatpush1.bf16.msra.mxu0 %v684
    %926 = vmatprep.subr.bf16.mxu0 0
    %927 = vmatpush1.bf16.msra.mxu0 %v685
    %928 = vmatprep.subr.bf16.mxu0 0
    %929 = vmatpush1.bf16.msra.mxu0 %v686
    %930 = vmatprep.subr.bf16.mxu0 0
    %931 = vmatpush1.bf16.msra.mxu0 %v687
    %932 = vmatprep.subr.bf16.mxu0 0
    %933 = vmatpush1.bf16.msra.mxu0 %v688
    %934 = vmatprep.subr.bf16.mxu0 0
    %935 = vmatpush1.bf16.msra.mxu0 %v689
    %936 = vmatprep.subr.bf16.mxu0 0
    %937 = vmatpush1.bf16.msra.mxu0 %v690
    %938 = vmatprep.subr.bf16.mxu0 0
    %939 = vmatpush1.bf16.msra.mxu0 0
    %940 = vmatprep.subr.bf16.mxu0 0
    %941 = vmatpush1.bf16.msra.mxu0 0
    %942 = vmatprep.subr.bf16.mxu0 0
    %943 = vmatpush1.bf16.msra.mxu0 0
    %944 = vmatprep.subr.bf16.mxu0 0
    %945 = vmatpush1.bf16.msra.mxu0 0
    %946 = vmatprep.subr.bf16.mxu0 0
    %947 = vmatpush1.bf16.msra.mxu0 0
    %948 = vmatprep.subr.bf16.mxu0 0
    %949 = vmatpush1.bf16.msra.mxu0 0
    %950 = vmatprep.subr.bf16.mxu0 0
    %951 = vmatpush1.bf16.msra.mxu0 0
    %952 = vmatprep.subr.bf16.mxu0 0
    %953 = vmatpush1.bf16.msra.mxu0 0
    %954 = vmatprep.mubr.bf16.mxu0 0
    %955 = vmatmul.mubr.bf16.gmra.mrb[0].mxu0 %v921
    %v956 = vpop.f32.mrb[0].mxu0
    %v957 = vadd.f32 %v495, %v956
    %v958 = vpop.f32.mrb[0].mxu0
    %v959 = vpop.f32.mrb[0].mxu0
    %v960 = vpop.f32.mrb[0].mxu0
    %961 = vdwg.mxu0
    %v962 = vpack.c.bf16 %v861, %v861
    %963 = vmatprep.subr.bf16.mxu0 0
    %964 = vmatpush1.bf16.msra.mxu0 %v787
    %965 = vmatprep.subr.bf16.mxu0 0
    %966 = vmatpush1.bf16.msra.mxu0 %v788
    %967 = vmatprep.subr.bf16.mxu0 0
    %968 = vmatpush1.bf16.msra.mxu0 %v789
    %969 = vmatprep.subr.bf16.mxu0 0
    %970 = vmatpush1.bf16.msra.mxu0 %v790
    %971 = vmatprep.subr.bf16.mxu0 0
    %972 = vmatpush1.bf16.msra.mxu0 %v791
    %973 = vmatprep.subr.bf16.mxu0 0
    %974 = vmatpush1.bf16.msra.mxu0 %v792
    %975 = vmatprep.subr.bf16.mxu0 0
    %976 = vmatpush1.bf16.msra.mxu0 %v793
    %977 = vmatprep.subr.bf16.mxu0 0
    %978 = vmatpush1.bf16.msra.mxu0 %v794
    %979 = vmatprep.subr.bf16.mxu0 0
    %980 = vmatpush1.bf16.msra.mxu0 0
    %981 = vmatprep.subr.bf16.mxu0 0
    %982 = vmatpush1.bf16.msra.mxu0 0
    %983 = vmatprep.subr.bf16.mxu0 0
    %984 = vmatpush1.bf16.msra.mxu0 0
    %985 = vmatprep.subr.bf16.mxu0 0
    %986 = vmatpush1.bf16.msra.mxu0 0
    %987 = vmatprep.subr.bf16.mxu0 0
    %988 = vmatpush1.bf16.msra.mxu0 0
    %989 = vmatprep.subr.bf16.mxu0 0
    %990 = vmatpush1.bf16.msra.mxu0 0
    %991 = vmatprep.subr.bf16.mxu0 0
    %992 = vmatpush1.bf16.msra.mxu0 0
    %993 = vmatprep.subr.bf16.mxu0 0
    %994 = vmatpush1.bf16.msra.mxu0 0
    %995 = vmatprep.mubr.bf16.mxu0 0
    %996 = vmatmul.mubr.bf16.gmra.mrb[0].mxu0 %v962
    %v997 = vpop.f32.mrb[0].mxu0
    %v998 = vadd.f32 0.0, %v997
    %v999 = vpop.f32.mrb[0].mxu0
    %v1000 = vpop.f32.mrb[0].mxu0
    %v1001 = vpop.f32.mrb[0].mxu0
    %1002 = vdwg.mxu0
    %v1003 = vadd.f32 %v957, %v998
    %v1004 = vxor.u32 %v1003, 2147483648
    %v1005 = vmul.f32 %v1004, 1.442695
    %v1006 = vpow.pop %v1005
    %v1007 = vadd.f32 %v1006, 1.0
    %v1008 = vrcp.pop %v1007
    %v1009 = vmul.f32 1.0, %v1008
    %1010 = vrot.lane.b32.xlu0 %v1009, 32
    %v1011 = vpop.permute.xlu0 %1010
    %v1012 = vadd.f32 %v998, %v509
    %v1013 = vmul.f32 %v1011, %v1012
    %v1014 = vadd.f32 %v957, %v1013
    %v1015 = vtanh.pop %v1014
    %1016 = vrot.lane.b32.xlu0 %v1015, 64
    %v1017 = vpop.permute.xlu0 %1016
    %v1018 = vsub.f32 1.0, %v1009
    %v1019 = vmul.f32 %v1018, %v1017
    %v1020 = vmul.f32 %v1009, %v861
    %v1021 = vadd.f32 %v1019, %v1020
    %1022 = vmatprep.subr.bf16.mxu0 0
    %1023 = vmatpush1.bf16.msra.mxu0 %v559
    %1024 = vmatprep.subr.bf16.mxu0 0
    %1025 = vmatpush1.bf16.msra.mxu0 %v560
    %1026 = vmatprep.subr.bf16.mxu0 0
    %1027 = vmatpush1.bf16.msra.mxu0 %v561
    %1028 = vmatprep.subr.bf16.mxu0 0
    %1029 = vmatpush1.bf16.msra.mxu0 %v562
    %1030 = vmatprep.subr.bf16.mxu0 0
    %1031 = vmatpush1.bf16.msra.mxu0 %v563
    %1032 = vmatprep.subr.bf16.mxu0 0
    %1033 = vmatpush1.bf16.msra.mxu0 %v564
    %1034 = vmatprep.subr.bf16.mxu0 0
    %1035 = vmatpush1.bf16.msra.mxu0 %v565
    %1036 = vmatprep.subr.bf16.mxu0 0
    %1037 = vmatpush1.bf16.msra.mxu0 %v566
    %1038 = vmatprep.subr.bf16.mxu0 0
    %1039 = vmatpush1.bf16.msra.mxu0 0
    %1040 = vmatprep.subr.bf16.mxu0 0
    %1041 = vmatpush1.bf16.msra.mxu0 0
    %1042 = vmatprep.subr.bf16.mxu0 0
    %1043 = vmatpush1.bf16.msra.mxu0 0
    %1044 = vmatprep.subr.bf16.mxu0 0
    %1045 = vmatpush1.bf16.msra.mxu0 0
    %1046 = vmatprep.subr.bf16.mxu0 0
    %1047 = vmatpush1.bf16.msra.mxu0 0
    %1048 = vmatprep.subr.bf16.mxu0 0
    %1049 = vmatpush1.bf16.msra.mxu0 0
    %1050 = vmatprep.subr.bf16.mxu0 0
    %1051 = vmatpush1.bf16.msra.mxu0 0
    %1052 = vmatprep.subr.bf16.mxu0 0
    %1053 = vmatpush1.bf16.msra.mxu0 0
    %1054 = vmatprep.mubr.bf16.mxu0 0
    %1055 = vmatmul.mubr.bf16.gmra.mrb[0].mxu0 %v921
    %v1056 = vpop.f32.mrb[0].mxu0
    %v1057 = vadd.f32 0.0, %v1056
    %v1058 = vpop.f32.mrb[0].mxu0
    %v1059 = vpop.f32.mrb[0].mxu0
    %v1060 = vpop.f32.mrb[0].mxu0
    %1061 = vdwg.mxu0
    %v1062 = vadd.f32 %v468, %v1057
    %v1063 = vxor.u32 %v1062, 2147483648
    %v1064 = vmul.f32 %v1063, 1.442695
    %v1065 = vpow.pop %v1064
    %v1066 = vadd.f32 %v1065, 1.0
    %v1067 = vrcp.pop %v1066
    %v1068 = vmul.f32 1.0, %v1067
    %1069 = vrot.lane.b32.xlu0 %v1068, 32
    %v1070 = vpop.permute.xlu0 %1069
    %v1071 = vadd.f32 %v1057, %v502
    %v1072 = vmul.f32 %v1070, %v1071
    %v1073 = vadd.f32 %v468, %v1072
    %v1074 = vtanh.pop %v1073
    %1075 = vrot.lane.b32.xlu0 %v1074, 64
    %v1076 = vpop.permute.xlu0 %1075
    %v1077 = vsub.f32 1.0, %v1068
    %v1078 = vmul.f32 %v1077, %v1076
    %v1079 = vmul.f32 %v1068, %v920
    %v1080 = vadd.f32 %v1078, %v1079
    %v1081 = vpack.c.bf16 %v1080, %v1080
    %1082 = vmatprep.subr.bf16.mxu0 0
    %1083 = vmatpush1.bf16.msra.mxu0 %v683
    %1084 = vmatprep.subr.bf16.mxu0 0
    %1085 = vmatpush1.bf16.msra.mxu0 %v684
    %1086 = vmatprep.subr.bf16.mxu0 0
    %1087 = vmatpush1.bf16.msra.mxu0 %v685
    %1088 = vmatprep.subr.bf16.mxu0 0
    %1089 = vmatpush1.bf16.msra.mxu0 %v686
    %1090 = vmatprep.subr.bf16.mxu0 0
    %1091 = vmatpush1.bf16.msra.mxu0 %v687
    %1092 = vmatprep.subr.bf16.mxu0 0
    %1093 = vmatpush1.bf16.msra.mxu0 %v688
    %1094 = vmatprep.subr.bf16.mxu0 0
    %1095 = vmatpush1.bf16.msra.mxu0 %v689
    %1096 = vmatprep.subr.bf16.mxu0 0
    %1097 = vmatpush1.bf16.msra.mxu0 %v690
    %1098 = vmatprep.subr.bf16.mxu0 0
    %1099 = vmatpush1.bf16.msra.mxu0 0
    %1100 = vmatprep.subr.bf16.mxu0 0
    %1101 = vmatpush1.bf16.msra.mxu0 0
    %1102 = vmatprep.subr.bf16.mxu0 0
    %1103 = vmatpush1.bf16.msra.mxu0 0
    %1104 = vmatprep.subr.bf16.mxu0 0
    %1105 = vmatpush1.bf16.msra.mxu0 0
    %1106 = vmatprep.subr.bf16.mxu0 0
    %1107 = vmatpush1.bf16.msra.mxu0 0
    %1108 = vmatprep.subr.bf16.mxu0 0
    %1109 = vmatpush1.bf16.msra.mxu0 0
    %1110 = vmatprep.subr.bf16.mxu0 0
    %1111 = vmatpush1.bf16.msra.mxu0 0
    %1112 = vmatprep.subr.bf16.mxu0 0
    %1113 = vmatpush1.bf16.msra.mxu0 0
    %1114 = vmatprep.mubr.bf16.mxu0 0
    %1115 = vmatmul.mubr.bf16.gmra.mrb[0].mxu0 %v1081
    %v1116 = vpop.f32.mrb[0].mxu0
    %v1117 = vadd.f32 %v495, %v1116
    %v1118 = vpop.f32.mrb[0].mxu0
    %v1119 = vpop.f32.mrb[0].mxu0
    %v1120 = vpop.f32.mrb[0].mxu0
    %1121 = vdwg.mxu0
    %v1122 = vpack.c.bf16 %v1021, %v1021
    %1123 = vmatprep.subr.bf16.mxu0 0
    %1124 = vmatpush1.bf16.msra.mxu0 %v787
    %1125 = vmatprep.subr.bf16.mxu0 0
    %1126 = vmatpush1.bf16.msra.mxu0 %v788
    %1127 = vmatprep.subr.bf16.mxu0 0
    %1128 = vmatpush1.bf16.msra.mxu0 %v789
    %1129 = vmatprep.subr.bf16.mxu0 0
    %1130 = vmatpush1.bf16.msra.mxu0 %v790
    %1131 = vmatprep.subr.bf16.mxu0 0
    %1132 = vmatpush1.bf16.msra.mxu0 %v791
    %1133 = vmatprep.subr.bf16.mxu0 0
    %1134 = vmatpush1.bf16.msra.mxu0 %v792
    %1135 = vmatprep.subr.bf16.mxu0 0
    %1136 = vmatpush1.bf16.msra.mxu0 %v793
    %1137 = vmatprep.subr.bf16.mxu0 0
    %1138 = vmatpush1.bf16.msra.mxu0 %v794
    %1139 = vmatprep.subr.bf16.mxu0 0
    %1140 = vmatpush1.bf16.msra.mxu0 0
    %1141 = vmatprep.subr.bf16.mxu0 0
    %1142 = vmatpush1.bf16.msra.mxu0 0
    %1143 = vmatprep.subr.bf16.mxu0 0
    %1144 = vmatpush1.bf16.msra.mxu0 0
    %1145 = vmatprep.subr.bf16.mxu0 0
    %1146 = vmatpush1.bf16.msra.mxu0 0
    %1147 = vmatprep.subr.bf16.mxu0 0
    %1148 = vmatpush1.bf16.msra.mxu0 0
    %1149 = vmatprep.subr.bf16.mxu0 0
    %1150 = vmatpush1.bf16.msra.mxu0 0
    %1151 = vmatprep.subr.bf16.mxu0 0
    %1152 = vmatpush1.bf16.msra.mxu0 0
    %1153 = vmatprep.subr.bf16.mxu0 0
    %1154 = vmatpush1.bf16.msra.mxu0 0
    %1155 = vmatprep.mubr.bf16.mxu0 0
    %1156 = vmatmul.mubr.bf16.gmra.mrb[0].mxu0 %v1122
    %v1157 = vpop.f32.mrb[0].mxu0
    %v1158 = vadd.f32 0.0, %v1157
    %v1159 = vpop.f32.mrb[0].mxu0
    %v1160 = vpop.f32.mrb[0].mxu0
    %v1161 = vpop.f32.mrb[0].mxu0
    %1162 = vdwg.mxu0
    %v1163 = vadd.f32 %v1117, %v1158
    %v1164 = vxor.u32 %v1163, 2147483648
    %v1165 = vmul.f32 %v1164, 1.442695
    %v1166 = vpow.pop %v1165
    %v1167 = vadd.f32 %v1166, 1.0
    %v1168 = vrcp.pop %v1167
    %v1169 = vmul.f32 1.0, %v1168
    %1170 = vrot.lane.b32.xlu0 %v1169, 32
    %v1171 = vpop.permute.xlu0 %1170
    %v1172 = vadd.f32 %v1158, %v509
    %v1173 = vmul.f32 %v1171, %v1172
    %v1174 = vadd.f32 %v1117, %v1173
    %v1175 = vtanh.pop %v1174
    %1176 = vrot.lane.b32.xlu0 %v1175, 64
    %v1177 = vpop.permute.xlu0 %1176
    %v1178 = vsub.f32 1.0, %v1169
    %v1179 = vmul.f32 %v1178, %v1177
    %v1180 = vmul.f32 %v1169, %v1021
    %v1181 = vadd.f32 %v1179, %v1180
    %1182 = vmatprep.subr.bf16.mxu0 0
    %1183 = vmatpush1.bf16.msra.mxu0 %v559
    %1184 = vmatprep.subr.bf16.mxu0 0
    %1185 = vmatpush1.bf16.msra.mxu0 %v560
    %1186 = vmatprep.subr.bf16.mxu0 0
    %1187 = vmatpush1.bf16.msra.mxu0 %v561
    %1188 = vmatprep.subr.bf16.mxu0 0
    %1189 = vmatpush1.bf16.msra.mxu0 %v562
    %1190 = vmatprep.subr.bf16.mxu0 0
    %1191 = vmatpush1.bf16.msra.mxu0 %v563
    %1192 = vmatprep.subr.bf16.mxu0 0
    %1193 = vmatpush1.bf16.msra.mxu0 %v564
    %1194 = vmatprep.subr.bf16.mxu0 0
    %1195 = vmatpush1.bf16.msra.mxu0 %v565
    %1196 = vmatprep.subr.bf16.mxu0 0
    %1197 = vmatpush1.bf16.msra.mxu0 %v566
    %1198 = vmatprep.subr.bf16.mxu0 0
    %1199 = vmatpush1.bf16.msra.mxu0 0
    %1200 = vmatprep.subr.bf16.mxu0 0
    %1201 = vmatpush1.bf16.msra.mxu0 0
    %1202 = vmatprep.subr.bf16.mxu0 0
    %1203 = vmatpush1.bf16.msra.mxu0 0
    %1204 = vmatprep.subr.bf16.mxu0 0
    %1205 = vmatpush1.bf16.msra.mxu0 0
    %1206 = vmatprep.subr.bf16.mxu0 0
    %1207 = vmatpush1.bf16.msra.mxu0 0
    %1208 = vmatprep.subr.bf16.mxu0 0
    %1209 = vmatpush1.bf16.msra.mxu0 0
    %1210 = vmatprep.subr.bf16.mxu0 0
    %1211 = vmatpush1.bf16.msra.mxu0 0
    %1212 = vmatprep.subr.bf16.mxu0 0
    %1213 = vmatpush1.bf16.msra.mxu0 0
    %1214 = vmatprep.mubr.bf16.mxu0 0
    %1215 = vmatmul.mubr.bf16.gmra.mrb[0].mxu0 %v1081
    %v1216 = vpop.f32.mrb[0].mxu0
    %v1217 = vadd.f32 0.0, %v1216
    %v1218 = vpop.f32.mrb[0].mxu0
    %v1219 = vpop.f32.mrb[0].mxu0
    %v1220 = vpop.f32.mrb[0].mxu0
    %1221 = vdwg.mxu0
    %v1222 = vadd.f32 %v471, %v1217
    %v1223 = vxor.u32 %v1222, 2147483648
    %v1224 = vmul.f32 %v1223, 1.442695
    %v1225 = vpow.pop %v1224
    %v1226 = vadd.f32 %v1225, 1.0
    %v1227 = vrcp.pop %v1226
    %v1228 = vmul.f32 1.0, %v1227
    %1229 = vrot.lane.b32.xlu0 %v1228, 32
    %v1230 = vpop.permute.xlu0 %1229
    %v1231 = vadd.f32 %v1217, %v502
    %v1232 = vmul.f32 %v1230, %v1231
    %v1233 = vadd.f32 %v471, %v1232
    %v1234 = vtanh.pop %v1233
    %1235 = vrot.lane.b32.xlu0 %v1234, 64
    %v1236 = vpop.permute.xlu0 %1235
    %v1237 = vsub.f32 1.0, %v1228
    %v1238 = vmul.f32 %v1237, %v1236
    %v1239 = vmul.f32 %v1228, %v1080
    %v1240 = vadd.f32 %v1238, %v1239
    %v1241 = vpack.c.bf16 %v1240, %v1240
    %1242 = vmatprep.subr.bf16.mxu0 0
    %1243 = vmatpush1.bf16.msra.mxu0 %v683
    %1244 = vmatprep.subr.bf16.mxu0 0
    %1245 = vmatpush1.bf16.msra.mxu0 %v684
    %1246 = vmatprep.subr.bf16.mxu0 0
    %1247 = vmatpush1.bf16.msra.mxu0 %v685
    %1248 = vmatprep.subr.bf16.mxu0 0
    %1249 = vmatpush1.bf16.msra.mxu0 %v686
    %1250 = vmatprep.subr.bf16.mxu0 0
    %1251 = vmatpush1.bf16.msra.mxu0 %v687
    %1252 = vmatprep.subr.bf16.mxu0 0
    %1253 = vmatpush1.bf16.msra.mxu0 %v688
    %1254 = vmatprep.subr.bf16.mxu0 0
    %1255 = vmatpush1.bf16.msra.mxu0 %v689
    %1256 = vmatprep.subr.bf16.mxu0 0
    %1257 = vmatpush1.bf16.msra.mxu0 %v690
    %1258 = vmatprep.subr.bf16.mxu0 0
    %1259 = vmatpush1.bf16.msra.mxu0 0
    %1260 = vmatprep.subr.bf16.mxu0 0
    %1261 = vmatpush1.bf16.msra.mxu0 0
    %1262 = vmatprep.subr.bf16.mxu0 0
    %1263 = vmatpush1.bf16.msra.mxu0 0
    %1264 = vmatprep.subr.bf16.mxu0 0
    %1265 = vmatpush1.bf16.msra.mxu0 0
    %1266 = vmatprep.subr.bf16.mxu0 0
    %1267 = vmatpush1.bf16.msra.mxu0 0
    %1268 = vmatprep.subr.bf16.mxu0 0
    %1269 = vmatpush1.bf16.msra.mxu0 0
    %1270 = vmatprep.subr.bf16.mxu0 0
    %1271 = vmatpush1.bf16.msra.mxu0 0
    %1272 = vmatprep.subr.bf16.mxu0 0
    %1273 = vmatpush1.bf16.msra.mxu0 0
    %1274 = vmatprep.mubr.bf16.mxu0 0
    %1275 = vmatmul.mubr.bf16.gmra.mrb[0].mxu0 %v1241
    %v1276 = vpop.f32.mrb[0].mxu0
    %v1277 = vadd.f32 %v495, %v1276
    %v1278 = vpop.f32.mrb[0].mxu0
    %v1279 = vpop.f32.mrb[0].mxu0
    %v1280 = vpop.f32.mrb[0].mxu0
    %1281 = vdwg.mxu0
    %v1282 = vpack.c.bf16 %v1181, %v1181
    %1283 = vmatprep.subr.bf16.mxu0 0
    %1284 = vmatpush1.bf16.msra.mxu0 %v787
    %1285 = vmatprep.subr.bf16.mxu0 0
    %1286 = vmatpush1.bf16.msra.mxu0 %v788
    %1287 = vmatprep.subr.bf16.mxu0 0
    %1288 = vmatpush1.bf16.msra.mxu0 %v789
    %1289 = vmatprep.subr.bf16.mxu0 0
    %1290 = vmatpush1.bf16.msra.mxu0 %v790
    %1291 = vmatprep.subr.bf16.mxu0 0
    %1292 = vmatpush1.bf16.msra.mxu0 %v791
    %1293 = vmatprep.subr.bf16.mxu0 0
    %1294 = vmatpush1.bf16.msra.mxu0 %v792
    %1295 = vmatprep.subr.bf16.mxu0 0
    %1296 = vmatpush1.bf16.msra.mxu0 %v793
    %1297 = vmatprep.subr.bf16.mxu0 0
    %1298 = vmatpush1.bf16.msra.mxu0 %v794
    %1299 = vmatprep.subr.bf16.mxu0 0
    %1300 = vmatpush1.bf16.msra.mxu0 0
    %1301 = vmatprep.subr.bf16.mxu0 0
    %1302 = vmatpush1.bf16.msra.mxu0 0
    %1303 = vmatprep.subr.bf16.mxu0 0
    %1304 = vmatpush1.bf16.msra.mxu0 0
    %1305 = vmatprep.subr.bf16.mxu0 0
    %1306 = vmatpush1.bf16.msra.mxu0 0
    %1307 = vmatprep.subr.bf16.mxu0 0
    %1308 = vmatpush1.bf16.msra.mxu0 0
    %1309 = vmatprep.subr.bf16.mxu0 0
    %1310 = vmatpush1.bf16.msra.mxu0 0
    %1311 = vmatprep.subr.bf16.mxu0 0
    %1312 = vmatpush1.bf16.msra.mxu0 0
    %1313 = vmatprep.subr.bf16.mxu0 0
    %1314 = vmatpush1.bf16.msra.mxu0 0
    %1315 = vmatprep.mubr.bf16.mxu0 0
    %1316 = vmatmul.mubr.bf16.gmra.mrb[0].mxu0 %v1282
    %v1317 = vpop.f32.mrb[0].mxu0
    %v1318 = vadd.f32 0.0, %v1317
    %v1319 = vpop.f32.mrb[0].mxu0
    %v1320 = vpop.f32.mrb[0].mxu0
    %v1321 = vpop.f32.mrb[0].mxu0
    %1322 = vdwg.mxu0
    %v1323 = vadd.f32 %v1277, %v1318
    %v1324 = vxor.u32 %v1323, 2147483648
    %v1325 = vmul.f32 %v1324, 1.442695
    %v1326 = vpow.pop %v1325
    %v1327 = vadd.f32 %v1326, 1.0
    %v1328 = vrcp.pop %v1327
    %v1329 = vmul.f32 1.0, %v1328
    %1330 = vrot.lane.b32.xlu0 %v1329, 32
    %v1331 = vpop.permute.xlu0 %1330
    %v1332 = vadd.f32 %v1318, %v509
    %v1333 = vmul.f32 %v1331, %v1332
    %v1334 = vadd.f32 %v1277, %v1333
    %v1335 = vtanh.pop %v1334
    %1336 = vrot.lane.b32.xlu0 %v1335, 64
    %v1337 = vpop.permute.xlu0 %1336
    %v1338 = vsub.f32 1.0, %v1329
    %v1339 = vmul.f32 %v1338, %v1337
    %v1340 = vmul.f32 %v1329, %v1181
    %v1341 = vadd.f32 %v1339, %v1340
    %1342 = vmatprep.subr.bf16.mxu0 0
    %1343 = vmatpush1.bf16.msra.mxu0 %v559
    %1344 = vmatprep.subr.bf16.mxu0 0
    %1345 = vmatpush1.bf16.msra.mxu0 %v560
    %1346 = vmatprep.subr.bf16.mxu0 0
    %1347 = vmatpush1.bf16.msra.mxu0 %v561
    %1348 = vmatprep.subr.bf16.mxu0 0
    %1349 = vmatpush1.bf16.msra.mxu0 %v562
    %1350 = vmatprep.subr.bf16.mxu0 0
    %1351 = vmatpush1.bf16.msra.mxu0 %v563
    %1352 = vmatprep.subr.bf16.mxu0 0
    %1353 = vmatpush1.bf16.msra.mxu0 %v564
    %1354 = vmatprep.subr.bf16.mxu0 0
    %1355 = vmatpush1.bf16.msra.mxu0 %v565
    %1356 = vmatprep.subr.bf16.mxu0 0
    %1357 = vmatpush1.bf16.msra.mxu0 %v566
    %1358 = vmatprep.subr.bf16.mxu0 0
    %1359 = vmatpush1.bf16.msra.mxu0 0
    %1360 = vmatprep.subr.bf16.mxu0 0
    %1361 = vmatpush1.bf16.msra.mxu0 0
    %1362 = vmatprep.subr.bf16.mxu0 0
    %1363 = vmatpush1.bf16.msra.mxu0 0
    %1364 = vmatprep.subr.bf16.mxu0 0
    %1365 = vmatpush1.bf16.msra.mxu0 0
    %1366 = vmatprep.subr.bf16.mxu0 0
    %1367 = vmatpush1.bf16.msra.mxu0 0
    %1368 = vmatprep.subr.bf16.mxu0 0
    %1369 = vmatpush1.bf16.msra.mxu0 0
    %1370 = vmatprep.subr.bf16.mxu0 0
    %1371 = vmatpush1.bf16.msra.mxu0 0
    %1372 = vmatprep.subr.bf16.mxu0 0
    %1373 = vmatpush1.bf16.msra.mxu0 0
    %1374 = vmatprep.mubr.bf16.mxu0 0
    %1375 = vmatmul.mubr.bf16.gmra.mrb[0].mxu0 %v1241
    %v1376 = vpop.f32.mrb[0].mxu0
    %v1377 = vadd.f32 0.0, %v1376
    %v1378 = vpop.f32.mrb[0].mxu0
    %v1379 = vpop.f32.mrb[0].mxu0
    %v1380 = vpop.f32.mrb[0].mxu0
    %1381 = vdwg.mxu0
    %v1382 = vadd.f32 %v476, %v1377
    %v1383 = vxor.u32 %v1382, 2147483648
    %v1384 = vmul.f32 %v1383, 1.442695
    %v1385 = vpow.pop %v1384
    %v1386 = vadd.f32 %v1385, 1.0
    %v1387 = vrcp.pop %v1386
    %v1388 = vmul.f32 1.0, %v1387
    %1389 = vrot.lane.b32.xlu0 %v1388, 32
    %v1390 = vpop.permute.xlu0 %1389
    %v1391 = vadd.f32 %v1377, %v502
    %v1392 = vmul.f32 %v1390, %v1391
    %v1393 = vadd.f32 %v476, %v1392
    %v1394 = vtanh.pop %v1393
    %1395 = vrot.lane.b32.xlu0 %v1394, 64
    %v1396 = vpop.permute.xlu0 %1395
    %v1397 = vsub.f32 1.0, %v1388
    %v1398 = vmul.f32 %v1397, %v1396
    %v1399 = vmul.f32 %v1388, %v1240
    %v1400 = vadd.f32 %v1398, %v1399
    %v1401 = vpack.c.bf16 %v1400, %v1400
    %1402 = vmatprep.subr.bf16.mxu0 0
    %1403 = vmatpush1.bf16.msra.mxu0 %v683
    %1404 = vmatprep.subr.bf16.mxu0 0
    %1405 = vmatpush1.bf16.msra.mxu0 %v684
    %1406 = vmatprep.subr.bf16.mxu0 0
    %1407 = vmatpush1.bf16.msra.mxu0 %v685
    %1408 = vmatprep.subr.bf16.mxu0 0
    %1409 = vmatpush1.bf16.msra.mxu0 %v686
    %1410 = vmatprep.subr.bf16.mxu0 0
    %1411 = vmatpush1.bf16.msra.mxu0 %v687
    %1412 = vmatprep.subr.bf16.mxu0 0
    %1413 = vmatpush1.bf16.msra.mxu0 %v688
    %1414 = vmatprep.subr.bf16.mxu0 0
    %1415 = vmatpush1.bf16.msra.mxu0 %v689
    %1416 = vmatprep.subr.bf16.mxu0 0
    %1417 = vmatpush1.bf16.msra.mxu0 %v690
    %1418 = vmatprep.subr.bf16.mxu0 0
    %1419 = vmatpush1.bf16.msra.mxu0 0
    %1420 = vmatprep.subr.bf16.mxu0 0
    %1421 = vmatpush1.bf16.msra.mxu0 0
    %1422 = vmatprep.subr.bf16.mxu0 0
    %1423 = vmatpush1.bf16.msra.mxu0 0
    %1424 = vmatprep.subr.bf16.mxu0 0
    %1425 = vmatpush1.bf16.msra.mxu0 0
    %1426 = vmatprep.subr.bf16.mxu0 0
    %1427 = vmatpush1.bf16.msra.mxu0 0
    %1428 = vmatprep.subr.bf16.mxu0 0
    %1429 = vmatpush1.bf16.msra.mxu0 0
    %1430 = vmatprep.subr.bf16.mxu0 0
    %1431 = vmatpush1.bf16.msra.mxu0 0
    %1432 = vmatprep.subr.bf16.mxu0 0
    %1433 = vmatpush1.bf16.msra.mxu0 0
    %1434 = vmatprep.mubr.bf16.mxu0 0
    %1435 = vmatmul.mubr.bf16.gmra.mrb[0].mxu0 %v1401
    %v1436 = vpop.f32.mrb[0].mxu0
    %v1437 = vadd.f32 %v495, %v1436
    %v1438 = vpop.f32.mrb[0].mxu0
    %v1439 = vpop.f32.mrb[0].mxu0
    %v1440 = vpop.f32.mrb[0].mxu0
    %1441 = vdwg.mxu0
    %v1442 = vpack.c.bf16 %v1341, %v1341
    %1443 = vmatprep.subr.bf16.mxu0 0
    %1444 = vmatpush1.bf16.msra.mxu0 %v787
    %1445 = vmatprep.subr.bf16.mxu0 0
    %1446 = vmatpush1.bf16.msra.mxu0 %v788
    %1447 = vmatprep.subr.bf16.mxu0 0
    %1448 = vmatpush1.bf16.msra.mxu0 %v789
    %1449 = vmatprep.subr.bf16.mxu0 0
    %1450 = vmatpush1.bf16.msra.mxu0 %v790
    %1451 = vmatprep.subr.bf16.mxu0 0
    %1452 = vmatpush1.bf16.msra.mxu0 %v791
    %1453 = vmatprep.subr.bf16.mxu0 0
    %1454 = vmatpush1.bf16.msra.mxu0 %v792
    %1455 = vmatprep.subr.bf16.mxu0 0
    %1456 = vmatpush1.bf16.msra.mxu0 %v793
    %1457 = vmatprep.subr.bf16.mxu0 0
    %1458 = vmatpush1.bf16.msra.mxu0 %v794
    %1459 = vmatprep.subr.bf16.mxu0 0
    %1460 = vmatpush1.bf16.msra.mxu0 0
    %1461 = vmatprep.subr.bf16.mxu0 0
    %1462 = vmatpush1.bf16.msra.mxu0 0
    %1463 = vmatprep.subr.bf16.mxu0 0
    %1464 = vmatpush1.bf16.msra.mxu0 0
    %1465 = vmatprep.subr.bf16.mxu0 0
    %1466 = vmatpush1.bf16.msra.mxu0 0
    %1467 = vmatprep.subr.bf16.mxu0 0
    %1468 = vmatpush1.bf16.msra.mxu0 0
    %1469 = vmatprep.subr.bf16.mxu0 0
    %1470 = vmatpush1.bf16.msra.mxu0 0
    %1471 = vmatprep.subr.bf16.mxu0 0
    %1472 = vmatpush1.bf16.msra.mxu0 0
    %1473 = vmatprep.subr.bf16.mxu0 0
    %1474 = vmatpush1.bf16.msra.mxu0 0
    %1475 = vmatprep.mubr.bf16.mxu0 0
    %1476 = vmatmul.mubr.bf16.gmra.mrb[0].mxu0 %v1442
    %v1477 = vpop.f32.mrb[0].mxu0
    %v1478 = vadd.f32 0.0, %v1477
    %v1479 = vpop.f32.mrb[0].mxu0
    %v1480 = vpop.f32.mrb[0].mxu0
    %v1481 = vpop.f32.mrb[0].mxu0
    %1482 = vdwg.mxu0
    %v1483 = vadd.f32 %v1437, %v1478
    %v1484 = vxor.u32 %v1483, 2147483648
    %v1485 = vmul.f32 %v1484, 1.442695
    %v1486 = vpow.pop %v1485
    %v1487 = vadd.f32 %v1486, 1.0
    %v1488 = vrcp.pop %v1487
    %v1489 = vmul.f32 1.0, %v1488
    %1490 = vrot.lane.b32.xlu0 %v1489, 32
    %v1491 = vpop.permute.xlu0 %1490
    %v1492 = vadd.f32 %v1478, %v509
    %v1493 = vmul.f32 %v1491, %v1492
    %v1494 = vadd.f32 %v1437, %v1493
    %v1495 = vtanh.pop %v1494
    %1496 = vrot.lane.b32.xlu0 %v1495, 64
    %v1497 = vpop.permute.xlu0 %1496
    %v1498 = vsub.f32 1.0, %v1489
    %v1499 = vmul.f32 %v1498, %v1497
    %v1500 = vmul.f32 %v1489, %v1341
    %v1501 = vadd.f32 %v1499, %v1500
    %1502 = vmatprep.subr.bf16.mxu0 0
    %1503 = vmatpush1.bf16.msra.mxu0 %v559
    %1504 = vmatprep.subr.bf16.mxu0 0
    %1505 = vmatpush1.bf16.msra.mxu0 %v560
    %1506 = vmatprep.subr.bf16.mxu0 0
    %1507 = vmatpush1.bf16.msra.mxu0 %v561
    %1508 = vmatprep.subr.bf16.mxu0 0
    %1509 = vmatpush1.bf16.msra.mxu0 %v562
    %1510 = vmatprep.subr.bf16.mxu0 0
    %1511 = vmatpush1.bf16.msra.mxu0 %v563
    %1512 = vmatprep.subr.bf16.mxu0 0
    %1513 = vmatpush1.bf16.msra.mxu0 %v564
    %1514 = vmatprep.subr.bf16.mxu0 0
    %1515 = vmatpush1.bf16.msra.mxu0 %v565
    %1516 = vmatprep.subr.bf16.mxu0 0
    %1517 = vmatpush1.bf16.msra.mxu0 %v566
    %1518 = vmatprep.subr.bf16.mxu0 0
    %1519 = vmatpush1.bf16.msra.mxu0 0
    %1520 = vmatprep.subr.bf16.mxu0 0
    %1521 = vmatpush1.bf16.msra.mxu0 0
    %1522 = vmatprep.subr.bf16.mxu0 0
    %1523 = vmatpush1.bf16.msra.mxu0 0
    %1524 = vmatprep.subr.bf16.mxu0 0
    %1525 = vmatpush1.bf16.msra.mxu0 0
    %1526 = vmatprep.subr.bf16.mxu0 0
    %1527 = vmatpush1.bf16.msra.mxu0 0
    %1528 = vmatprep.subr.bf16.mxu0 0
    %1529 = vmatpush1.bf16.msra.mxu0 0
    %1530 = vmatprep.subr.bf16.mxu0 0
    %1531 = vmatpush1.bf16.msra.mxu0 0
    %1532 = vmatprep.subr.bf16.mxu0 0
    %1533 = vmatpush1.bf16.msra.mxu0 0
    %1534 = vmatprep.mubr.bf16.mxu0 0
    %1535 = vmatmul.mubr.bf16.gmra.mrb[0].mxu0 %v1401
    %v1536 = vpop.f32.mrb[0].mxu0
    %v1537 = vadd.f32 0.0, %v1536
    %v1538 = vpop.f32.mrb[0].mxu0
    %v1539 = vpop.f32.mrb[0].mxu0
    %v1540 = vpop.f32.mrb[0].mxu0
    %1541 = vdwg.mxu0
    %v1542 = vadd.f32 %v479, %v1537
    %v1543 = vxor.u32 %v1542, 2147483648
    %v1544 = vmul.f32 %v1543, 1.442695
    %v1545 = vpow.pop %v1544
    %v1546 = vadd.f32 %v1545, 1.0
    %v1547 = vrcp.pop %v1546
    %v1548 = vmul.f32 1.0, %v1547
    %1549 = vrot.lane.b32.xlu0 %v1548, 32
    %v1550 = vpop.permute.xlu0 %1549
    %v1551 = vadd.f32 %v1537, %v502
    %v1552 = vmul.f32 %v1550, %v1551
    %v1553 = vadd.f32 %v479, %v1552
    %v1554 = vtanh.pop %v1553
    %1555 = vrot.lane.b32.xlu0 %v1554, 64
    %v1556 = vpop.permute.xlu0 %1555
    %v1557 = vsub.f32 1.0, %v1548
    %v1558 = vmul.f32 %v1557, %v1556
    %v1559 = vmul.f32 %v1548, %v1400
    %v1560 = vadd.f32 %v1558, %v1559
    %v1561 = vpack.c.bf16 %v1560, %v1560
    %1562 = vmatprep.subr.bf16.mxu0 0
    %1563 = vmatpush1.bf16.msra.mxu0 %v683
    %1564 = vmatprep.subr.bf16.mxu0 0
    %1565 = vmatpush1.bf16.msra.mxu0 %v684
    %1566 = vmatprep.subr.bf16.mxu0 0
    %1567 = vmatpush1.bf16.msra.mxu0 %v685
    %1568 = vmatprep.subr.bf16.mxu0 0
    %1569 = vmatpush1.bf16.msra.mxu0 %v686
    %1570 = vmatprep.subr.bf16.mxu0 0
    %1571 = vmatpush1.bf16.msra.mxu0 %v687
    %1572 = vmatprep.subr.bf16.mxu0 0
    %1573 = vmatpush1.bf16.msra.mxu0 %v688
    %1574 = vmatprep.subr.bf16.mxu0 0
    %1575 = vmatpush1.bf16.msra.mxu0 %v689
    %1576 = vmatprep.subr.bf16.mxu0 0
    %1577 = vmatpush1.bf16.msra.mxu0 %v690
    %1578 = vmatprep.subr.bf16.mxu0 0
    %1579 = vmatpush1.bf16.msra.mxu0 0
    %1580 = vmatprep.subr.bf16.mxu0 0
    %1581 = vmatpush1.bf16.msra.mxu0 0
    %1582 = vmatprep.subr.bf16.mxu0 0
    %1583 = vmatpush1.bf16.msra.mxu0 0
    %1584 = vmatprep.subr.bf16.mxu0 0
    %1585 = vmatpush1.bf16.msra.mxu0 0
    %1586 = vmatprep.subr.bf16.mxu0 0
    %1587 = vmatpush1.bf16.msra.mxu0 0
    %1588 = vmatprep.subr.bf16.mxu0 0
    %1589 = vmatpush1.bf16.msra.mxu0 0
    %1590 = vmatprep.subr.bf16.mxu0 0
    %1591 = vmatpush1.bf16.msra.mxu0 0
    %1592 = vmatprep.subr.bf16.mxu0 0
    %1593 = vmatpush1.bf16.msra.mxu0 0
    %1594 = vmatprep.mubr.bf16.mxu0 0
    %1595 = vmatmul.mubr.bf16.gmra.mrb[0].mxu0 %v1561
    %v1596 = vpop.f32.mrb[0].mxu0
    %v1597 = vadd.f32 %v495, %v1596
    %v1598 = vpop.f32.mrb[0].mxu0
    %v1599 = vpop.f32.mrb[0].mxu0
    %v1600 = vpop.f32.mrb[0].mxu0
    %1601 = vdwg.mxu0
    %v1602 = vpack.c.bf16 %v1501, %v1501
    %1603 = vmatprep.subr.bf16.mxu0 0
    %1604 = vmatpush1.bf16.msra.mxu0 %v787
    %1605 = vmatprep.subr.bf16.mxu0 0
    %1606 = vmatpush1.bf16.msra.mxu0 %v788
    %1607 = vmatprep.subr.bf16.mxu0 0
    %1608 = vmatpush1.bf16.msra.mxu0 %v789
    %1609 = vmatprep.subr.bf16.mxu0 0
    %1610 = vmatpush1.bf16.msra.mxu0 %v790
    %1611 = vmatprep.subr.bf16.mxu0 0
    %1612 = vmatpush1.bf16.msra.mxu0 %v791
    %1613 = vmatprep.subr.bf16.mxu0 0
    %1614 = vmatpush1.bf16.msra.mxu0 %v792
    %1615 = vmatprep.subr.bf16.mxu0 0
    %1616 = vmatpush1.bf16.msra.mxu0 %v793
    %1617 = vmatprep.subr.bf16.mxu0 0
    %1618 = vmatpush1.bf16.msra.mxu0 %v794
    %1619 = vmatprep.subr.bf16.mxu0 0
    %1620 = vmatpush1.bf16.msra.mxu0 0
    %1621 = vmatprep.subr.bf16.mxu0 0
    %1622 = vmatpush1.bf16.msra.mxu0 0
    %1623 = vmatprep.subr.bf16.mxu0 0
    %1624 = vmatpush1.bf16.msra.mxu0 0
    %1625 = vmatprep.subr.bf16.mxu0 0
    %1626 = vmatpush1.bf16.msra.mxu0 0
    %1627 = vmatprep.subr.bf16.mxu0 0
    %1628 = vmatpush1.bf16.msra.mxu0 0
    %1629 = vmatprep.subr.bf16.mxu0 0
    %1630 = vmatpush1.bf16.msra.mxu0 0
    %1631 = vmatprep.subr.bf16.mxu0 0
    %1632 = vmatpush1.bf16.msra.mxu0 0
    %1633 = vmatprep.subr.bf16.mxu0 0
    %1634 = vmatpush1.bf16.msra.mxu0 0
    %1635 = vmatprep.mubr.bf16.mxu0 0
    %1636 = vmatmul.mubr.bf16.gmra.mrb[0].mxu0 %v1602
    %v1637 = vpop.f32.mrb[0].mxu0
    %v1638 = vadd.f32 0.0, %v1637
    %v1639 = vpop.f32.mrb[0].mxu0
    %v1640 = vpop.f32.mrb[0].mxu0
    %v1641 = vpop.f32.mrb[0].mxu0
    %1642 = vdwg.mxu0
    %v1643 = vadd.f32 %v1597, %v1638
    %v1644 = vxor.u32 %v1643, 2147483648
    %v1645 = vmul.f32 %v1644, 1.442695
    %v1646 = vpow.pop %v1645
    %v1647 = vadd.f32 %v1646, 1.0
    %v1648 = vrcp.pop %v1647
    %v1649 = vmul.f32 1.0, %v1648
    %1650 = vrot.lane.b32.xlu0 %v1649, 32
    %v1651 = vpop.permute.xlu0 %1650
    %v1652 = vadd.f32 %v1638, %v509
    %v1653 = vmul.f32 %v1651, %v1652
    %v1654 = vadd.f32 %v1597, %v1653
    %v1655 = vtanh.pop %v1654
    %1656 = vrot.lane.b32.xlu0 %v1655, 64
    %v1657 = vpop.permute.xlu0 %1656
    %v1658 = vsub.f32 1.0, %v1649
    %v1659 = vmul.f32 %v1658, %v1657
    %v1660 = vmul.f32 %v1649, %v1501
    %v1661 = vadd.f32 %v1659, %v1660
    %1662 = vmatprep.subr.bf16.mxu0 0
    %1663 = vmatpush1.bf16.msra.mxu0 %v559
    %1664 = vmatprep.subr.bf16.mxu0 0
    %1665 = vmatpush1.bf16.msra.mxu0 %v560
    %1666 = vmatprep.subr.bf16.mxu0 0
    %1667 = vmatpush1.bf16.msra.mxu0 %v561
    %1668 = vmatprep.subr.bf16.mxu0 0
    %1669 = vmatpush1.bf16.msra.mxu0 %v562
    %1670 = vmatprep.subr.bf16.mxu0 0
    %1671 = vmatpush1.bf16.msra.mxu0 %v563
    %1672 = vmatprep.subr.bf16.mxu0 0
    %1673 = vmatpush1.bf16.msra.mxu0 %v564
    %1674 = vmatprep.subr.bf16.mxu0 0
    %1675 = vmatpush1.bf16.msra.mxu0 %v565
    %1676 = vmatprep.subr.bf16.mxu0 0
    %1677 = vmatpush1.bf16.msra.mxu0 %v566
    %1678 = vmatprep.subr.bf16.mxu0 0
    %1679 = vmatpush1.bf16.msra.mxu0 0
    %1680 = vmatprep.subr.bf16.mxu0 0
    %1681 = vmatpush1.bf16.msra.mxu0 0
    %1682 = vmatprep.subr.bf16.mxu0 0
    %1683 = vmatpush1.bf16.msra.mxu0 0
    %1684 = vmatprep.subr.bf16.mxu0 0
    %1685 = vmatpush1.bf16.msra.mxu0 0
    %1686 = vmatprep.subr.bf16.mxu0 0
    %1687 = vmatpush1.bf16.msra.mxu0 0
    %1688 = vmatprep.subr.bf16.mxu0 0
    %1689 = vmatpush1.bf16.msra.mxu0 0
    %1690 = vmatprep.subr.bf16.mxu0 0
    %1691 = vmatpush1.bf16.msra.mxu0 0
    %1692 = vmatprep.subr.bf16.mxu0 0
    %1693 = vmatpush1.bf16.msra.mxu0 0
    %1694 = vmatprep.mubr.bf16.mxu0 0
    %1695 = vmatmul.mubr.bf16.gmra.mrb[0].mxu0 %v1561
    %v1696 = vpop.f32.mrb[0].mxu0
    %v1697 = vadd.f32 0.0, %v1696
    %v1698 = vpop.f32.mrb[0].mxu0
    %v1699 = vpop.f32.mrb[0].mxu0
    %v1700 = vpop.f32.mrb[0].mxu0
    %1701 = vdwg.mxu0
    %v1702 = vadd.f32 %v484, %v1697
    %v1703 = vxor.u32 %v1702, 2147483648
    %v1704 = vmul.f32 %v1703, 1.442695
    %v1705 = vpow.pop %v1704
    %v1706 = vadd.f32 %v1705, 1.0
    %v1707 = vrcp.pop %v1706
    %v1708 = vmul.f32 1.0, %v1707
    %1709 = vrot.lane.b32.xlu0 %v1708, 32
    %v1710 = vpop.permute.xlu0 %1709
    %v1711 = vadd.f32 %v1697, %v502
    %v1712 = vmul.f32 %v1710, %v1711
    %v1713 = vadd.f32 %v484, %v1712
    %v1714 = vtanh.pop %v1713
    %1715 = vrot.lane.b32.xlu0 %v1714, 64
    %v1716 = vpop.permute.xlu0 %1715
    %v1717 = vsub.f32 1.0, %v1708
    %v1718 = vmul.f32 %v1717, %v1716
    %v1719 = vmul.f32 %v1708, %v1560
    %v1720 = vadd.f32 %v1718, %v1719
    %v1721 = vpack.c.bf16 %v1720, %v1720
    %1722 = vmatprep.subr.bf16.mxu0 0
    %1723 = vmatpush1.bf16.msra.mxu0 %v683
    %1724 = vmatprep.subr.bf16.mxu0 0
    %1725 = vmatpush1.bf16.msra.mxu0 %v684
    %1726 = vmatprep.subr.bf16.mxu0 0
    %1727 = vmatpush1.bf16.msra.mxu0 %v685
    %1728 = vmatprep.subr.bf16.mxu0 0
    %1729 = vmatpush1.bf16.msra.mxu0 %v686
    %1730 = vmatprep.subr.bf16.mxu0 0
    %1731 = vmatpush1.bf16.msra.mxu0 %v687
    %1732 = vmatprep.subr.bf16.mxu0 0
    %1733 = vmatpush1.bf16.msra.mxu0 %v688
    %1734 = vmatprep.subr.bf16.mxu0 0
    %1735 = vmatpush1.bf16.msra.mxu0 %v689
    %1736 = vmatprep.subr.bf16.mxu0 0
    %1737 = vmatpush1.bf16.msra.mxu0 %v690
    %1738 = vmatprep.subr.bf16.mxu0 0
    %1739 = vmatpush1.bf16.msra.mxu0 0
    %1740 = vmatprep.subr.bf16.mxu0 0
    %1741 = vmatpush1.bf16.msra.mxu0 0
    %1742 = vmatprep.subr.bf16.mxu0 0
    %1743 = vmatpush1.bf16.msra.mxu0 0
    %1744 = vmatprep.subr.bf16.mxu0 0
    %1745 = vmatpush1.bf16.msra.mxu0 0
    %1746 = vmatprep.subr.bf16.mxu0 0
    %1747 = vmatpush1.bf16.msra.mxu0 0
    %1748 = vmatprep.subr.bf16.mxu0 0
    %1749 = vmatpush1.bf16.msra.mxu0 0
    %1750 = vmatprep.subr.bf16.mxu0 0
    %1751 = vmatpush1.bf16.msra.mxu0 0
    %1752 = vmatprep.subr.bf16.mxu0 0
    %1753 = vmatpush1.bf16.msra.mxu0 0
    %1754 = vmatprep.mubr.bf16.mxu0 0
    %1755 = vmatmul.mubr.bf16.gmra.mrb[0].mxu0 %v1721
    %v1756 = vpop.f32.mrb[0].mxu0
    %v1757 = vadd.f32 %v495, %v1756
    %v1758 = vpop.f32.mrb[0].mxu0
    %v1759 = vpop.f32.mrb[0].mxu0
    %v1760 = vpop.f32.mrb[0].mxu0
    %1761 = vdwg.mxu0
    %v1762 = vpack.c.bf16 %v1661, %v1661
    %1763 = vmatprep.subr.bf16.mxu0 0
    %1764 = vmatpush1.bf16.msra.mxu0 %v787
    %1765 = vmatprep.subr.bf16.mxu0 0
    %1766 = vmatpush1.bf16.msra.mxu0 %v788
    %1767 = vmatprep.subr.bf16.mxu0 0
    %1768 = vmatpush1.bf16.msra.mxu0 %v789
    %1769 = vmatprep.subr.bf16.mxu0 0
    %1770 = vmatpush1.bf16.msra.mxu0 %v790
    %1771 = vmatprep.subr.bf16.mxu0 0
    %1772 = vmatpush1.bf16.msra.mxu0 %v791
    %1773 = vmatprep.subr.bf16.mxu0 0
    %1774 = vmatpush1.bf16.msra.mxu0 %v792
    %1775 = vmatprep.subr.bf16.mxu0 0
    %1776 = vmatpush1.bf16.msra.mxu0 %v793
    %1777 = vmatprep.subr.bf16.mxu0 0
    %1778 = vmatpush1.bf16.msra.mxu0 %v794
    %1779 = vmatprep.subr.bf16.mxu0 0
    %1780 = vmatpush1.bf16.msra.mxu0 0
    %1781 = vmatprep.subr.bf16.mxu0 0
    %1782 = vmatpush1.bf16.msra.mxu0 0
    %1783 = vmatprep.subr.bf16.mxu0 0
    %1784 = vmatpush1.bf16.msra.mxu0 0
    %1785 = vmatprep.subr.bf16.mxu0 0
    %1786 = vmatpush1.bf16.msra.mxu0 0
    %1787 = vmatprep.subr.bf16.mxu0 0
    %1788 = vmatpush1.bf16.msra.mxu0 0
    %1789 = vmatprep.subr.bf16.mxu0 0
    %1790 = vmatpush1.bf16.msra.mxu0 0
    %1791 = vmatprep.subr.bf16.mxu0 0
    %1792 = vmatpush1.bf16.msra.mxu0 0
    %1793 = vmatprep.subr.bf16.mxu0 0
    %1794 = vmatpush1.bf16.msra.mxu0 0
    %1795 = vmatprep.mubr.bf16.mxu0 0
    %1796 = vmatmul.mubr.bf16.gmra.mrb[0].mxu0 %v1762
    %v1797 = vpop.f32.mrb[0].mxu0
    %v1798 = vadd.f32 0.0, %v1797
    %v1799 = vpop.f32.mrb[0].mxu0
    %v1800 = vpop.f32.mrb[0].mxu0
    %v1801 = vpop.f32.mrb[0].mxu0
    %1802 = vdwg.mxu0
    %v1803 = vadd.f32 %v1757, %v1798
    %v1804 = vxor.u32 %v1803, 2147483648
    %v1805 = vmul.f32 %v1804, 1.442695
    %v1806 = vpow.pop %v1805
    %v1807 = vadd.f32 %v1806, 1.0
    %v1808 = vrcp.pop %v1807
    %v1809 = vmul.f32 1.0, %v1808
    %1810 = vrot.lane.b32.xlu0 %v1809, 32
    %v1811 = vpop.permute.xlu0 %1810
    %v1812 = vadd.f32 %v1798, %v509
    %v1813 = vmul.f32 %v1811, %v1812
    %v1814 = vadd.f32 %v1757, %v1813
    %v1815 = vtanh.pop %v1814
    %1816 = vrot.lane.b32.xlu0 %v1815, 64
    %v1817 = vpop.permute.xlu0 %1816
    %v1818 = vsub.f32 1.0, %v1809
    %v1819 = vmul.f32 %v1818, %v1817
    %v1820 = vmul.f32 %v1809, %v1661
    %v1821 = vadd.f32 %v1819, %v1820
    %1822 = vmatprep.subr.bf16.mxu0 0
    %1823 = vmatpush1.bf16.msra.mxu0 %v559
    %1824 = vmatprep.subr.bf16.mxu0 0
    %1825 = vmatpush1.bf16.msra.mxu0 %v560
    %1826 = vmatprep.subr.bf16.mxu0 0
    %1827 = vmatpush1.bf16.msra.mxu0 %v561
    %1828 = vmatprep.subr.bf16.mxu0 0
    %1829 = vmatpush1.bf16.msra.mxu0 %v562
    %1830 = vmatprep.subr.bf16.mxu0 0
    %1831 = vmatpush1.bf16.msra.mxu0 %v563
    %1832 = vmatprep.subr.bf16.mxu0 0
    %1833 = vmatpush1.bf16.msra.mxu0 %v564
    %1834 = vmatprep.subr.bf16.mxu0 0
    %1835 = vmatpush1.bf16.msra.mxu0 %v565
    %1836 = vmatprep.subr.bf16.mxu0 0
    %1837 = vmatpush1.bf16.msra.mxu0 %v566
    %1838 = vmatprep.subr.bf16.mxu0 0
    %1839 = vmatpush1.bf16.msra.mxu0 0
    %1840 = vmatprep.subr.bf16.mxu0 0
    %1841 = vmatpush1.bf16.msra.mxu0 0
    %1842 = vmatprep.subr.bf16.mxu0 0
    %1843 = vmatpush1.bf16.msra.mxu0 0
    %1844 = vmatprep.subr.bf16.mxu0 0
    %1845 = vmatpush1.bf16.msra.mxu0 0
    %1846 = vmatprep.subr.bf16.mxu0 0
    %1847 = vmatpush1.bf16.msra.mxu0 0
    %1848 = vmatprep.subr.bf16.mxu0 0
    %1849 = vmatpush1.bf16.msra.mxu0 0
    %1850 = vmatprep.subr.bf16.mxu0 0
    %1851 = vmatpush1.bf16.msra.mxu0 0
    %1852 = vmatprep.subr.bf16.mxu0 0
    %1853 = vmatpush1.bf16.msra.mxu0 0
    %1854 = vmatprep.mubr.bf16.mxu0 0
    %1855 = vmatmul.mubr.bf16.gmra.mrb[0].mxu0 %v1721
    %v1856 = vpop.f32.mrb[0].mxu0
    %v1857 = vadd.f32 0.0, %v1856
    %v1858 = vpop.f32.mrb[0].mxu0
    %v1859 = vpop.f32.mrb[0].mxu0
    %v1860 = vpop.f32.mrb[0].mxu0
    %1861 = vdwg.mxu0
    %v1862 = vadd.f32 %v487, %v1857
    %v1863 = vxor.u32 %v1862, 2147483648
    %v1864 = vmul.f32 %v1863, 1.442695
    %v1865 = vpow.pop %v1864
    %v1866 = vadd.f32 %v1865, 1.0
    %v1867 = vrcp.pop %v1866
    %v1868 = vmul.f32 1.0, %v1867
    %1869 = vrot.lane.b32.xlu0 %v1868, 32
    %v1870 = vpop.permute.xlu0 %1869
    %v1871 = vadd.f32 %v1857, %v502
    %v1872 = vmul.f32 %v1870, %v1871
    %v1873 = vadd.f32 %v487, %v1872
    %v1874 = vtanh.pop %v1873
    %1875 = vrot.lane.b32.xlu0 %v1874, 64
    %v1876 = vpop.permute.xlu0 %1875
    %v1877 = vsub.f32 1.0, %v1868
    %v1878 = vmul.f32 %v1877, %v1876
    %v1879 = vmul.f32 %v1868, %v1720
    %v1880 = vadd.f32 %v1878, %v1879
    %v1881 = vpack.c.bf16 %v1880, %v1880
    %1882 = vmatprep.subr.bf16.mxu0 0
    %1883 = vmatpush1.bf16.msra.mxu0 %v683
    %1884 = vmatprep.subr.bf16.mxu0 0
    %1885 = vmatpush1.bf16.msra.mxu0 %v684
    %1886 = vmatprep.subr.bf16.mxu0 0
    %1887 = vmatpush1.bf16.msra.mxu0 %v685
    %1888 = vmatprep.subr.bf16.mxu0 0
    %1889 = vmatpush1.bf16.msra.mxu0 %v686
    %1890 = vmatprep.subr.bf16.mxu0 0
    %1891 = vmatpush1.bf16.msra.mxu0 %v687
    %1892 = vmatprep.subr.bf16.mxu0 0
    %1893 = vmatpush1.bf16.msra.mxu0 %v688
    %1894 = vmatprep.subr.bf16.mxu0 0
    %1895 = vmatpush1.bf16.msra.mxu0 %v689
    %1896 = vmatprep.subr.bf16.mxu0 0
    %1897 = vmatpush1.bf16.msra.mxu0 %v690
    %1898 = vmatprep.subr.bf16.mxu0 0
    %1899 = vmatpush1.bf16.msra.mxu0 0
    %1900 = vmatprep.subr.bf16.mxu0 0
    %1901 = vmatpush1.bf16.msra.mxu0 0
    %1902 = vmatprep.subr.bf16.mxu0 0
    %1903 = vmatpush1.bf16.msra.mxu0 0
    %1904 = vmatprep.subr.bf16.mxu0 0
    %1905 = vmatpush1.bf16.msra.mxu0 0
    %1906 = vmatprep.subr.bf16.mxu0 0
    %1907 = vmatpush1.bf16.msra.mxu0 0
    %1908 = vmatprep.subr.bf16.mxu0 0
    %1909 = vmatpush1.bf16.msra.mxu0 0
    %1910 = vmatprep.subr.bf16.mxu0 0
    %1911 = vmatpush1.bf16.msra.mxu0 0
    %1912 = vmatprep.subr.bf16.mxu0 0
    %1913 = vmatpush1.bf16.msra.mxu0 0
    %1914 = vmatprep.mubr.bf16.mxu0 0
    %1915 = vmatmul.mubr.bf16.gmra.mrb[0].mxu0 %v1881
    %v1916 = vpop.f32.mrb[0].mxu0
    %v1917 = vadd.f32 %v495, %v1916
    %v1918 = vpop.f32.mrb[0].mxu0
    %v1919 = vpop.f32.mrb[0].mxu0
    %v1920 = vpop.f32.mrb[0].mxu0
    %1921 = vdwg.mxu0
    %v1922 = vpack.c.bf16 %v1821, %v1821
    %1923 = vmatprep.subr.bf16.mxu0 0
    %1924 = vmatpush1.bf16.msra.mxu0 %v787
    %1925 = vmatprep.subr.bf16.mxu0 0
    %1926 = vmatpush1.bf16.msra.mxu0 %v788
    %1927 = vmatprep.subr.bf16.mxu0 0
    %1928 = vmatpush1.bf16.msra.mxu0 %v789
    %1929 = vmatprep.subr.bf16.mxu0 0
    %1930 = vmatpush1.bf16.msra.mxu0 %v790
    %1931 = vmatprep.subr.bf16.mxu0 0
    %1932 = vmatpush1.bf16.msra.mxu0 %v791
    %1933 = vmatprep.subr.bf16.mxu0 0
    %1934 = vmatpush1.bf16.msra.mxu0 %v792
    %1935 = vmatprep.subr.bf16.mxu0 0
    %1936 = vmatpush1.bf16.msra.mxu0 %v793
    %1937 = vmatprep.subr.bf16.mxu0 0
    %1938 = vmatpush1.bf16.msra.mxu0 %v794
    %1939 = vmatprep.subr.bf16.mxu0 0
    %1940 = vmatpush1.bf16.msra.mxu0 0
    %1941 = vmatprep.subr.bf16.mxu0 0
    %1942 = vmatpush1.bf16.msra.mxu0 0
    %1943 = vmatprep.subr.bf16.mxu0 0
    %1944 = vmatpush1.bf16.msra.mxu0 0
    %1945 = vmatprep.subr.bf16.mxu0 0
    %1946 = vmatpush1.bf16.msra.mxu0 0
    %1947 = vmatprep.subr.bf16.mxu0 0
    %1948 = vmatpush1.bf16.msra.mxu0 0
    %1949 = vmatprep.subr.bf16.mxu0 0
    %1950 = vmatpush1.bf16.msra.mxu0 0
    %1951 = vmatprep.subr.bf16.mxu0 0
    %1952 = vmatpush1.bf16.msra.mxu0 0
    %1953 = vmatprep.subr.bf16.mxu0 0
    %1954 = vmatpush1.bf16.msra.mxu0 0
    %1955 = vmatprep.mubr.bf16.mxu0 0
    %1956 = vmatmul.mubr.bf16.gmra.mrb[0].mxu0 %v1922
    %v1957 = vpop.f32.mrb[0].mxu0
    %v1958 = vadd.f32 0.0, %v1957
    %v1959 = vpop.f32.mrb[0].mxu0
    %v1960 = vpop.f32.mrb[0].mxu0
    %v1961 = vpop.f32.mrb[0].mxu0
    %1962 = vdwg.mxu0
    %v1963 = vadd.f32 %v1917, %v1958
    %v1964 = vxor.u32 %v1963, 2147483648
    %v1965 = vmul.f32 %v1964, 1.442695
    %v1966 = vpow.pop %v1965
    %v1967 = vadd.f32 %v1966, 1.0
    %v1968 = vrcp.pop %v1967
    %v1969 = vmul.f32 1.0, %v1968
    %1970 = vrot.lane.b32.xlu0 %v1969, 32
    %v1971 = vpop.permute.xlu0 %1970
    %v1972 = vadd.f32 %v1958, %v509
    %v1973 = vmul.f32 %v1971, %v1972
    %v1974 = vadd.f32 %v1917, %v1973
    %v1975 = vtanh.pop %v1974
    %1976 = vrot.lane.b32.xlu0 %v1975, 64
    %v1977 = vpop.permute.xlu0 %1976
    %v1978 = vsub.f32 1.0, %v1969
    %v1979 = vmul.f32 %v1978, %v1977
    %v1980 = vmul.f32 %v1969, %v1821
    %v1981 = vadd.f32 %v1979, %v1980
    %v1982 = vld [vmem:[#allocation12] sm:$0xf]
    %v1983 = vld [vmem:[#allocation20] sm:$0xf]
    %v1984 = vld [vmem:[#allocation20 + $0x4] sm:$0xf]
    %v1985 = vld [vmem:[#allocation20 + $0x8] sm:$0xf]
    %v1986 = vld [vmem:[#allocation20 + $0xc] sm:$0xf]
    %v1987 = vld [vmem:[#allocation20 + $0x10] sm:$0xf]
    %v1988 = vld [vmem:[#allocation20 + $0x14] sm:$0xf]
    %v1989 = vld [vmem:[#allocation20 + $0x18] sm:$0xf]
    %v1990 = vld [vmem:[#allocation20 + $0x1c] sm:$0xf]
    %v1991 = vld [vmem:[#allocation20 + $0x20] sm:$0xf]
    %v1992 = vld [vmem:[#allocation20 + $0x24] sm:$0xf]
    %v1993 = vld [vmem:[#allocation20 + $0x28] sm:$0xf]
    %v1994 = vld [vmem:[#allocation20 + $0x2c] sm:$0xf]
    %v1995 = vld [vmem:[#allocation20 + $0x30] sm:$0xf]
    %v1996 = vld [vmem:[#allocation20 + $0x34] sm:$0xf]
    %v1997 = vld [vmem:[#allocation20 + $0x38] sm:$0xf]
    %v1998 = vld [vmem:[#allocation20 + $0x3c] sm:$0xf]
    %v1999 = vld [vmem:[%s11] sm:$0x1]
    %v2001 = vlaneseq
    %v2002 = vshrl.u32 %v2001, 7
    %v2003 = vsub.s32 0, %v2002
    %v2004 = vrot.slane %v1999, %v2003
    %v2022 = vunpack.c.l.b16 %v1983
    %v2023 = vunpack.c.l.b16 %v1984
    %v2024 = vunpack.c.l.b16 %v1985
    %v2025 = vunpack.c.l.b16 %v1986
    %v2026 = vunpack.c.l.b16 %v1987
    %v2027 = vunpack.c.l.b16 %v1988
    %v2028 = vunpack.c.l.b16 %v1989
    %v2029 = vunpack.c.l.b16 %v1990
    %v2030 = vunpack.c.l.b16 %v1991
    %v2031 = vunpack.c.l.b16 %v1992
    %v2032 = vunpack.c.l.b16 %v1993
    %v2033 = vunpack.c.l.b16 %v1994
    %v2034 = vunpack.c.l.b16 %v1995
    %v2035 = vunpack.c.l.b16 %v1996
    %v2036 = vunpack.c.l.b16 %v1997
    %v2037 = vunpack.c.l.b16 %v1998
    %v2038 = vpack.c.b16 %v2023, %v2022
    %v2039 = vpack.c.b16 %v2025, %v2024
    %v2040 = vpack.c.b16 %v2027, %v2026
    %v2041 = vpack.c.b16 %v2029, %v2028
    %v2042 = vpack.c.b16 %v2031, %v2030
    %v2043 = vpack.c.b16 %v2033, %v2032
    %v2044 = vpack.c.b16 %v2035, %v2034
    %v2045 = vpack.c.b16 %v2037, %v2036
    %2054 = vmatprep.subr.bf16.mxu0 0
    %2055 = vmatpush1.bf16.msra.mxu0 %v2038
    %2056 = vmatprep.subr.bf16.mxu0 0
    %2057 = vmatpush1.bf16.msra.mxu0 %v2039
    %2058 = vmatprep.subr.bf16.mxu0 0
    %2059 = vmatpush1.bf16.msra.mxu0 %v2040
    %2060 = vmatprep.subr.bf16.mxu0 0
    %2061 = vmatpush1.bf16.msra.mxu0 %v2041
    %2062 = vmatprep.subr.bf16.mxu0 0
    %2063 = vmatpush1.bf16.msra.mxu0 %v2042
    %2064 = vmatprep.subr.bf16.mxu0 0
    %2065 = vmatpush1.bf16.msra.mxu0 %v2043
    %2066 = vmatprep.subr.bf16.mxu0 0
    %2067 = vmatpush1.bf16.msra.mxu0 %v2044
    %2068 = vmatprep.subr.bf16.mxu0 0
    %2069 = vmatpush1.bf16.msra.mxu0 %v2045
    %2070 = vmatprep.subr.bf16.mxu0 0
    %2071 = vmatpush1.bf16.msra.mxu0 0
    %2072 = vmatprep.subr.bf16.mxu0 0
    %2073 = vmatpush1.bf16.msra.mxu0 0
    %2074 = vmatprep.subr.bf16.mxu0 0
    %2075 = vmatpush1.bf16.msra.mxu0 0
    %2076 = vmatprep.subr.bf16.mxu0 0
    %2077 = vmatpush1.bf16.msra.mxu0 0
    %2078 = vmatprep.subr.bf16.mxu0 0
    %2079 = vmatpush1.bf16.msra.mxu0 0
    %2080 = vmatprep.subr.bf16.mxu0 0
    %2081 = vmatpush1.bf16.msra.mxu0 0
    %2082 = vmatprep.subr.bf16.mxu0 0
    %2083 = vmatpush1.bf16.msra.mxu0 0
    %2084 = vmatprep.subr.bf16.mxu0 0
    %2085 = vmatpush1.bf16.msra.mxu0 0
    %2086 = vmatprep.mubr.bf16.mxu0 0
    %2087 = vmatmul.mubr.bf16.gmra.mrb[0].mxu0 %v1982
    %v2088 = vpop.f32.mrb[0].mxu0
    %v2089 = vadd.f32 %v2004, %v2088
    %v2090 = vpop.f32.mrb[0].mxu0
    %v2091 = vpop.f32.mrb[0].mxu0
    %v2092 = vpop.f32.mrb[0].mxu0
    %2093 = vdwg.mxu0
    %v2094 = vmax.f32 %v2089, 0.0
    %s2095 = smul.u32 4, 32
    %s2096 = smul.u32 %s2095, 1
    %s2097 = sshll.u32 %s2096, 4
    %2098 = dma.done [#allocation8], %s2097
    %v2099 = vld [vmem:[#allocation2] sm:$0xff]
    %v2100 = vld [vmem:[#allocation2 + $0x8] sm:$0xff]
    %v2101 = vld [vmem:[#allocation2 + $0x10] sm:$0xff]
    %v2102 = vld [vmem:[#allocation2 + $0x18] sm:$0xff]
    %v2103 = vld [vmem:[#allocation2 + $0x20] sm:$0xff]
    %v2104 = vld [vmem:[#allocation2 + $0x28] sm:$0xff]
    %v2105 = vld [vmem:[#allocation2 + $0x30] sm:$0xff]
    %v2106 = vld [vmem:[#allocation2 + $0x38] sm:$0xff]
    %v2107 = vld [vmem:[#allocation2 + $0x40] sm:$0xff]
    %v2108 = vld [vmem:[#allocation2 + $0x48] sm:$0xff]
    %v2109 = vld [vmem:[#allocation2 + $0x50] sm:$0xff]
    %v2110 = vld [vmem:[#allocation2 + $0x58] sm:$0xff]
    %v2111 = vld [vmem:[#allocation2 + $0x60] sm:$0xff]
    %v2112 = vld [vmem:[#allocation2 + $0x68] sm:$0xff]
    %v2113 = vld [vmem:[#allocation2 + $0x70] sm:$0xff]
    %v2114 = vld [vmem:[#allocation2 + $0x78] sm:$0xff]
    %v2115 = vpack.c.bf16 %v1981, %v1981
    %v2116 = vpack.c.bf16 %v2094, %v2094
    %v2117 = vld [vmem:[%s12] sm:$0x1]
    %v2119 = vlaneseq
    %v2120 = vshrl.u32 %v2119, 7
    %v2121 = vsub.s32 0, %v2120
    %v2122 = vrot.slane %v2117, %v2121
    %2124 = vmatprep.subr.bf16.mxu0 0
    %2125 = vmatpush1.bf16.msra.mxu0 %v2099
    %2126 = vmatprep.subr.bf16.mxu0 0
    %2127 = vmatpush1.bf16.msra.mxu0 %v2100
    %2128 = vmatprep.subr.bf16.mxu0 0
    %2129 = vmatpush1.bf16.msra.mxu0 %v2101
    %2130 = vmatprep.subr.bf16.mxu0 0
    %2131 = vmatpush1.bf16.msra.mxu0 %v2102
    %2132 = vmatprep.subr.bf16.mxu0 0
    %2133 = vmatpush1.bf16.msra.mxu0 %v2103
    %2134 = vmatprep.subr.bf16.mxu0 0
    %2135 = vmatpush1.bf16.msra.mxu0 %v2104
    %2136 = vmatprep.subr.bf16.mxu0 0
    %2137 = vmatpush1.bf16.msra.mxu0 %v2105
    %2138 = vmatprep.subr.bf16.mxu0 0
    %2139 = vmatpush1.bf16.msra.mxu0 %v2106
    %2140 = vmatprep.subr.bf16.mxu0 0
    %2141 = vmatpush1.bf16.msra.mxu0 %v2107
    %2142 = vmatprep.subr.bf16.mxu0 0
    %2143 = vmatpush1.bf16.msra.mxu0 %v2108
    %2144 = vmatprep.subr.bf16.mxu0 0
    %2145 = vmatpush1.bf16.msra.mxu0 %v2109
    %2146 = vmatprep.subr.bf16.mxu0 0
    %2147 = vmatpush1.bf16.msra.mxu0 %v2110
    %2148 = vmatprep.subr.bf16.mxu0 0
    %2149 = vmatpush1.bf16.msra.mxu0 %v2111
    %2150 = vmatprep.subr.bf16.mxu0 0
    %2151 = vmatpush1.bf16.msra.mxu0 %v2112
    %2152 = vmatprep.subr.bf16.mxu0 0
    %2153 = vmatpush1.bf16.msra.mxu0 %v2113
    %2154 = vmatprep.subr.bf16.mxu0 0
    %2155 = vmatpush1.bf16.msra.mxu0 %v2114
    %2156 = vmatprep.mubr.bf16.mxu0 %v2116
    %2157 = vmatmul.mubr.bf16.gmra.mrb[0].mxu0 %v2115
    %v2158 = vpop.f32.mrb[0].mxu0
    %v2159 = vadd.f32 %v2122, %v2158
    %v2160 = vpop.f32.mrb[0].mxu0
    %v2161 = vpop.f32.mrb[0].mxu0
    %v2162 = vpop.f32.mrb[0].mxu0
    %2163 = vdwg.mxu0
    %v2164 = vld [vmem:[#allocation21] sm:$0x1]
    %v2166 = vlaneseq
    %v2167 = vshrl.u32 %v2166, 7
    %v2168 = vsub.s32 0, %v2167
    %v2169 = vrot.slane %v2164, %v2168
    %v2171 = vld [vmem:[%s13] sm:$0x1]
    %v2173 = vlaneseq
    %v2174 = vshrl.u32 %v2173, 7
    %v2175 = vsub.s32 0, %v2174
    %v2176 = vrot.slane %v2171, %v2175
    %v2178 = vld [vmem:[#allocation23] sm:$0x1]
    %v2180 = vlaneseq
    %v2181 = vshrl.u32 %v2180, 7
    %v2182 = vsub.s32 0, %v2181
    %v2183 = vrot.slane %v2178, %v2182
    %s2185 = smul.u32 4, 16
    %s2186 = smul.u32 %s2185, 1
    %s2187 = sshll.u32 %s2186, 4
    %2188 = dma.done %s217, %s2187
    %s2189 = sshll.u32 %s2186, 4
    %2190 = dma.done %s274, %s2189
    %s2191 = sshll.u32 %s2186, 4
    %2192 = dma.done %s286, %s2191
    %v2193 = vld [vmem:[#allocation3] sm:$0xff]
    %v2194 = vld [vmem:[#allocation3 + $0x8] sm:$0xff]
    %v2195 = vld [vmem:[#allocation3 + $0x10] sm:$0xff]
    %v2196 = vld [vmem:[#allocation3 + $0x18] sm:$0xff]
    %v2197 = vld [vmem:[#allocation3 + $0x20] sm:$0xff]
    %v2198 = vld [vmem:[#allocation3 + $0x28] sm:$0xff]
    %v2199 = vld [vmem:[#allocation3 + $0x30] sm:$0xff]
    %v2200 = vld [vmem:[#allocation3 + $0x38] sm:$0xff]
    %2201 = vmatprep.subr.bf16.mxu0 0
    %2202 = vmatpush1.bf16.msra.mxu0 %v2193
    %2203 = vmatprep.subr.bf16.mxu0 0
    %2204 = vmatpush1.bf16.msra.mxu0 %v2194
    %2205 = vmatprep.subr.bf16.mxu0 0
    %2206 = vmatpush1.bf16.msra.mxu0 %v2195
    %2207 = vmatprep.subr.bf16.mxu0 0
    %2208 = vmatpush1.bf16.msra.mxu0 %v2196
    %2209 = vmatprep.subr.bf16.mxu0 0
    %2210 = vmatpush1.bf16.msra.mxu0 %v2197
    %2211 = vmatprep.subr.bf16.mxu0 0
    %2212 = vmatpush1.bf16.msra.mxu0 %v2198
    %2213 = vmatprep.subr.bf16.mxu0 0
    %2214 = vmatpush1.bf16.msra.mxu0 %v2199
    %2215 = vmatprep.subr.bf16.mxu0 0
    %2216 = vmatpush1.bf16.msra.mxu0 %v2200
    %2217 = vmatprep.subr.bf16.mxu0 0
    %2218 = vmatpush1.bf16.msra.mxu0 0
    %2219 = vmatprep.subr.bf16.mxu0 0
    %2220 = vmatpush1.bf16.msra.mxu0 0
    %2221 = vmatprep.subr.bf16.mxu0 0
    %2222 = vmatpush1.bf16.msra.mxu0 0
    %2223 = vmatprep.subr.bf16.mxu0 0
    %2224 = vmatpush1.bf16.msra.mxu0 0
    %2225 = vmatprep.subr.bf16.mxu0 0
    %2226 = vmatpush1.bf16.msra.mxu0 0
    %2227 = vmatprep.subr.bf16.mxu0 0
    %2228 = vmatpush1.bf16.msra.mxu0 0
    %2229 = vmatprep.subr.bf16.mxu0 0
    %2230 = vmatpush1.bf16.msra.mxu0 0
    %2231 = vmatprep.subr.bf16.mxu0 0
    %2232 = vmatpush1.bf16.msra.mxu0 0
    %2233 = vmatprep.mubr.bf16.mxu0 0
    %2234 = vmatmul.mubr.bf16.gmra.mrb[0].mxu0 0
    %v2235 = vpop.f32.mrb[0].mxu0
    %v2236 = vadd.f32 0.0, %v2235
    %v2237 = vpop.f32.mrb[0].mxu0
    %v2238 = vpop.f32.mrb[0].mxu0
    %v2239 = vpop.f32.mrb[0].mxu0
    %2240 = vdwg.mxu0
    %v2241 = vadd.f32 %v2159, %v2236
    %v2242 = vxor.u32 %v2241, 2147483648
    %v2243 = vmul.f32 %v2242, 1.442695
    %v2244 = vpow.pop %v2243
    %v2245 = vadd.f32 %v2244, 1.0
    %v2246 = vrcp.pop %v2245
    %v2247 = vmul.f32 1.0, %v2246
    %2248 = vrot.lane.b32.xlu0 %v2247, 32
    %v2249 = vpop.permute.xlu0 %2248
    %v2250 = vadd.f32 %v2236, %v2176
    %v2251 = vmul.f32 %v2249, %v2250
    %v2252 = vadd.f32 %v2159, %v2251
    %v2253 = vtanh.pop %v2252
    %2254 = vrot.lane.b32.xlu0 %v2253, 64
    %v2255 = vpop.permute.xlu0 %2254
    %v2256 = vsub.f32 1.0, %v2247
    %v2257 = vmul.f32 %v2256, %v2255
    %v2258 = vmul.f32 %v2247, 0.0
    %v2259 = vadd.f32 %v2257, %v2258
    %v2260 = vld [vmem:[#allocation4] sm:$0xff]
    %v2261 = vld [vmem:[#allocation4 + $0x8] sm:$0xff]
    %v2262 = vld [vmem:[#allocation4 + $0x10] sm:$0xff]
    %v2263 = vld [vmem:[#allocation4 + $0x18] sm:$0xff]
    %v2264 = vld [vmem:[#allocation4 + $0x20] sm:$0xff]
    %v2265 = vld [vmem:[#allocation4 + $0x28] sm:$0xff]
    %v2266 = vld [vmem:[#allocation4 + $0x30] sm:$0xff]
    %v2267 = vld [vmem:[#allocation4 + $0x38] sm:$0xff]
    %v2268 = vpack.c.bf16 %v2259, %v2259
    %2269 = vmatprep.subr.bf16.mxu0 0
    %2270 = vmatpush1.bf16.msra.mxu0 %v2260
    %2271 = vmatprep.subr.bf16.mxu0 0
    %2272 = vmatpush1.bf16.msra.mxu0 %v2261
    %2273 = vmatprep.subr.bf16.mxu0 0
    %2274 = vmatpush1.bf16.msra.mxu0 %v2262
    %2275 = vmatprep.subr.bf16.mxu0 0
    %2276 = vmatpush1.bf16.msra.mxu0 %v2263
    %2277 = vmatprep.subr.bf16.mxu0 0
    %2278 = vmatpush1.bf16.msra.mxu0 %v2264
    %2279 = vmatprep.subr.bf16.mxu0 0
    %2280 = vmatpush1.bf16.msra.mxu0 %v2265
    %2281 = vmatprep.subr.bf16.mxu0 0
    %2282 = vmatpush1.bf16.msra.mxu0 %v2266
    %2283 = vmatprep.subr.bf16.mxu0 0
    %2284 = vmatpush1.bf16.msra.mxu0 %v2267
    %2285 = vmatprep.subr.bf16.mxu0 0
    %2286 = vmatpush1.bf16.msra.mxu0 0
    %2287 = vmatprep.subr.bf16.mxu0 0
    %2288 = vmatpush1.bf16.msra.mxu0 0
    %2289 = vmatprep.subr.bf16.mxu0 0
    %2290 = vmatpush1.bf16.msra.mxu0 0
    %2291 = vmatprep.subr.bf16.mxu0 0
    %2292 = vmatpush1.bf16.msra.mxu0 0
    %2293 = vmatprep.subr.bf16.mxu0 0
    %2294 = vmatpush1.bf16.msra.mxu0 0
    %2295 = vmatprep.subr.bf16.mxu0 0
    %2296 = vmatpush1.bf16.msra.mxu0 0
    %2297 = vmatprep.subr.bf16.mxu0 0
    %2298 = vmatpush1.bf16.msra.mxu0 0
    %2299 = vmatprep.subr.bf16.mxu0 0
    %2300 = vmatpush1.bf16.msra.mxu0 0
    %2301 = vmatprep.mubr.bf16.mxu0 0
    %2302 = vmatmul.mubr.bf16.gmra.mrb[0].mxu0 %v2268
    %v2303 = vpop.f32.mrb[0].mxu0
    %v2304 = vadd.f32 %v2169, %v2303
    %v2305 = vpop.f32.mrb[0].mxu0
    %v2306 = vpop.f32.mrb[0].mxu0
    %v2307 = vpop.f32.mrb[0].mxu0
    %2308 = vdwg.mxu0
    %v2309 = vld [vmem:[#allocation5] sm:$0xff]
    %v2310 = vld [vmem:[#allocation5 + $0x8] sm:$0xff]
    %v2311 = vld [vmem:[#allocation5 + $0x10] sm:$0xff]
    %v2312 = vld [vmem:[#allocation5 + $0x18] sm:$0xff]
    %v2313 = vld [vmem:[#allocation5 + $0x20] sm:$0xff]
    %v2314 = vld [vmem:[#allocation5 + $0x28] sm:$0xff]
    %v2315 = vld [vmem:[#allocation5 + $0x30] sm:$0xff]
    %v2316 = vld [vmem:[#allocation5 + $0x38] sm:$0xff]
    %2317 = vmatprep.subr.bf16.mxu0 0
    %2318 = vmatpush1.bf16.msra.mxu0 %v2309
    %2319 = vmatprep.subr.bf16.mxu0 0
    %2320 = vmatpush1.bf16.msra.mxu0 %v2310
    %2321 = vmatprep.subr.bf16.mxu0 0
    %2322 = vmatpush1.bf16.msra.mxu0 %v2311
    %2323 = vmatprep.subr.bf16.mxu0 0
    %2324 = vmatpush1.bf16.msra.mxu0 %v2312
    %2325 = vmatprep.subr.bf16.mxu0 0
    %2326 = vmatpush1.bf16.msra.mxu0 %v2313
    %2327 = vmatprep.subr.bf16.mxu0 0
    %2328 = vmatpush1.bf16.msra.mxu0 %v2314
    %2329 = vmatprep.subr.bf16.mxu0 0
    %2330 = vmatpush1.bf16.msra.mxu0 %v2315
    %2331 = vmatprep.subr.bf16.mxu0 0
    %2332 = vmatpush1.bf16.msra.mxu0 %v2316
    %2333 = vmatprep.subr.bf16.mxu0 0
    %2334 = vmatpush1.bf16.msra.mxu0 0
    %2335 = vmatprep.subr.bf16.mxu0 0
    %2336 = vmatpush1.bf16.msra.mxu0 0
    %2337 = vmatprep.subr.bf16.mxu0 0
    %2338 = vmatpush1.bf16.msra.mxu0 0
    %2339 = vmatprep.subr.bf16.mxu0 0
    %2340 = vmatpush1.bf16.msra.mxu0 0
    %2341 = vmatprep.subr.bf16.mxu0 0
    %2342 = vmatpush1.bf16.msra.mxu0 0
    %2343 = vmatprep.subr.bf16.mxu0 0
    %2344 = vmatpush1.bf16.msra.mxu0 0
    %2345 = vmatprep.subr.bf16.mxu0 0
    %2346 = vmatpush1.bf16.msra.mxu0 0
    %2347 = vmatprep.subr.bf16.mxu0 0
    %2348 = vmatpush1.bf16.msra.mxu0 0
    %2349 = vmatprep.mubr.bf16.mxu0 0
    %2350 = vmatmul.mubr.bf16.gmra.mrb[0].mxu0 0
    %v2351 = vpop.f32.mrb[0].mxu0
    %v2352 = vadd.f32 0.0, %v2351
    %v2353 = vpop.f32.mrb[0].mxu0
    %v2354 = vpop.f32.mrb[0].mxu0
    %v2355 = vpop.f32.mrb[0].mxu0
    %2356 = vdwg.mxu0
    %v2357 = vadd.f32 %v2304, %v2352
    %v2358 = vxor.u32 %v2357, 2147483648
    %v2359 = vmul.f32 %v2358, 1.442695
    %v2360 = vpow.pop %v2359
    %v2361 = vadd.f32 %v2360, 1.0
    %v2362 = vrcp.pop %v2361
    %v2363 = vmul.f32 1.0, %v2362
    %2364 = vrot.lane.b32.xlu0 %v2363, 32
    %v2365 = vpop.permute.xlu0 %2364
    %v2366 = vadd.f32 %v2352, %v2183
    %v2367 = vmul.f32 %v2365, %v2366
    %v2368 = vadd.f32 %v2304, %v2367
    %v2369 = vtanh.pop %v2368
    %2370 = vrot.lane.b32.xlu0 %v2369, 64
    %v2371 = vpop.permute.xlu0 %2370
    %v2372 = vsub.f32 1.0, %v2363
    %v2373 = vmul.f32 %v2372, %v2371
    %v2374 = vmul.f32 %v2363, 0.0
    %v2375 = vadd.f32 %v2373, %v2374
    %2376 = vmatprep.subr.bf16.mxu0 0
    %2377 = vmatpush1.bf16.msra.mxu0 %v2193
    %2378 = vmatprep.subr.bf16.mxu0 0
    %2379 = vmatpush1.bf16.msra.mxu0 %v2194
    %2380 = vmatprep.subr.bf16.mxu0 0
    %2381 = vmatpush1.bf16.msra.mxu0 %v2195
    %2382 = vmatprep.subr.bf16.mxu0 0
    %2383 = vmatpush1.bf16.msra.mxu0 %v2196
    %2384 = vmatprep.subr.bf16.mxu0 0
    %2385 = vmatpush1.bf16.msra.mxu0 %v2197
    %2386 = vmatprep.subr.bf16.mxu0 0
    %2387 = vmatpush1.bf16.msra.mxu0 %v2198
    %2388 = vmatprep.subr.bf16.mxu0 0
    %2389 = vmatpush1.bf16.msra.mxu0 %v2199
    %2390 = vmatprep.subr.bf16.mxu0 0
    %2391 = vmatpush1.bf16.msra.mxu0 %v2200
    %2392 = vmatprep.subr.bf16.mxu0 0
    %2393 = vmatpush1.bf16.msra.mxu0 0
    %2394 = vmatprep.subr.bf16.mxu0 0
    %2395 = vmatpush1.bf16.msra.mxu0 0
    %2396 = vmatprep.subr.bf16.mxu0 0
    %2397 = vmatpush1.bf16.msra.mxu0 0
    %2398 = vmatprep.subr.bf16.mxu0 0
    %2399 = vmatpush1.bf16.msra.mxu0 0
    %2400 = vmatprep.subr.bf16.mxu0 0
    %2401 = vmatpush1.bf16.msra.mxu0 0
    %2402 = vmatprep.subr.bf16.mxu0 0
    %2403 = vmatpush1.bf16.msra.mxu0 0
    %2404 = vmatprep.subr.bf16.mxu0 0
    %2405 = vmatpush1.bf16.msra.mxu0 0
    %2406 = vmatprep.subr.bf16.mxu0 0
    %2407 = vmatpush1.bf16.msra.mxu0 0
    %2408 = vmatprep.mubr.bf16.mxu0 0
    %2409 = vmatmul.mubr.bf16.gmra.mrb[0].mxu0 %v2268
    %v2410 = vpop.f32.mrb[0].mxu0
    %v2411 = vadd.f32 0.0, %v2410
    %v2412 = vpop.f32.mrb[0].mxu0
    %v2413 = vpop.f32.mrb[0].mxu0
    %v2414 = vpop.f32.mrb[0].mxu0
    %2415 = vdwg.mxu0
    %v2416 = vadd.f32 %v2159, %v2411
    %v2417 = vxor.u32 %v2416, 2147483648
    %v2418 = vmul.f32 %v2417, 1.442695
    %v2419 = vpow.pop %v2418
    %v2420 = vadd.f32 %v2419, 1.0
    %v2421 = vrcp.pop %v2420
    %v2422 = vmul.f32 1.0, %v2421
    %2423 = vrot.lane.b32.xlu0 %v2422, 32
    %v2424 = vpop.permute.xlu0 %2423
    %v2425 = vadd.f32 %v2411, %v2176
    %v2426 = vmul.f32 %v2424, %v2425
    %v2427 = vadd.f32 %v2159, %v2426
    %v2428 = vtanh.pop %v2427
    %2429 = vrot.lane.b32.xlu0 %v2428, 64
    %v2430 = vpop.permute.xlu0 %2429
    %v2431 = vsub.f32 1.0, %v2422
    %v2432 = vmul.f32 %v2431, %v2430
    %v2433 = vmul.f32 %v2422, %v2259
    %v2434 = vadd.f32 %v2432, %v2433
    %v2435 = vpack.c.bf16 %v2434, %v2434
    %2436 = vmatprep.subr.bf16.mxu0 0
    %2437 = vmatpush1.bf16.msra.mxu0 %v2260
    %2438 = vmatprep.subr.bf16.mxu0 0
    %2439 = vmatpush1.bf16.msra.mxu0 %v2261
    %2440 = vmatprep.subr.bf16.mxu0 0
    %2441 = vmatpush1.bf16.msra.mxu0 %v2262
    %2442 = vmatprep.subr.bf16.mxu0 0
    %2443 = vmatpush1.bf16.msra.mxu0 %v2263
    %2444 = vmatprep.subr.bf16.mxu0 0
    %2445 = vmatpush1.bf16.msra.mxu0 %v2264
    %2446 = vmatprep.subr.bf16.mxu0 0
    %2447 = vmatpush1.bf16.msra.mxu0 %v2265
    %2448 = vmatprep.subr.bf16.mxu0 0
    %2449 = vmatpush1.bf16.msra.mxu0 %v2266
    %2450 = vmatprep.subr.bf16.mxu0 0
    %2451 = vmatpush1.bf16.msra.mxu0 %v2267
    %2452 = vmatprep.subr.bf16.mxu0 0
    %2453 = vmatpush1.bf16.msra.mxu0 0
    %2454 = vmatprep.subr.bf16.mxu0 0
    %2455 = vmatpush1.bf16.msra.mxu0 0
    %2456 = vmatprep.subr.bf16.mxu0 0
    %2457 = vmatpush1.bf16.msra.mxu0 0
    %2458 = vmatprep.subr.bf16.mxu0 0
    %2459 = vmatpush1.bf16.msra.mxu0 0
    %2460 = vmatprep.subr.bf16.mxu0 0
    %2461 = vmatpush1.bf16.msra.mxu0 0
    %2462 = vmatprep.subr.bf16.mxu0 0
    %2463 = vmatpush1.bf16.msra.mxu0 0
    %2464 = vmatprep.subr.bf16.mxu0 0
    %2465 = vmatpush1.bf16.msra.mxu0 0
    %2466 = vmatprep.subr.bf16.mxu0 0
    %2467 = vmatpush1.bf16.msra.mxu0 0
    %2468 = vmatprep.mubr.bf16.mxu0 0
    %2469 = vmatmul.mubr.bf16.gmra.mrb[0].mxu0 %v2435
    %v2470 = vpop.f32.mrb[0].mxu0
    %v2471 = vadd.f32 %v2169, %v2470
    %v2472 = vpop.f32.mrb[0].mxu0
    %v2473 = vpop.f32.mrb[0].mxu0
    %v2474 = vpop.f32.mrb[0].mxu0
    %2475 = vdwg.mxu0
    %v2476 = vpack.c.bf16 %v2375, %v2375
    %2477 = vmatprep.subr.bf16.mxu0 0
    %2478 = vmatpush1.bf16.msra.mxu0 %v2309
    %2479 = vmatprep.subr.bf16.mxu0 0
    %2480 = vmatpush1.bf16.msra.mxu0 %v2310
    %2481 = vmatprep.subr.bf16.mxu0 0
    %2482 = vmatpush1.bf16.msra.mxu0 %v2311
    %2483 = vmatprep.subr.bf16.mxu0 0
    %2484 = vmatpush1.bf16.msra.mxu0 %v2312
    %2485 = vmatprep.subr.bf16.mxu0 0
    %2486 = vmatpush1.bf16.msra.mxu0 %v2313
    %2487 = vmatprep.subr.bf16.mxu0 0
    %2488 = vmatpush1.bf16.msra.mxu0 %v2314
    %2489 = vmatprep.subr.bf16.mxu0 0
    %2490 = vmatpush1.bf16.msra.mxu0 %v2315
    %2491 = vmatprep.subr.bf16.mxu0 0
    %2492 = vmatpush1.bf16.msra.mxu0 %v2316
    %2493 = vmatprep.subr.bf16.mxu0 0
    %2494 = vmatpush1.bf16.msra.mxu0 0
    %2495 = vmatprep.subr.bf16.mxu0 0
    %2496 = vmatpush1.bf16.msra.mxu0 0
    %2497 = vmatprep.subr.bf16.mxu0 0
    %2498 = vmatpush1.bf16.msra.mxu0 0
    %2499 = vmatprep.subr.bf16.mxu0 0
    %2500 = vmatpush1.bf16.msra.mxu0 0
    %2501 = vmatprep.subr.bf16.mxu0 0
    %2502 = vmatpush1.bf16.msra.mxu0 0
    %2503 = vmatprep.subr.bf16.mxu0 0
    %2504 = vmatpush1.bf16.msra.mxu0 0
    %2505 = vmatprep.subr.bf16.mxu0 0
    %2506 = vmatpush1.bf16.msra.mxu0 0
    %2507 = vmatprep.subr.bf16.mxu0 0
    %2508 = vmatpush1.bf16.msra.mxu0 0
    %2509 = vmatprep.mubr.bf16.mxu0 0
    %2510 = vmatmul.mubr.bf16.gmra.mrb[0].mxu0 %v2476
    %v2511 = vpop.f32.mrb[0].mxu0
    %v2512 = vadd.f32 0.0, %v2511
    %v2513 = vpop.f32.mrb[0].mxu0
    %v2514 = vpop.f32.mrb[0].mxu0
    %v2515 = vpop.f32.mrb[0].mxu0
    %2516 = vdwg.mxu0
    %v2517 = vadd.f32 %v2471, %v2512
    %v2518 = vxor.u32 %v2517, 2147483648
    %v2519 = vmul.f32 %v2518, 1.442695
    %v2520 = vpow.pop %v2519
    %v2521 = vadd.f32 %v2520, 1.0
    %v2522 = vrcp.pop %v2521
    %v2523 = vmul.f32 1.0, %v2522
    %2524 = vrot.lane.b32.xlu0 %v2523, 32
    %v2525 = vpop.permute.xlu0 %2524
    %v2526 = vadd.f32 %v2512, %v2183
    %v2527 = vmul.f32 %v2525, %v2526
    %v2528 = vadd.f32 %v2471, %v2527
    %v2529 = vtanh.pop %v2528
    %2530 = vrot.lane.b32.xlu0 %v2529, 64
    %v2531 = vpop.permute.xlu0 %2530
    %v2532 = vsub.f32 1.0, %v2523
    %v2533 = vmul.f32 %v2532, %v2531
    %v2534 = vmul.f32 %v2523, %v2375
    %v2535 = vadd.f32 %v2533, %v2534
    %2536 = vmatprep.subr.bf16.mxu0 0
    %2537 = vmatpush1.bf16.msra.mxu0 %v2193
    %2538 = vmatprep.subr.bf16.mxu0 0
    %2539 = vmatpush1.bf16.msra.mxu0 %v2194
    %2540 = vmatprep.subr.bf16.mxu0 0
    %2541 = vmatpush1.bf16.msra.mxu0 %v2195
    %2542 = vmatprep.subr.bf16.mxu0 0
    %2543 = vmatpush1.bf16.msra.mxu0 %v2196
    %2544 = vmatprep.subr.bf16.mxu0 0
    %2545 = vmatpush1.bf16.msra.mxu0 %v2197
    %2546 = vmatprep.subr.bf16.mxu0 0
    %2547 = vmatpush1.bf16.msra.mxu0 %v2198
    %2548 = vmatprep.subr.bf16.mxu0 0
    %2549 = vmatpush1.bf16.msra.mxu0 %v2199
    %2550 = vmatprep.subr.bf16.mxu0 0
    %2551 = vmatpush1.bf16.msra.mxu0 %v2200
    %2552 = vmatprep.subr.bf16.mxu0 0
    %2553 = vmatpush1.bf16.msra.mxu0 0
    %2554 = vmatprep.subr.bf16.mxu0 0
    %2555 = vmatpush1.bf16.msra.mxu0 0
    %2556 = vmatprep.subr.bf16.mxu0 0
    %2557 = vmatpush1.bf16.msra.mxu0 0
    %2558 = vmatprep.subr.bf16.mxu0 0
    %2559 = vmatpush1.bf16.msra.mxu0 0
    %2560 = vmatprep.subr.bf16.mxu0 0
    %2561 = vmatpush1.bf16.msra.mxu0 0
    %2562 = vmatprep.subr.bf16.mxu0 0
    %2563 = vmatpush1.bf16.msra.mxu0 0
    %2564 = vmatprep.subr.bf16.mxu0 0
    %2565 = vmatpush1.bf16.msra.mxu0 0
    %2566 = vmatprep.subr.bf16.mxu0 0
    %2567 = vmatpush1.bf16.msra.mxu0 0
    %2568 = vmatprep.mubr.bf16.mxu0 0
    %2569 = vmatmul.mubr.bf16.gmra.mrb[0].mxu0 %v2435
    %v2570 = vpop.f32.mrb[0].mxu0
    %v2571 = vadd.f32 0.0, %v2570
    %v2572 = vpop.f32.mrb[0].mxu0
    %v2573 = vpop.f32.mrb[0].mxu0
    %v2574 = vpop.f32.mrb[0].mxu0
    %2575 = vdwg.mxu0
    %v2576 = vadd.f32 %v2159, %v2571
    %v2577 = vxor.u32 %v2576, 2147483648
    %v2578 = vmul.f32 %v2577, 1.442695
    %v2579 = vpow.pop %v2578
    %v2580 = vadd.f32 %v2579, 1.0
    %v2581 = vrcp.pop %v2580
    %v2582 = vmul.f32 1.0, %v2581
    %2583 = vrot.lane.b32.xlu0 %v2582, 32
    %v2584 = vpop.permute.xlu0 %2583
    %v2585 = vadd.f32 %v2571, %v2176
    %v2586 = vmul.f32 %v2584, %v2585
    %v2587 = vadd.f32 %v2159, %v2586
    %v2588 = vtanh.pop %v2587
    %2589 = vrot.lane.b32.xlu0 %v2588, 64
    %v2590 = vpop.permute.xlu0 %2589
    %v2591 = vsub.f32 1.0, %v2582
    %v2592 = vmul.f32 %v2591, %v2590
    %v2593 = vmul.f32 %v2582, %v2434
    %v2594 = vadd.f32 %v2592, %v2593
    %v2595 = vpack.c.bf16 %v2594, %v2594
    %2596 = vmatprep.subr.bf16.mxu0 0
    %2597 = vmatpush1.bf16.msra.mxu0 %v2260
    %2598 = vmatprep.subr.bf16.mxu0 0
    %2599 = vmatpush1.bf16.msra.mxu0 %v2261
    %2600 = vmatprep.subr.bf16.mxu0 0
    %2601 = vmatpush1.bf16.msra.mxu0 %v2262
    %2602 = vmatprep.subr.bf16.mxu0 0
    %2603 = vmatpush1.bf16.msra.mxu0 %v2263
    %2604 = vmatprep.subr.bf16.mxu0 0
    %2605 = vmatpush1.bf16.msra.mxu0 %v2264
    %2606 = vmatprep.subr.bf16.mxu0 0
    %2607 = vmatpush1.bf16.msra.mxu0 %v2265
    %2608 = vmatprep.subr.bf16.mxu0 0
    %2609 = vmatpush1.bf16.msra.mxu0 %v2266
    %2610 = vmatprep.subr.bf16.mxu0 0
    %2611 = vmatpush1.bf16.msra.mxu0 %v2267
    %2612 = vmatprep.subr.bf16.mxu0 0
    %2613 = vmatpush1.bf16.msra.mxu0 0
    %2614 = vmatprep.subr.bf16.mxu0 0
    %2615 = vmatpush1.bf16.msra.mxu0 0
    %2616 = vmatprep.subr.bf16.mxu0 0
    %2617 = vmatpush1.bf16.msra.mxu0 0
    %2618 = vmatprep.subr.bf16.mxu0 0
    %2619 = vmatpush1.bf16.msra.mxu0 0
    %2620 = vmatprep.subr.bf16.mxu0 0
    %2621 = vmatpush1.bf16.msra.mxu0 0
    %2622 = vmatprep.subr.bf16.mxu0 0
    %2623 = vmatpush1.bf16.msra.mxu0 0
    %2624 = vmatprep.subr.bf16.mxu0 0
    %2625 = vmatpush1.bf16.msra.mxu0 0
    %2626 = vmatprep.subr.bf16.mxu0 0
    %2627 = vmatpush1.bf16.msra.mxu0 0
    %2628 = vmatprep.mubr.bf16.mxu0 0
    %2629 = vmatmul.mubr.bf16.gmra.mrb[0].mxu0 %v2595
    %v2630 = vpop.f32.mrb[0].mxu0
    %v2631 = vadd.f32 %v2169, %v2630
    %v2632 = vpop.f32.mrb[0].mxu0
    %v2633 = vpop.f32.mrb[0].mxu0
    %v2634 = vpop.f32.mrb[0].mxu0
    %2635 = vdwg.mxu0
    %v2636 = vpack.c.bf16 %v2535, %v2535
    %2637 = vmatprep.subr.bf16.mxu0 0
    %2638 = vmatpush1.bf16.msra.mxu0 %v2309
    %2639 = vmatprep.subr.bf16.mxu0 0
    %2640 = vmatpush1.bf16.msra.mxu0 %v2310
    %2641 = vmatprep.subr.bf16.mxu0 0
    %2642 = vmatpush1.bf16.msra.mxu0 %v2311
    %2643 = vmatprep.subr.bf16.mxu0 0
    %2644 = vmatpush1.bf16.msra.mxu0 %v2312
    %2645 = vmatprep.subr.bf16.mxu0 0
    %2646 = vmatpush1.bf16.msra.mxu0 %v2313
    %2647 = vmatprep.subr.bf16.mxu0 0
    %2648 = vmatpush1.bf16.msra.mxu0 %v2314
    %2649 = vmatprep.subr.bf16.mxu0 0
    %2650 = vmatpush1.bf16.msra.mxu0 %v2315
    %2651 = vmatprep.subr.bf16.mxu0 0
    %2652 = vmatpush1.bf16.msra.mxu0 %v2316
    %2653 = vmatprep.subr.bf16.mxu0 0
    %2654 = vmatpush1.bf16.msra.mxu0 0
    %2655 = vmatprep.subr.bf16.mxu0 0
    %2656 = vmatpush1.bf16.msra.mxu0 0
    %2657 = vmatprep.subr.bf16.mxu0 0
    %2658 = vmatpush1.bf16.msra.mxu0 0
    %2659 = vmatprep.subr.bf16.mxu0 0
    %2660 = vmatpush1.bf16.msra.mxu0 0
    %2661 = vmatprep.subr.bf16.mxu0 0
    %2662 = vmatpush1.bf16.msra.mxu0 0
    %2663 = vmatprep.subr.bf16.mxu0 0
    %2664 = vmatpush1.bf16.msra.mxu0 0
    %2665 = vmatprep.subr.bf16.mxu0 0
    %2666 = vmatpush1.bf16.msra.mxu0 0
    %2667 = vmatprep.subr.bf16.mxu0 0
    %2668 = vmatpush1.bf16.msra.mxu0 0
    %2669 = vmatprep.mubr.bf16.mxu0 0
    %2670 = vmatmul.mubr.bf16.gmra.mrb[0].mxu0 %v2636
    %v2671 = vpop.f32.mrb[0].mxu0
    %v2672 = vadd.f32 0.0, %v2671
    %v2673 = vpop.f32.mrb[0].mxu0
    %v2674 = vpop.f32.mrb[0].mxu0
    %v2675 = vpop.f32.mrb[0].mxu0
    %2676 = vdwg.mxu0
    %v2677 = vadd.f32 %v2631, %v2672
    %v2678 = vxor.u32 %v2677, 2147483648
    %v2679 = vmul.f32 %v2678, 1.442695
    %v2680 = vpow.pop %v2679
    %v2681 = vadd.f32 %v2680, 1.0
    %v2682 = vrcp.pop %v2681
    %v2683 = vmul.f32 1.0, %v2682
    %2684 = vrot.lane.b32.xlu0 %v2683, 32
    %v2685 = vpop.permute.xlu0 %2684
    %v2686 = vadd.f32 %v2672, %v2183
    %v2687 = vmul.f32 %v2685, %v2686
    %v2688 = vadd.f32 %v2631, %v2687
    %v2689 = vtanh.pop %v2688
    %2690 = vrot.lane.b32.xlu0 %v2689, 64
    %v2691 = vpop.permute.xlu0 %2690
    %v2692 = vsub.f32 1.0, %v2683
    %v2693 = vmul.f32 %v2692, %v2691
    %v2694 = vmul.f32 %v2683, %v2535
    %v2695 = vadd.f32 %v2693, %v2694
    %2696 = vmatprep.subr.bf16.mxu0 0
    %2697 = vmatpush1.bf16.msra.mxu0 %v2193
    %2698 = vmatprep.subr.bf16.mxu0 0
    %2699 = vmatpush1.bf16.msra.mxu0 %v2194
    %2700 = vmatprep.subr.bf16.mxu0 0
    %2701 = vmatpush1.bf16.msra.mxu0 %v2195
    %2702 = vmatprep.subr.bf16.mxu0 0
    %2703 = vmatpush1.bf16.msra.mxu0 %v2196
    %2704 = vmatprep.subr.bf16.mxu0 0
    %2705 = vmatpush1.bf16.msra.mxu0 %v2197
    %2706 = vmatprep.subr.bf16.mxu0 0
    %2707 = vmatpush1.bf16.msra.mxu0 %v2198
    %2708 = vmatprep.subr.bf16.mxu0 0
    %2709 = vmatpush1.bf16.msra.mxu0 %v2199
    %2710 = vmatprep.subr.bf16.mxu0 0
    %2711 = vmatpush1.bf16.msra.mxu0 %v2200
    %2712 = vmatprep.subr.bf16.mxu0 0
    %2713 = vmatpush1.bf16.msra.mxu0 0
    %2714 = vmatprep.subr.bf16.mxu0 0
    %2715 = vmatpush1.bf16.msra.mxu0 0
    %2716 = vmatprep.subr.bf16.mxu0 0
    %2717 = vmatpush1.bf16.msra.mxu0 0
    %2718 = vmatprep.subr.bf16.mxu0 0
    %2719 = vmatpush1.bf16.msra.mxu0 0
    %2720 = vmatprep.subr.bf16.mxu0 0
    %2721 = vmatpush1.bf16.msra.mxu0 0
    %2722 = vmatprep.subr.bf16.mxu0 0
    %2723 = vmatpush1.bf16.msra.mxu0 0
    %2724 = vmatprep.subr.bf16.mxu0 0
    %2725 = vmatpush1.bf16.msra.mxu0 0
    %2726 = vmatprep.subr.bf16.mxu0 0
    %2727 = vmatpush1.bf16.msra.mxu0 0
    %2728 = vmatprep.mubr.bf16.mxu0 0
    %2729 = vmatmul.mubr.bf16.gmra.mrb[0].mxu0 %v2595
    %v2730 = vpop.f32.mrb[0].mxu0
    %v2731 = vadd.f32 0.0, %v2730
    %v2732 = vpop.f32.mrb[0].mxu0
    %v2733 = vpop.f32.mrb[0].mxu0
    %v2734 = vpop.f32.mrb[0].mxu0
    %2735 = vdwg.mxu0
    %v2736 = vadd.f32 %v2159, %v2731
    %v2737 = vxor.u32 %v2736, 2147483648
    %v2738 = vmul.f32 %v2737, 1.442695
    %v2739 = vpow.pop %v2738
    %v2740 = vadd.f32 %v2739, 1.0
    %v2741 = vrcp.pop %v2740
    %v2742 = vmul.f32 1.0, %v2741
    %2743 = vrot.lane.b32.xlu0 %v2742, 32
    %v2744 = vpop.permute.xlu0 %2743
    %v2745 = vadd.f32 %v2731, %v2176
    %v2746 = vmul.f32 %v2744, %v2745
    %v2747 = vadd.f32 %v2159, %v2746
    %v2748 = vtanh.pop %v2747
    %2749 = vrot.lane.b32.xlu0 %v2748, 64
    %v2750 = vpop.permute.xlu0 %2749
    %v2751 = vsub.f32 1.0, %v2742
    %v2752 = vmul.f32 %v2751, %v2750
    %v2753 = vmul.f32 %v2742, %v2594
    %v2754 = vadd.f32 %v2752, %v2753
    %v2755 = vpack.c.bf16 %v2754, %v2754
    %2756 = vmatprep.subr.bf16.mxu0 0
    %2757 = vmatpush1.bf16.msra.mxu0 %v2260
    %2758 = vmatprep.subr.bf16.mxu0 0
    %2759 = vmatpush1.bf16.msra.mxu0 %v2261
    %2760 = vmatprep.subr.bf16.mxu0 0
    %2761 = vmatpush1.bf16.msra.mxu0 %v2262
    %2762 = vmatprep.subr.bf16.mxu0 0
    %2763 = vmatpush1.bf16.msra.mxu0 %v2263
    %2764 = vmatprep.subr.bf16.mxu0 0
    %2765 = vmatpush1.bf16.msra.mxu0 %v2264
    %2766 = vmatprep.subr.bf16.mxu0 0
    %2767 = vmatpush1.bf16.msra.mxu0 %v2265
    %2768 = vmatprep.subr.bf16.mxu0 0
    %2769 = vmatpush1.bf16.msra.mxu0 %v2266
    %2770 = vmatprep.subr.bf16.mxu0 0
    %2771 = vmatpush1.bf16.msra.mxu0 %v2267
    %2772 = vmatprep.subr.bf16.mxu0 0
    %2773 = vmatpush1.bf16.msra.mxu0 0
    %2774 = vmatprep.subr.bf16.mxu0 0
    %2775 = vmatpush1.bf16.msra.mxu0 0
    %2776 = vmatprep.subr.bf16.mxu0 0
    %2777 = vmatpush1.bf16.msra.mxu0 0
    %2778 = vmatprep.subr.bf16.mxu0 0
    %2779 = vmatpush1.bf16.msra.mxu0 0
    %2780 = vmatprep.subr.bf16.mxu0 0
    %2781 = vmatpush1.bf16.msra.mxu0 0
    %2782 = vmatprep.subr.bf16.mxu0 0
    %2783 = vmatpush1.bf16.msra.mxu0 0
    %2784 = vmatprep.subr.bf16.mxu0 0
    %2785 = vmatpush1.bf16.msra.mxu0 0
    %2786 = vmatprep.subr.bf16.mxu0 0
    %2787 = vmatpush1.bf16.msra.mxu0 0
    %2788 = vmatprep.mubr.bf16.mxu0 0
    %2789 = vmatmul.mubr.bf16.gmra.mrb[0].mxu0 %v2755
    %v2790 = vpop.f32.mrb[0].mxu0
    %v2791 = vadd.f32 %v2169, %v2790
    %v2792 = vpop.f32.mrb[0].mxu0
    %v2793 = vpop.f32.mrb[0].mxu0
    %v2794 = vpop.f32.mrb[0].mxu0
    %2795 = vdwg.mxu0
    %v2796 = vpack.c.bf16 %v2695, %v2695
    %2797 = vmatprep.subr.bf16.mxu0 0
    %2798 = vmatpush1.bf16.msra.mxu0 %v2309
    %2799 = vmatprep.subr.bf16.mxu0 0
    %2800 = vmatpush1.bf16.msra.mxu0 %v2310
    %2801 = vmatprep.subr.bf16.mxu0 0
    %2802 = vmatpush1.bf16.msra.mxu0 %v2311
    %2803 = vmatprep.subr.bf16.mxu0 0
    %2804 = vmatpush1.bf16.msra.mxu0 %v2312
    %2805 = vmatprep.subr.bf16.mxu0 0
    %2806 = vmatpush1.bf16.msra.mxu0 %v2313
    %2807 = vmatprep.subr.bf16.mxu0 0
    %2808 = vmatpush1.bf16.msra.mxu0 %v2314
    %2809 = vmatprep.subr.bf16.mxu0 0
    %2810 = vmatpush1.bf16.msra.mxu0 %v2315
    %2811 = vmatprep.subr.bf16.mxu0 0
    %2812 = vmatpush1.bf16.msra.mxu0 %v2316
    %2813 = vmatprep.subr.bf16.mxu0 0
    %2814 = vmatpush1.bf16.msra.mxu0 0
    %2815 = vmatprep.subr.bf16.mxu0 0
    %2816 = vmatpush1.bf16.msra.mxu0 0
    %2817 = vmatprep.subr.bf16.mxu0 0
    %2818 = vmatpush1.bf16.msra.mxu0 0
    %2819 = vmatprep.subr.bf16.mxu0 0
    %2820 = vmatpush1.bf16.msra.mxu0 0
    %2821 = vmatprep.subr.bf16.mxu0 0
    %2822 = vmatpush1.bf16.msra.mxu0 0
    %2823 = vmatprep.subr.bf16.mxu0 0
    %2824 = vmatpush1.bf16.msra.mxu0 0
    %2825 = vmatprep.subr.bf16.mxu0 0
    %2826 = vmatpush1.bf16.msra.mxu0 0
    %2827 = vmatprep.subr.bf16.mxu0 0
    %2828 = vmatpush1.bf16.msra.mxu0 0
    %2829 = vmatprep.mubr.bf16.mxu0 0
    %2830 = vmatmul.mubr.bf16.gmra.mrb[0].mxu0 %v2796
    %v2831 = vpop.f32.mrb[0].mxu0
    %v2832 = vadd.f32 0.0, %v2831
    %v2833 = vpop.f32.mrb[0].mxu0
    %v2834 = vpop.f32.mrb[0].mxu0
    %v2835 = vpop.f32.mrb[0].mxu0
    %2836 = vdwg.mxu0
    %v2837 = vadd.f32 %v2791, %v2832
    %v2838 = vxor.u32 %v2837, 2147483648
    %v2839 = vmul.f32 %v2838, 1.442695
    %v2840 = vpow.pop %v2839
    %v2841 = vadd.f32 %v2840, 1.0
    %v2842 = vrcp.pop %v2841
    %v2843 = vmul.f32 1.0, %v2842
    %2844 = vrot.lane.b32.xlu0 %v2843, 32
    %v2845 = vpop.permute.xlu0 %2844
    %v2846 = vadd.f32 %v2832, %v2183
    %v2847 = vmul.f32 %v2845, %v2846
    %v2848 = vadd.f32 %v2791, %v2847
    %v2849 = vtanh.pop %v2848
    %2850 = vrot.lane.b32.xlu0 %v2849, 64
    %v2851 = vpop.permute.xlu0 %2850
    %v2852 = vsub.f32 1.0, %v2843
    %v2853 = vmul.f32 %v2852, %v2851
    %v2854 = vmul.f32 %v2843, %v2695
    %v2855 = vadd.f32 %v2853, %v2854
    %2856 = vmatprep.subr.bf16.mxu0 0
    %2857 = vmatpush1.bf16.msra.mxu0 %v2193
    %2858 = vmatprep.subr.bf16.mxu0 0
    %2859 = vmatpush1.bf16.msra.mxu0 %v2194
    %2860 = vmatprep.subr.bf16.mxu0 0
    %2861 = vmatpush1.bf16.msra.mxu0 %v2195
    %2862 = vmatprep.subr.bf16.mxu0 0
    %2863 = vmatpush1.bf16.msra.mxu0 %v2196
    %2864 = vmatprep.subr.bf16.mxu0 0
    %2865 = vmatpush1.bf16.msra.mxu0 %v2197
    %2866 = vmatprep.subr.bf16.mxu0 0
    %2867 = vmatpush1.bf16.msra.mxu0 %v2198
    %2868 = vmatprep.subr.bf16.mxu0 0
    %2869 = vmatpush1.bf16.msra.mxu0 %v2199
    %2870 = vmatprep.subr.bf16.mxu0 0
    %2871 = vmatpush1.bf16.msra.mxu0 %v2200
    %2872 = vmatprep.subr.bf16.mxu0 0
    %2873 = vmatpush1.bf16.msra.mxu0 0
    %2874 = vmatprep.subr.bf16.mxu0 0
    %2875 = vmatpush1.bf16.msra.mxu0 0
    %2876 = vmatprep.subr.bf16.mxu0 0
    %2877 = vmatpush1.bf16.msra.mxu0 0
    %2878 = vmatprep.subr.bf16.mxu0 0
    %2879 = vmatpush1.bf16.msra.mxu0 0
    %2880 = vmatprep.subr.bf16.mxu0 0
    %2881 = vmatpush1.bf16.msra.mxu0 0
    %2882 = vmatprep.subr.bf16.mxu0 0
    %2883 = vmatpush1.bf16.msra.mxu0 0
    %2884 = vmatprep.subr.bf16.mxu0 0
    %2885 = vmatpush1.bf16.msra.mxu0 0
    %2886 = vmatprep.subr.bf16.mxu0 0
    %2887 = vmatpush1.bf16.msra.mxu0 0
    %2888 = vmatprep.mubr.bf16.mxu0 0
    %2889 = vmatmul.mubr.bf16.gmra.mrb[0].mxu0 %v2755
    %v2890 = vpop.f32.mrb[0].mxu0
    %v2891 = vadd.f32 0.0, %v2890
    %v2892 = vpop.f32.mrb[0].mxu0
    %v2893 = vpop.f32.mrb[0].mxu0
    %v2894 = vpop.f32.mrb[0].mxu0
    %2895 = vdwg.mxu0
    %v2896 = vadd.f32 %v2159, %v2891
    %v2897 = vxor.u32 %v2896, 2147483648
    %v2898 = vmul.f32 %v2897, 1.442695
    %v2899 = vpow.pop %v2898
    %v2900 = vadd.f32 %v2899, 1.0
    %v2901 = vrcp.pop %v2900
    %v2902 = vmul.f32 1.0, %v2901
    %2903 = vrot.lane.b32.xlu0 %v2902, 32
    %v2904 = vpop.permute.xlu0 %2903
    %v2905 = vadd.f32 %v2891, %v2176
    %v2906 = vmul.f32 %v2904, %v2905
    %v2907 = vadd.f32 %v2159, %v2906
    %v2908 = vtanh.pop %v2907
    %2909 = vrot.lane.b32.xlu0 %v2908, 64
    %v2910 = vpop.permute.xlu0 %2909
    %v2911 = vsub.f32 1.0, %v2902
    %v2912 = vmul.f32 %v2911, %v2910
    %v2913 = vmul.f32 %v2902, %v2754
    %v2914 = vadd.f32 %v2912, %v2913
    %v2915 = vpack.c.bf16 %v2914, %v2914
    %2916 = vmatprep.subr.bf16.mxu0 0
    %2917 = vmatpush1.bf16.msra.mxu0 %v2260
    %2918 = vmatprep.subr.bf16.mxu0 0
    %2919 = vmatpush1.bf16.msra.mxu0 %v2261
    %2920 = vmatprep.subr.bf16.mxu0 0
    %2921 = vmatpush1.bf16.msra.mxu0 %v2262
    %2922 = vmatprep.subr.bf16.mxu0 0
    %2923 = vmatpush1.bf16.msra.mxu0 %v2263
    %2924 = vmatprep.subr.bf16.mxu0 0
    %2925 = vmatpush1.bf16.msra.mxu0 %v2264
    %2926 = vmatprep.subr.bf16.mxu0 0
    %2927 = vmatpush1.bf16.msra.mxu0 %v2265
    %2928 = vmatprep.subr.bf16.mxu0 0
    %2929 = vmatpush1.bf16.msra.mxu0 %v2266
    %2930 = vmatprep.subr.bf16.mxu0 0
    %2931 = vmatpush1.bf16.msra.mxu0 %v2267
    %2932 = vmatprep.subr.bf16.mxu0 0
    %2933 = vmatpush1.bf16.msra.mxu0 0
    %2934 = vmatprep.subr.bf16.mxu0 0
    %2935 = vmatpush1.bf16.msra.mxu0 0
    %2936 = vmatprep.subr.bf16.mxu0 0
    %2937 = vmatpush1.bf16.msra.mxu0 0
    %2938 = vmatprep.subr.bf16.mxu0 0
    %2939 = vmatpush1.bf16.msra.mxu0 0
    %2940 = vmatprep.subr.bf16.mxu0 0
    %2941 = vmatpush1.bf16.msra.mxu0 0
    %2942 = vmatprep.subr.bf16.mxu0 0
    %2943 = vmatpush1.bf16.msra.mxu0 0
    %2944 = vmatprep.subr.bf16.mxu0 0
    %2945 = vmatpush1.bf16.msra.mxu0 0
    %2946 = vmatprep.subr.bf16.mxu0 0
    %2947 = vmatpush1.bf16.msra.mxu0 0
    %2948 = vmatprep.mubr.bf16.mxu0 0
    %2949 = vmatmul.mubr.bf16.gmra.mrb[0].mxu0 %v2915
    %v2950 = vpop.f32.mrb[0].mxu0
    %v2951 = vadd.f32 %v2169, %v2950
    %v2952 = vpop.f32.mrb[0].mxu0
    %v2953 = vpop.f32.mrb[0].mxu0
    %v2954 = vpop.f32.mrb[0].mxu0
    %2955 = vdwg.mxu0
    %v2956 = vpack.c.bf16 %v2855, %v2855
    %2957 = vmatprep.subr.bf16.mxu0 0
    %2958 = vmatpush1.bf16.msra.mxu0 %v2309
    %2959 = vmatprep.subr.bf16.mxu0 0
    %2960 = vmatpush1.bf16.msra.mxu0 %v2310
    %2961 = vmatprep.subr.bf16.mxu0 0
    %2962 = vmatpush1.bf16.msra.mxu0 %v2311
    %2963 = vmatprep.subr.bf16.mxu0 0
    %2964 = vmatpush1.bf16.msra.mxu0 %v2312
    %2965 = vmatprep.subr.bf16.mxu0 0
    %2966 = vmatpush1.bf16.msra.mxu0 %v2313
    %2967 = vmatprep.subr.bf16.mxu0 0
    %2968 = vmatpush1.bf16.msra.mxu0 %v2314
    %2969 = vmatprep.subr.bf16.mxu0 0
    %2970 = vmatpush1.bf16.msra.mxu0 %v2315
    %2971 = vmatprep.subr.bf16.mxu0 0
    %2972 = vmatpush1.bf16.msra.mxu0 %v2316
    %2973 = vmatprep.subr.bf16.mxu0 0
    %2974 = vmatpush1.bf16.msra.mxu0 0
    %2975 = vmatprep.subr.bf16.mxu0 0
    %2976 = vmatpush1.bf16.msra.mxu0 0
    %2977 = vmatprep.subr.bf16.mxu0 0
    %2978 = vmatpush1.bf16.msra.mxu0 0
    %2979 = vmatprep.subr.bf16.mxu0 0
    %2980 = vmatpush1.bf16.msra.mxu0 0
    %2981 = vmatprep.subr.bf16.mxu0 0
    %2982 = vmatpush1.bf16.msra.mxu0 0
    %2983 = vmatprep.subr.bf16.mxu0 0
    %2984 = vmatpush1.bf16.msra.mxu0 0
    %2985 = vmatprep.subr.bf16.mxu0 0
    %2986 = vmatpush1.bf16.msra.mxu0 0
    %2987 = vmatprep.subr.bf16.mxu0 0
    %2988 = vmatpush1.bf16.msra.mxu0 0
    %2989 = vmatprep.mubr.bf16.mxu0 0
    %2990 = vmatmul.mubr.bf16.gmra.mrb[0].mxu0 %v2956
    %v2991 = vpop.f32.mrb[0].mxu0
    %v2992 = vadd.f32 0.0, %v2991
    %v2993 = vpop.f32.mrb[0].mxu0
    %v2994 = vpop.f32.mrb[0].mxu0
    %v2995 = vpop.f32.mrb[0].mxu0
    %2996 = vdwg.mxu0
    %v2997 = vadd.f32 %v2951, %v2992
    %v2998 = vxor.u32 %v2997, 2147483648
    %v2999 = vmul.f32 %v2998, 1.442695
    %v3000 = vpow.pop %v2999
    %v3001 = vadd.f32 %v3000, 1.0
    %v3002 = vrcp.pop %v3001
    %v3003 = vmul.f32 1.0, %v3002
    %3004 = vrot.lane.b32.xlu0 %v3003, 32
    %v3005 = vpop.permute.xlu0 %3004
    %v3006 = vadd.f32 %v2992, %v2183
    %v3007 = vmul.f32 %v3005, %v3006
    %v3008 = vadd.f32 %v2951, %v3007
    %v3009 = vtanh.pop %v3008
    %3010 = vrot.lane.b32.xlu0 %v3009, 64
    %v3011 = vpop.permute.xlu0 %3010
    %v3012 = vsub.f32 1.0, %v3003
    %v3013 = vmul.f32 %v3012, %v3011
    %v3014 = vmul.f32 %v3003, %v2855
    %v3015 = vadd.f32 %v3013, %v3014
    %3016 = vmatprep.subr.bf16.mxu0 0
    %3017 = vmatpush1.bf16.msra.mxu0 %v2193
    %3018 = vmatprep.subr.bf16.mxu0 0
    %3019 = vmatpush1.bf16.msra.mxu0 %v2194
    %3020 = vmatprep.subr.bf16.mxu0 0
    %3021 = vmatpush1.bf16.msra.mxu0 %v2195
    %3022 = vmatprep.subr.bf16.mxu0 0
    %3023 = vmatpush1.bf16.msra.mxu0 %v2196
    %3024 = vmatprep.subr.bf16.mxu0 0
    %3025 = vmatpush1.bf16.msra.mxu0 %v2197
    %3026 = vmatprep.subr.bf16.mxu0 0
    %3027 = vmatpush1.bf16.msra.mxu0 %v2198
    %3028 = vmatprep.subr.bf16.mxu0 0
    %3029 = vmatpush1.bf16.msra.mxu0 %v2199
    %3030 = vmatprep.subr.bf16.mxu0 0
    %3031 = vmatpush1.bf16.msra.mxu0 %v2200
    %3032 = vmatprep.subr.bf16.mxu0 0
    %3033 = vmatpush1.bf16.msra.mxu0 0
    %3034 = vmatprep.subr.bf16.mxu0 0
    %3035 = vmatpush1.bf16.msra.mxu0 0
    %3036 = vmatprep.subr.bf16.mxu0 0
    %3037 = vmatpush1.bf16.msra.mxu0 0
    %3038 = vmatprep.subr.bf16.mxu0 0
    %3039 = vmatpush1.bf16.msra.mxu0 0
    %3040 = vmatprep.subr.bf16.mxu0 0
    %3041 = vmatpush1.bf16.msra.mxu0 0
    %3042 = vmatprep.subr.bf16.mxu0 0
    %3043 = vmatpush1.bf16.msra.mxu0 0
    %3044 = vmatprep.subr.bf16.mxu0 0
    %3045 = vmatpush1.bf16.msra.mxu0 0
    %3046 = vmatprep.subr.bf16.mxu0 0
    %3047 = vmatpush1.bf16.msra.mxu0 0
    %3048 = vmatprep.mubr.bf16.mxu0 0
    %3049 = vmatmul.mubr.bf16.gmra.mrb[0].mxu0 %v2915
    %v3050 = vpop.f32.mrb[0].mxu0
    %v3051 = vadd.f32 0.0, %v3050
    %v3052 = vpop.f32.mrb[0].mxu0
    %v3053 = vpop.f32.mrb[0].mxu0
    %v3054 = vpop.f32.mrb[0].mxu0
    %3055 = vdwg.mxu0
    %v3056 = vadd.f32 %v2159, %v3051
    %v3057 = vxor.u32 %v3056, 2147483648
    %v3058 = vmul.f32 %v3057, 1.442695
    %v3059 = vpow.pop %v3058
    %v3060 = vadd.f32 %v3059, 1.0
    %v3061 = vrcp.pop %v3060
    %v3062 = vmul.f32 1.0, %v3061
    %3063 = vrot.lane.b32.xlu0 %v3062, 32
    %v3064 = vpop.permute.xlu0 %3063
    %v3065 = vadd.f32 %v3051, %v2176
    %v3066 = vmul.f32 %v3064, %v3065
    %v3067 = vadd.f32 %v2159, %v3066
    %v3068 = vtanh.pop %v3067
    %3069 = vrot.lane.b32.xlu0 %v3068, 64
    %v3070 = vpop.permute.xlu0 %3069
    %v3071 = vsub.f32 1.0, %v3062
    %v3072 = vmul.f32 %v3071, %v3070
    %v3073 = vmul.f32 %v3062, %v2914
    %v3074 = vadd.f32 %v3072, %v3073
    %v3075 = vpack.c.bf16 %v3074, %v3074
    %3076 = vmatprep.subr.bf16.mxu0 0
    %3077 = vmatpush1.bf16.msra.mxu0 %v2260
    %3078 = vmatprep.subr.bf16.mxu0 0
    %3079 = vmatpush1.bf16.msra.mxu0 %v2261
    %3080 = vmatprep.subr.bf16.mxu0 0
    %3081 = vmatpush1.bf16.msra.mxu0 %v2262
    %3082 = vmatprep.subr.bf16.mxu0 0
    %3083 = vmatpush1.bf16.msra.mxu0 %v2263
    %3084 = vmatprep.subr.bf16.mxu0 0
    %3085 = vmatpush1.bf16.msra.mxu0 %v2264
    %3086 = vmatprep.subr.bf16.mxu0 0
    %3087 = vmatpush1.bf16.msra.mxu0 %v2265
    %3088 = vmatprep.subr.bf16.mxu0 0
    %3089 = vmatpush1.bf16.msra.mxu0 %v2266
    %3090 = vmatprep.subr.bf16.mxu0 0
    %3091 = vmatpush1.bf16.msra.mxu0 %v2267
    %3092 = vmatprep.subr.bf16.mxu0 0
    %3093 = vmatpush1.bf16.msra.mxu0 0
    %3094 = vmatprep.subr.bf16.mxu0 0
    %3095 = vmatpush1.bf16.msra.mxu0 0
    %3096 = vmatprep.subr.bf16.mxu0 0
    %3097 = vmatpush1.bf16.msra.mxu0 0
    %3098 = vmatprep.subr.bf16.mxu0 0
    %3099 = vmatpush1.bf16.msra.mxu0 0
    %3100 = vmatprep.subr.bf16.mxu0 0
    %3101 = vmatpush1.bf16.msra.mxu0 0
    %3102 = vmatprep.subr.bf16.mxu0 0
    %3103 = vmatpush1.bf16.msra.mxu0 0
    %3104 = vmatprep.subr.bf16.mxu0 0
    %3105 = vmatpush1.bf16.msra.mxu0 0
    %3106 = vmatprep.subr.bf16.mxu0 0
    %3107 = vmatpush1.bf16.msra.mxu0 0
    %3108 = vmatprep.mubr.bf16.mxu0 0
    %3109 = vmatmul.mubr.bf16.gmra.mrb[0].mxu0 %v3075
    %v3110 = vpop.f32.mrb[0].mxu0
    %v3111 = vadd.f32 %v2169, %v3110
    %v3112 = vpop.f32.mrb[0].mxu0
    %v3113 = vpop.f32.mrb[0].mxu0
    %v3114 = vpop.f32.mrb[0].mxu0
    %3115 = vdwg.mxu0
    %v3116 = vpack.c.bf16 %v3015, %v3015
    %3117 = vmatprep.subr.bf16.mxu0 0
    %3118 = vmatpush1.bf16.msra.mxu0 %v2309
    %3119 = vmatprep.subr.bf16.mxu0 0
    %3120 = vmatpush1.bf16.msra.mxu0 %v2310
    %3121 = vmatprep.subr.bf16.mxu0 0
    %3122 = vmatpush1.bf16.msra.mxu0 %v2311
    %3123 = vmatprep.subr.bf16.mxu0 0
    %3124 = vmatpush1.bf16.msra.mxu0 %v2312
    %3125 = vmatprep.subr.bf16.mxu0 0
    %3126 = vmatpush1.bf16.msra.mxu0 %v2313
    %3127 = vmatprep.subr.bf16.mxu0 0
    %3128 = vmatpush1.bf16.msra.mxu0 %v2314
    %3129 = vmatprep.subr.bf16.mxu0 0
    %3130 = vmatpush1.bf16.msra.mxu0 %v2315
    %3131 = vmatprep.subr.bf16.mxu0 0
    %3132 = vmatpush1.bf16.msra.mxu0 %v2316
    %3133 = vmatprep.subr.bf16.mxu0 0
    %3134 = vmatpush1.bf16.msra.mxu0 0
    %3135 = vmatprep.subr.bf16.mxu0 0
    %3136 = vmatpush1.bf16.msra.mxu0 0
    %3137 = vmatprep.subr.bf16.mxu0 0
    %3138 = vmatpush1.bf16.msra.mxu0 0
    %3139 = vmatprep.subr.bf16.mxu0 0
    %3140 = vmatpush1.bf16.msra.mxu0 0
    %3141 = vmatprep.subr.bf16.mxu0 0
    %3142 = vmatpush1.bf16.msra.mxu0 0
    %3143 = vmatprep.subr.bf16.mxu0 0
    %3144 = vmatpush1.bf16.msra.mxu0 0
    %3145 = vmatprep.subr.bf16.mxu0 0
    %3146 = vmatpush1.bf16.msra.mxu0 0
    %3147 = vmatprep.subr.bf16.mxu0 0
    %3148 = vmatpush1.bf16.msra.mxu0 0
    %3149 = vmatprep.mubr.bf16.mxu0 0
    %3150 = vmatmul.mubr.bf16.gmra.mrb[0].mxu0 %v3116
    %v3151 = vpop.f32.mrb[0].mxu0
    %v3152 = vadd.f32 0.0, %v3151
    %v3153 = vpop.f32.mrb[0].mxu0
    %v3154 = vpop.f32.mrb[0].mxu0
    %v3155 = vpop.f32.mrb[0].mxu0
    %3156 = vdwg.mxu0
    %v3157 = vadd.f32 %v3111, %v3152
    %v3158 = vxor.u32 %v3157, 2147483648
    %v3159 = vmul.f32 %v3158, 1.442695
    %v3160 = vpow.pop %v3159
    %v3161 = vadd.f32 %v3160, 1.0
    %v3162 = vrcp.pop %v3161
    %v3163 = vmul.f32 1.0, %v3162
    %3164 = vrot.lane.b32.xlu0 %v3163, 32
    %v3165 = vpop.permute.xlu0 %3164
    %v3166 = vadd.f32 %v3152, %v2183
    %v3167 = vmul.f32 %v3165, %v3166
    %v3168 = vadd.f32 %v3111, %v3167
    %v3169 = vtanh.pop %v3168
    %3170 = vrot.lane.b32.xlu0 %v3169, 64
    %v3171 = vpop.permute.xlu0 %3170
    %v3172 = vsub.f32 1.0, %v3163
    %v3173 = vmul.f32 %v3172, %v3171
    %v3174 = vmul.f32 %v3163, %v3015
    %v3175 = vadd.f32 %v3173, %v3174
    %s3176 = sshll.u32 %s2186, 4
    %3177 = dma.done %s298, %s3176
    %s3178 = sshll.u32 %s2186, 4
    %3179 = dma.done %s310, %s3178
    %v3180 = vld [vmem:[#allocation6] sm:$0xff]
    %v3181 = vld [vmem:[#allocation6 + $0x8] sm:$0xff]
    %v3182 = vld [vmem:[#allocation6 + $0x10] sm:$0xff]
    %v3183 = vld [vmem:[#allocation6 + $0x18] sm:$0xff]
    %v3184 = vld [vmem:[#allocation6 + $0x20] sm:$0xff]
    %v3185 = vld [vmem:[#allocation6 + $0x28] sm:$0xff]
    %v3186 = vld [vmem:[#allocation6 + $0x30] sm:$0xff]
    %v3187 = vld [vmem:[#allocation6 + $0x38] sm:$0xff]
    %v3188 = vpack.c.bf16 %v2535, %v2375
    %v3189 = vpack.c.bf16 %v2855, %v2695
    %v3190 = vpack.c.bf16 %v3175, %v3015
    %v3191 = vld [vmem:[#allocation24] sm:$0x1]
    %v3193 = vlaneseq
    %v3194 = vshrl.u32 %v3193, 7
    %v3195 = vsub.s32 0, %v3194
    %v3196 = vrot.slane %v3191, %v3195
    %3198 = vmatprep.subr.bf16.mxu0 0
    %3199 = vmatpush1.bf16.msra.mxu0 %v3180
    %3200 = vmatprep.subr.bf16.mxu0 0
    %3201 = vmatpush1.bf16.msra.mxu0 %v3181
    %3202 = vmatprep.subr.bf16.mxu0 0
    %3203 = vmatpush1.bf16.msra.mxu0 %v3182
    %3204 = vmatprep.subr.bf16.mxu0 0
    %3205 = vmatpush1.bf16.msra.mxu0 %v3183
    %3206 = vmatprep.subr.bf16.mxu0 0
    %3207 = vmatpush1.bf16.msra.mxu0 %v3184
    %3208 = vmatprep.subr.bf16.mxu0 0
    %3209 = vmatpush1.bf16.msra.mxu0 %v3185
    %3210 = vmatprep.subr.bf16.mxu0 0
    %3211 = vmatpush1.bf16.msra.mxu0 %v3186
    %3212 = vmatprep.subr.bf16.mxu0 0
    %3213 = vmatpush1.bf16.msra.mxu0 %v3187
    %3214 = vmatprep.subr.bf16.mxu0 0
    %3215 = vmatpush1.bf16.msra.mxu0 0
    %3216 = vmatprep.subr.bf16.mxu0 0
    %3217 = vmatpush1.bf16.msra.mxu0 0
    %3218 = vmatprep.subr.bf16.mxu0 0
    %3219 = vmatpush1.bf16.msra.mxu0 0
    %3220 = vmatprep.subr.bf16.mxu0 0
    %3221 = vmatpush1.bf16.msra.mxu0 0
    %3222 = vmatprep.subr.bf16.mxu0 0
    %3223 = vmatpush1.bf16.msra.mxu0 0
    %3224 = vmatprep.subr.bf16.mxu0 0
    %3225 = vmatpush1.bf16.msra.mxu0 0
    %3226 = vmatprep.subr.bf16.mxu0 0
    %3227 = vmatpush1.bf16.msra.mxu0 0
    %3228 = vmatprep.subr.bf16.mxu0 0
    %3229 = vmatpush1.bf16.msra.mxu0 0
    %3230 = vmatprep.mubr.bf16.mxu0 0
    %3231 = vmatmul.mubr.bf16.gmra.mrb[0].mxu0 %v3188
    %v3232 = vpop.f32.mrb[0].mxu0
    %v3233 = vadd.f32 %v3196, %v3232
    %v3234 = vpop.f32.mrb[0].mxu0
    %v3235 = vpop.f32.mrb[0].mxu0
    %v3236 = vadd.f32 %v3196, %v3235
    %v3237 = vpop.f32.mrb[0].mxu0
    %3238 = vmatprep.mubr.bf16.mxu0 0
    %3239 = vmatmul.mubr.bf16.gmra.mrb[0].mxu0 %v3189
    %v3240 = vpop.f32.mrb[0].mxu0
    %v3241 = vadd.f32 %v3196, %v3240
    %v3242 = vpop.f32.mrb[0].mxu0
    %v3243 = vpop.f32.mrb[0].mxu0
    %v3244 = vadd.f32 %v3196, %v3243
    %v3245 = vpop.f32.mrb[0].mxu0
    %3246 = vmatprep.mubr.bf16.mxu0 0
    %3247 = vmatmul.mubr.bf16.gmra.mrb[0].mxu0 %v3190
    %v3248 = vpop.f32.mrb[0].mxu0
    %v3249 = vadd.f32 %v3196, %v3248
    %v3250 = vpop.f32.mrb[0].mxu0
    %v3251 = vpop.f32.mrb[0].mxu0
    %v3252 = vadd.f32 %v3196, %v3251
    %v3253 = vpop.f32.mrb[0].mxu0
    %3254 = vdwg.mxu0
    %v3255 = vmax.f32 %v3233, 0.0
    %v3256 = vmax.f32 %v3236, 0.0
    %v3257 = vmax.f32 %v3241, 0.0
    %v3258 = vmax.f32 %v3244, 0.0
    %v3259 = vmax.f32 %v3249, 0.0
    %v3260 = vmax.f32 %v3252, 0.0
    %v3261 = vld [vmem:[#allocation7] sm:$0xff]
    %v3262 = vld [vmem:[#allocation7 + $0x8] sm:$0xff]
    %v3263 = vld [vmem:[#allocation7 + $0x10] sm:$0xff]
    %v3264 = vld [vmem:[#allocation7 + $0x18] sm:$0xff]
    %v3265 = vld [vmem:[#allocation7 + $0x20] sm:$0xff]
    %v3266 = vld [vmem:[#allocation7 + $0x28] sm:$0xff]
    %v3267 = vld [vmem:[#allocation7 + $0x30] sm:$0xff]
    %v3268 = vld [vmem:[#allocation7 + $0x38] sm:$0xff]
    %v3269 = vpack.c.bf16 %v3256, %v3255
    %v3270 = vpack.c.bf16 %v3258, %v3257
    %v3271 = vpack.c.bf16 %v3260, %v3259
    %v3272 = vld [vmem:[#allocation26] sm:$0x1]
    %v3274 = vlaneseq
    %v3275 = vshrl.u32 %v3274, 7
    %v3276 = vsub.s32 0, %v3275
    %v3277 = vrot.slane %v3272, %v3276
    %3279 = vmatprep.subr.bf16.mxu0 0
    %3280 = vmatpush1.bf16.msra.mxu0 %v3261
    %3281 = vmatprep.subr.bf16.mxu0 0
    %3282 = vmatpush1.bf16.msra.mxu0 %v3262
    %3283 = vmatprep.subr.bf16.mxu0 0
    %3284 = vmatpush1.bf16.msra.mxu0 %v3263
    %3285 = vmatprep.subr.bf16.mxu0 0
    %3286 = vmatpush1.bf16.msra.mxu0 %v3264
    %3287 = vmatprep.subr.bf16.mxu0 0
    %3288 = vmatpush1.bf16.msra.mxu0 %v3265
    %3289 = vmatprep.subr.bf16.mxu0 0
    %3290 = vmatpush1.bf16.msra.mxu0 %v3266
    %3291 = vmatprep.subr.bf16.mxu0 0
    %3292 = vmatpush1.bf16.msra.mxu0 %v3267
    %3293 = vmatprep.subr.bf16.mxu0 0
    %3294 = vmatpush1.bf16.msra.mxu0 %v3268
    %3295 = vmatprep.subr.bf16.mxu0 0
    %3296 = vmatpush1.bf16.msra.mxu0 0
    %3297 = vmatprep.subr.bf16.mxu0 0
    %3298 = vmatpush1.bf16.msra.mxu0 0
    %3299 = vmatprep.subr.bf16.mxu0 0
    %3300 = vmatpush1.bf16.msra.mxu0 0
    %3301 = vmatprep.subr.bf16.mxu0 0
    %3302 = vmatpush1.bf16.msra.mxu0 0
    %3303 = vmatprep.subr.bf16.mxu0 0
    %3304 = vmatpush1.bf16.msra.mxu0 0
    %3305 = vmatprep.subr.bf16.mxu0 0
    %3306 = vmatpush1.bf16.msra.mxu0 0
    %3307 = vmatprep.subr.bf16.mxu0 0
    %3308 = vmatpush1.bf16.msra.mxu0 0
    %3309 = vmatprep.subr.bf16.mxu0 0
    %3310 = vmatpush1.bf16.msra.mxu0 0
    %3311 = vmatprep.mubr.bf16.mxu0 0
    %3312 = vmatmul.mubr.bf16.gmra.mrb[0].mxu0 %v3269
    %v3313 = vpop.f32.mrb[0].mxu0
    %v3314 = vadd.f32 %v3277, %v3313
    %v3315 = vpop.f32.mrb[0].mxu0
    %v3316 = vpop.f32.mrb[0].mxu0
    %v3317 = vadd.f32 %v3277, %v3316
    %v3318 = vpop.f32.mrb[0].mxu0
    %3319 = vmatprep.mubr.bf16.mxu0 0
    %3320 = vmatmul.mubr.bf16.gmra.mrb[0].mxu0 %v3270
    %v3321 = vpop.f32.mrb[0].mxu0
    %v3322 = vadd.f32 %v3277, %v3321
    %v3323 = vpop.f32.mrb[0].mxu0
    %v3324 = vpop.f32.mrb[0].mxu0
    %v3325 = vadd.f32 %v3277, %v3324
    %v3326 = vpop.f32.mrb[0].mxu0
    %3327 = vmatprep.mubr.bf16.mxu0 0
    %3328 = vmatmul.mubr.bf16.gmra.mrb[0].mxu0 %v3271
    %v3329 = vpop.f32.mrb[0].mxu0
    %v3330 = vadd.f32 %v3277, %v3329
    %v3331 = vpop.f32.mrb[0].mxu0
    %v3332 = vpop.f32.mrb[0].mxu0
    %v3333 = vadd.f32 %v3277, %v3332
    %v3334 = vpop.f32.mrb[0].mxu0
    %3335 = vdwg.mxu0
    %3336 = vst [vmem:[#allocation27] sm:$0xff] %v3314
    %3337 = vst [vmem:[#allocation27 + $0x8] sm:$0xff] %v3317
    %3338 = vst [vmem:[#allocation27 + $0x10] sm:$0xff] %v3322
    %3339 = vst [vmem:[#allocation27 + $0x18] sm:$0xff] %v3325
    %3340 = vst [vmem:[#allocation27 + $0x20] sm:$0xff] %v3330
    %3341 = vst [vmem:[#allocation27 + $0x28] sm:$0xff] %v3333
    // Predicated region
    $region172: #{tpu_custom_call.1} parent=1 // pred_check
      _
    $region173: #{tpu_custom_call.1} parent=1 // pred_check_branch
      %3343 = sbr.rel (0) target = $region175
    $region174: #{tpu_custom_call.1} parent=1 // pred_region
      %s3345 = ssub.s32 768, 768
      %3346 = vsyncadd [#allocation11], %s3345
      %s3347 = sshll.u32 [#allocation27], 4
      %s3348 = int_to_ptr.vmem [resolvable:$true] %s3347
      %3353 = dma.vmem_to_hbm [thread:$0]  %s3348, 768, %s24, [#allocation11], 128, 128, 8
    $region175: #{tpu_custom_call.1} parent=1 // pred_fallthru
      _
    // Predicated region
    $region176: #{tpu_custom_call.1} parent=1 // pred_check
      _
    $region177: #{tpu_custom_call.1} parent=1 // pred_check_branch
      %3355 = sbr.rel (0) target = $region179
    $region178: #{tpu_custom_call.1} parent=1 // pred_region
      %3356 = dma.done [#allocation11], 768
    $region179: #{tpu_custom_call.1} parent=1 // pred_fallthru
      _
    %3357 = vsyncpa [#allocation10], 1
    %3358 = vsyncpa [#allocation13], 1
    %3359 = vsyncpa [#allocation16], 1
    %3360 = vsyncpa [#allocation19], 1
    %3361 = vsyncpa [#allocation22], 1
    %3362 = vsyncpa [#allocation25], 1
    %3363 = vsyncpa [#allocation11], 1
  %3364 = vsyncmov [#allocation8]
  %s3365 = vpop.sfrf %3364
  %p3366 = scmp.eq.s32.totalorder %s3365, 0
  %p3367 = pneg %p3366
  %3369 = shalt.err (%p3367)
  %s3370 = scalar_lea.sflag [#allocation8], 1
  %3371 = vsyncmov %s3370
  %s3372 = vpop.sfrf %3371
  %p3373 = scmp.eq.s32.totalorder %s3372, 0
  %p3374 = pneg %p3373
  %3376 = shalt.err (%p3374)
  %s3377 = scalar_lea.sflag [#allocation8], 2
  %3378 = vsyncmov %s3377
  %s3379 = vpop.sfrf %3378
  %p3380 = scmp.eq.s32.totalorder %s3379, 0
  %p3381 = pneg %p3380
  %3383 = shalt.err (%p3381)
  %s3384 = scalar_lea.sflag [#allocation8], 3
  %3385 = vsyncmov %s3384
  %s3386 = vpop.sfrf %3385
  %p3387 = scmp.eq.s32.totalorder %s3386, 0
  %p3388 = pneg %p3387
  %3390 = shalt.err (%p3388)
  %s3391 = scalar_lea.sflag [#allocation8], 4
  %3392 = vsyncmov %s3391
  %s3393 = vpop.sfrf %3392
  %p3394 = scmp.eq.s32.totalorder %s3393, 0
  %p3395 = pneg %p3394
  %3397 = shalt.err (%p3395)
  %s3398 = scalar_lea.sflag [#allocation8], 5
  %3399 = vsyncmov %s3398
  %s3400 = vpop.sfrf %3399
  %p3401 = scmp.eq.s32.totalorder %s3400, 0
  %p3402 = pneg %p3401
  %3404 = shalt.err (%p3402)

</llo_original>
